<compile_context>
chip_gen: v7x
topology: tpu7x:2x2x1
jax: 0.10.0
libtpu: 0.0.40
codegen_flags: <defaults>
</compile_context>

<pallas_src>
import functools

import jax
import jax.numpy as jnp
import numpy as np
from jax import lax
from jax.experimental import pallas as pl
from jax.experimental.pallas import tpu as pltpu

EPS = 1e-5


# ---------------------------------------------------------------------------
# Pallas kernel: entire SfPEncoderBlock for one image, fully resident in VMEM
# ---------------------------------------------------------------------------
def _sfp_block_kernel(xph_ref, w1_ref, w2_ref, wd_ref,
                      s1_ref, t1_ref, s2_ref, t2_ref,
                      o_ref, o1p_ref, *, Ho, Wo, Hph, Cin, planes):
    """
    xph_ref : (1, 4*Hph, Wph, Cin) bf16 -- 4 stride-2 phases of the 1px-padded
              input, stacked along rows (phase p occupies rows [p*Hph, (p+1)*Hph)).
    w1_ref  : (9, Cin, planes)    bf16  conv1 taps (kh*3+kw, Cin, Cout)
    w2_ref  : (9, planes, planes) bf16  conv2 taps
    wd_ref  : (Cin, planes)       bf16  1x1 stride-2 downsample
    s*/t*   : (1, planes) f32           folded BN scale / (BN + conv-bias) shift
    o_ref   : (1, Ho, Wo, planes) f32   output block (NHWC)
    o1p_ref : (Ho+2, Wo+2, planes) bf16 scratch: conv1 activation + zero halo
    """
    M = Ho * Wo

    # ---- conv1 (3x3, stride 2): 9 tap matmuls over the stride-2 phases -----
    acc1 = jnp.zeros((M, planes), jnp.float32)
    for dh in range(3):
        for dw in range(3):
            ph = (dh % 2) * 2 + (dw % 2)        # which phase holds this tap
            r0 = ph * Hph + dh // 2             # row offset inside xph
            c0 = dw // 2
            tap = xph_ref[0, r0:r0 + Ho, c0:c0 + Wo, :].reshape(M, Cin)
            acc1 = acc1 + jnp.dot(tap, w1_ref[dh * 3 + dw],
                                  preferred_element_type=jnp.float32)

    # ---- downsample (1x1, stride 2) == phase (odd, odd) of the padded input
    xds = xph_ref[0, 3 * Hph:3 * Hph + Ho, 0:Wo, :].reshape(M, Cin)
    ident = jnp.dot(xds, wd_ref[...], preferred_element_type=jnp.float32)

    # ---- BN1 + ReLU (f32 epilogue), stash as bf16 with a zero halo ----------
    a1 = jnp.maximum(acc1 * s1_ref[...] + t1_ref[...], 0.0)
    o1p_ref[...] = jnp.zeros_like(o1p_ref)
    o1p_ref[1:Ho + 1, 1:Wo + 1, :] = (
        a1.reshape(Ho, Wo, planes).astype(o1p_ref.dtype))

    # ---- conv2 (3x3, stride 1): 9 tap matmuls over the haloed scratch -------
    acc2 = jnp.zeros((M, planes), jnp.float32)
    for dh in range(3):
        for dw in range(3):
            tap = o1p_ref[dh:dh + Ho, dw:dw + Wo, :].reshape(M, planes)
            acc2 = acc2 + jnp.dot(tap, w2_ref[dh * 3 + dw],
                                  preferred_element_type=jnp.float32)

    # ---- BN2 + residual + ReLU (f32 epilogue) -------------------------------
    out = jnp.maximum(acc2 * s2_ref[...] + t2_ref[...] + ident, 0.0)
    o_ref[0] = out.reshape(Ho, Wo, planes).astype(o_ref.dtype)


# ---------------------------------------------------------------------------
# Wrapper: layout prep (cheap XLA relayouts only) + the single pallas_call
# ---------------------------------------------------------------------------
def sfp_encoder_block(x_nchw, params):
    x = jnp.transpose(x_nchw, (0, 2, 3, 1)).astype(jnp.float32)      # NHWC
    N, H, W, Cin = x.shape
    assert H % 2 == 0 and W % 2 == 0, "expect even spatial dims"
    planes = params["conv1_w"].shape[0]
    Ho, Wo = H // 2, W // 2
    Hph, Wph = Ho + 1, Wo + 1          # per-phase extent of the 1px-padded input

    # 1px spatial zero pad + stride-2 phase split (a relayout: total activation
    # bytes stay ~1x in HBM, unlike im2col's 9x duplication).
    xpad = jnp.pad(x, ((0, 0), (1, 1), (1, 1), (0, 0)))
    xph = jnp.stack([xpad[:, a::2, b::2, :] for a in (0, 1) for b in (0, 1)],
                    axis=1)                                # (N, 4, Hph, Wph, Cin)
    xph = xph.reshape(N, 4 * Hph, Wph, Cin).astype(jnp.bfloat16)

    # Weights -> matmul-RHS layout, bf16 (accumulation stays f32 on the MXU).
    w1 = jnp.transpose(params["conv1_w"], (2, 3, 1, 0)).reshape(9, Cin, planes)
    w1 = w1.astype(jnp.bfloat16)
    w2 = jnp.transpose(params["conv2_w"], (2, 3, 1, 0)).reshape(9, planes, planes)
    w2 = w2.astype(jnp.bfloat16)
    wd = params["down_w"].reshape(planes, Cin).T.astype(jnp.bfloat16)

    # Fold conv biases (and the downsample bias) into the BN affine vectors.
    s1 = params["bn1_g"] * lax.rsqrt(params["bn1_v"] + EPS)
    t1 = (params["conv1_b"] - params["bn1_m"]) * s1 + params["bn1_b"]
    s2 = params["bn2_g"] * lax.rsqrt(params["bn2_v"] + EPS)
    t2 = ((params["conv2_b"] - params["bn2_m"]) * s2 + params["bn2_b"]
          + params["down_b"])
    s1 = s1.reshape(1, planes).astype(jnp.float32)
    t1 = t1.reshape(1, planes).astype(jnp.float32)
    s2 = s2.reshape(1, planes).astype(jnp.float32)
    t2 = t2.reshape(1, planes).astype(jnp.float32)

    kernel = functools.partial(_sfp_block_kernel, Ho=Ho, Wo=Wo, Hph=Hph,
                               Cin=Cin, planes=planes)

    flops = 2 * N * Ho * Wo * planes * (9 * Cin + 9 * planes + Cin)
    bytes_accessed = (xph.size * 2 + w1.size * 2 + w2.size * 2 + wd.size * 2
                      + 4 * planes * 4 + N * Ho * Wo * planes * 4)

    out_nhwc = pl.pallas_call(
        kernel,
        out_shape=jax.ShapeDtypeStruct((N, Ho, Wo, planes), jnp.float32),
        grid=(N,),
        in_specs=[
            pl.BlockSpec((1, 4 * Hph, Wph, Cin), lambda n: (n, 0, 0, 0)),
            pl.BlockSpec((9, Cin, planes), lambda n: (0, 0, 0)),
            pl.BlockSpec((9, planes, planes), lambda n: (0, 0, 0)),
            pl.BlockSpec((Cin, planes), lambda n: (0, 0)),
            pl.BlockSpec((1, planes), lambda n: (0, 0)),
            pl.BlockSpec((1, planes), lambda n: (0, 0)),
            pl.BlockSpec((1, planes), lambda n: (0, 0)),
            pl.BlockSpec((1, planes), lambda n: (0, 0)),
        ],
        out_specs=pl.BlockSpec((1, Ho, Wo, planes), lambda n: (n, 0, 0, 0)),
        scratch_shapes=[pltpu.VMEM((Ho + 2, Wo + 2, planes), jnp.bfloat16)],
        compiler_params=pltpu.CompilerParams(
            dimension_semantics=("parallel",),   # v7x: 2 TCs split the batch
            vmem_limit_bytes=32 * 1024 * 1024,
        ),
        cost_estimate=pl.CostEstimate(flops=flops, transcendentals=0,
                                      bytes_accessed=bytes_accessed),
    )(xph, w1, w2, wd, s1, t1, s2, t2)

    return jnp.transpose(out_nhwc, (0, 3, 1, 2))                     # NCHW


# ---------------------------------------------------------------------------
# Pure-JAX reference (mirrors the PyTorch forward, BN in eval mode, f32)
# ---------------------------------------------------------------------------
def reference(x, p):
    def conv(x, w, b, stride, pad):
        y = lax.conv_general_dilated(
            x, w, (stride, stride), [(pad, pad), (pad, pad)],
            dimension_numbers=("NCHW", "OIHW", "NCHW"))
        return y + b[None, :, None, None]

    def bn(x, g, b, m, v):
        s = g / jnp.sqrt(v + EPS)
        return (x - m[None, :, None, None]) * s[None, :, None, None] + b[None, :, None, None]

    identity = conv(x, p["down_w"], p["down_b"], 2, 0)
    out = conv(x, p["conv1_w"], p["conv1_b"], 2, 1)
    out = jnp.maximum(bn(out, p["bn1_g"], p["bn1_b"], p["bn1_m"], p["bn1_v"]), 0.0)
    out = conv(out, p["conv2_w"], p["conv2_b"], 1, 1)
    out = bn(out, p["bn2_g"], p["bn2_b"], p["bn2_m"], p["bn2_v"])
    out = jnp.maximum(out + identity, 0.0)
    return out


# ---------------------------------------------------------------------------
if __name__ == "__main__":
    key = jax.random.PRNGKey(0)
    ks = jax.random.split(key, 16)

    N, Cin, H, W = 2, 4, 16, 16
    planes = 8

    x = jax.random.normal(ks[0], (N, Cin, H, W), jnp.float32)

    params = {
        "conv1_w": 0.1 * jax.random.normal(ks[1], (planes, Cin, 3, 3), jnp.float32),
        "conv1_b": 0.1 * jax.random.normal(ks[2], (planes,), jnp.float32),
        "conv2_w": 0.1 * jax.random.normal(ks[3], (planes, planes, 3, 3), jnp.float32),
        "conv2_b": 0.1 * jax.random.normal(ks[4], (planes,), jnp.float32),
        "down_w": 0.1 * jax.random.normal(ks[5], (planes, Cin, 1, 1), jnp.float32),
        "down_b": 0.1 * jax.random.normal(ks[6], (planes,), jnp.float32),
        "bn1_g": 1.0 + 0.1 * jax.random.normal(ks[7], (planes,), jnp.float32),
        "bn1_b": 0.1 * jax.random.normal(ks[8], (planes,), jnp.float32),
        "bn1_m": 0.1 * jax.random.normal(ks[9], (planes,), jnp.float32),
        "bn1_v": 0.5 + jnp.abs(jax.random.normal(ks[10], (planes,), jnp.float32)),
        "bn2_g": 1.0 + 0.1 * jax.random.normal(ks[11], (planes,), jnp.float32),
        "bn2_b": 0.1 * jax.random.normal(ks[12], (planes,), jnp.float32),
        "bn2_m": 0.1 * jax.random.normal(ks[13], (planes,), jnp.float32),
        "bn2_v": 0.5 + jnp.abs(jax.random.normal(ks[14], (planes,), jnp.float32)),
    }

    out = jax.block_until_ready(jax.jit(sfp_encoder_block)(x, params))
    ref = jax.block_until_ready(reference(x, params))

    assert out.shape == (N, planes, H // 2, W // 2), out.shape
    # bf16 matmul operands + f32 accumulation -> small rounding vs. the f32 ref.
    np.testing.assert_allclose(np.asarray(out), np.asarray(ref), rtol=2e-2, atol=2e-2)

    print("KERNEL_OK")
</pallas_src>

<mosaic_0001>
module attributes {stable_mosaic.version = 11 : i64} {
  func.func @_sfp_block_kernel(%arg0: i32, %arg1: memref<1x36x9x4xbf16, #tpu.memory_space<vmem>>, %arg2: memref<9x4x8xbf16, #tpu.memory_space<vmem>>, %arg3: memref<9x8x8xbf16, #tpu.memory_space<vmem>>, %arg4: memref<4x8xbf16, #tpu.memory_space<vmem>>, %arg5: memref<1x8xf32, #tpu.memory_space<vmem>>, %arg6: memref<1x8xf32, #tpu.memory_space<vmem>>, %arg7: memref<1x8xf32, #tpu.memory_space<vmem>>, %arg8: memref<1x8xf32, #tpu.memory_space<vmem>>, %arg9: memref<1x8x8x8xf32, #tpu.memory_space<vmem>>, %arg10: memref<10x10x8xbf16, #tpu.memory_space<vmem>>) attributes {dimension_semantics = [#tpu.dimension_semantics<parallel>], iteration_bounds = array<i64: 2>, scalar_prefetch = 0 : i64, scratch_operands = 1 : i64, tpu.core_type = #tpu.core_type<tc>, window_params = [{transform_indices = @transform_0, window_bounds = array<i64: 1, 36, 9, 4>}, {pipeline_mode = #tpu.pipeline_mode<synchronous>, transform_indices = @transform_1, window_bounds = array<i64: 9, 4, 8>}, {pipeline_mode = #tpu.pipeline_mode<synchronous>, transform_indices = @transform_2, window_bounds = array<i64: 9, 8, 8>}, {pipeline_mode = #tpu.pipeline_mode<synchronous>, transform_indices = @transform_3, window_bounds = array<i64: 4, 8>}, {pipeline_mode = #tpu.pipeline_mode<synchronous>, transform_indices = @transform_4, window_bounds = array<i64: 1, 8>}, {pipeline_mode = #tpu.pipeline_mode<synchronous>, transform_indices = @transform_5, window_bounds = array<i64: 1, 8>}, {pipeline_mode = #tpu.pipeline_mode<synchronous>, transform_indices = @transform_6, window_bounds = array<i64: 1, 8>}, {pipeline_mode = #tpu.pipeline_mode<synchronous>, transform_indices = @transform_7, window_bounds = array<i64: 1, 8>}, {transform_indices = @transform_8, window_bounds = array<i64: 1, 8, 8, 8>}]} {
    %cst = arith.constant 0.000000e+00 : f32
    %0 = vector.broadcast %cst : f32 to vector<64x8xf32>
    %c0 = arith.constant 0 : index
    %c0_0 = arith.constant 0 : index
    %c0_1 = arith.constant 0 : index
    %c0_2 = arith.constant 0 : index
    %1 = vector.load %arg1[%c0, %c0_0, %c0_1, %c0_2] : memref<1x36x9x4xbf16, #tpu.memory_space<vmem>>, vector<1x8x8x4xbf16>
    %2 = vector.shape_cast %1 : vector<1x8x8x4xbf16> to vector<8x8x4xbf16>
    %3 = vector.shape_cast %2 : vector<8x8x4xbf16> to vector<64x4xbf16>
    %c0_3 = arith.constant 0 : index
    %c0_4 = arith.constant 0 : index
    %c0_5 = arith.constant 0 : index
    %4 = vector.load %arg2[%c0_3, %c0_4, %c0_5] : memref<9x4x8xbf16, #tpu.memory_space<vmem>>, vector<1x4x8xbf16>
    %5 = vector.shape_cast %4 : vector<1x4x8xbf16> to vector<4x8xbf16>
    %cst_6 = arith.constant dense<0.000000e+00> : vector<64x8xf32>
    %6 = tpu.matmul %3, %5, %cst_6 {dimension_numbers = #tpu.dot_dimension_numbers<[1], [0], [0], [1], [0, 0, 1, 1], [], []>} : vector<64x4xbf16>, vector<4x8xbf16>, vector<64x8xf32> -> vector<64x8xf32>
    %7 = arith.addf %0, %6 : vector<64x8xf32>
    %c0_7 = arith.constant 0 : index
    %c9 = arith.constant 9 : index
    %c0_8 = arith.constant 0 : index
    %c0_9 = arith.constant 0 : index
    %8 = vector.load %arg1[%c0_7, %c9, %c0_8, %c0_9] : memref<1x36x9x4xbf16, #tpu.memory_space<vmem>>, vector<1x8x8x4xbf16>
    %9 = vector.shape_cast %8 : vector<1x8x8x4xbf16> to vector<8x8x4xbf16>
    %10 = vector.shape_cast %9 : vector<8x8x4xbf16> to vector<64x4xbf16>
    %c1 = arith.constant 1 : index
    %c0_10 = arith.constant 0 : index
    %c0_11 = arith.constant 0 : index
    %11 = vector.load %arg2[%c1, %c0_10, %c0_11] : memref<9x4x8xbf16, #tpu.memory_space<vmem>>, vector<1x4x8xbf16>
    %12 = vector.shape_cast %11 : vector<1x4x8xbf16> to vector<4x8xbf16>
    %cst_12 = arith.constant dense<0.000000e+00> : vector<64x8xf32>
    %13 = tpu.matmul %10, %12, %cst_12 {dimension_numbers = #tpu.dot_dimension_numbers<[1], [0], [0], [1], [0, 0, 1, 1], [], []>} : vector<64x4xbf16>, vector<4x8xbf16>, vector<64x8xf32> -> vector<64x8xf32>
    %14 = arith.addf %7, %13 : vector<64x8xf32>
    %c0_13 = arith.constant 0 : index
    %c0_14 = arith.constant 0 : index
    %c1_15 = arith.constant 1 : index
    %c0_16 = arith.constant 0 : index
    %15 = vector.load %arg1[%c0_13, %c0_14, %c1_15, %c0_16] : memref<1x36x9x4xbf16, #tpu.memory_space<vmem>>, vector<1x8x8x4xbf16>
    %16 = vector.shape_cast %15 : vector<1x8x8x4xbf16> to vector<8x8x4xbf16>
    %17 = vector.shape_cast %16 : vector<8x8x4xbf16> to vector<64x4xbf16>
    %c2 = arith.constant 2 : index
    %c0_17 = arith.constant 0 : index
    %c0_18 = arith.constant 0 : index
    %18 = vector.load %arg2[%c2, %c0_17, %c0_18] : memref<9x4x8xbf16, #tpu.memory_space<vmem>>, vector<1x4x8xbf16>
    %19 = vector.shape_cast %18 : vector<1x4x8xbf16> to vector<4x8xbf16>
    %cst_19 = arith.constant dense<0.000000e+00> : vector<64x8xf32>
    %20 = tpu.matmul %17, %19, %cst_19 {dimension_numbers = #tpu.dot_dimension_numbers<[1], [0], [0], [1], [0, 0, 1, 1], [], []>} : vector<64x4xbf16>, vector<4x8xbf16>, vector<64x8xf32> -> vector<64x8xf32>
    %21 = arith.addf %14, %20 : vector<64x8xf32>
    %c0_20 = arith.constant 0 : index
    %c18 = arith.constant 18 : index
    %c0_21 = arith.constant 0 : index
    %c0_22 = arith.constant 0 : index
    %22 = vector.load %arg1[%c0_20, %c18, %c0_21, %c0_22] : memref<1x36x9x4xbf16, #tpu.memory_space<vmem>>, vector<1x8x8x4xbf16>
    %23 = vector.shape_cast %22 : vector<1x8x8x4xbf16> to vector<8x8x4xbf16>
    %24 = vector.shape_cast %23 : vector<8x8x4xbf16> to vector<64x4xbf16>
    %c3 = arith.constant 3 : index
    %c0_23 = arith.constant 0 : index
    %c0_24 = arith.constant 0 : index
    %25 = vector.load %arg2[%c3, %c0_23, %c0_24] : memref<9x4x8xbf16, #tpu.memory_space<vmem>>, vector<1x4x8xbf16>
    %26 = vector.shape_cast %25 : vector<1x4x8xbf16> to vector<4x8xbf16>
    %cst_25 = arith.constant dense<0.000000e+00> : vector<64x8xf32>
    %27 = tpu.matmul %24, %26, %cst_25 {dimension_numbers = #tpu.dot_dimension_numbers<[1], [0], [0], [1], [0, 0, 1, 1], [], []>} : vector<64x4xbf16>, vector<4x8xbf16>, vector<64x8xf32> -> vector<64x8xf32>
    %28 = arith.addf %21, %27 : vector<64x8xf32>
    %c0_26 = arith.constant 0 : index
    %c27 = arith.constant 27 : index
    %c0_27 = arith.constant 0 : index
    %c0_28 = arith.constant 0 : index
    %29 = vector.load %arg1[%c0_26, %c27, %c0_27, %c0_28] : memref<1x36x9x4xbf16, #tpu.memory_space<vmem>>, vector<1x8x8x4xbf16>
    %30 = vector.shape_cast %29 : vector<1x8x8x4xbf16> to vector<8x8x4xbf16>
    %31 = vector.shape_cast %30 : vector<8x8x4xbf16> to vector<64x4xbf16>
    %c4 = arith.constant 4 : index
    %c0_29 = arith.constant 0 : index
    %c0_30 = arith.constant 0 : index
    %32 = vector.load %arg2[%c4, %c0_29, %c0_30] : memref<9x4x8xbf16, #tpu.memory_space<vmem>>, vector<1x4x8xbf16>
    %33 = vector.shape_cast %32 : vector<1x4x8xbf16> to vector<4x8xbf16>
    %cst_31 = arith.constant dense<0.000000e+00> : vector<64x8xf32>
    %34 = tpu.matmul %31, %33, %cst_31 {dimension_numbers = #tpu.dot_dimension_numbers<[1], [0], [0], [1], [0, 0, 1, 1], [], []>} : vector<64x4xbf16>, vector<4x8xbf16>, vector<64x8xf32> -> vector<64x8xf32>
    %35 = arith.addf %28, %34 : vector<64x8xf32>
    %c0_32 = arith.constant 0 : index
    %c18_33 = arith.constant 18 : index
    %c1_34 = arith.constant 1 : index
    %c0_35 = arith.constant 0 : index
    %36 = vector.load %arg1[%c0_32, %c18_33, %c1_34, %c0_35] : memref<1x36x9x4xbf16, #tpu.memory_space<vmem>>, vector<1x8x8x4xbf16>
    %37 = vector.shape_cast %36 : vector<1x8x8x4xbf16> to vector<8x8x4xbf16>
    %38 = vector.shape_cast %37 : vector<8x8x4xbf16> to vector<64x4xbf16>
    %c5 = arith.constant 5 : index
    %c0_36 = arith.constant 0 : index
    %c0_37 = arith.constant 0 : index
    %39 = vector.load %arg2[%c5, %c0_36, %c0_37] : memref<9x4x8xbf16, #tpu.memory_space<vmem>>, vector<1x4x8xbf16>
    %40 = vector.shape_cast %39 : vector<1x4x8xbf16> to vector<4x8xbf16>
    %cst_38 = arith.constant dense<0.000000e+00> : vector<64x8xf32>
    %41 = tpu.matmul %38, %40, %cst_38 {dimension_numbers = #tpu.dot_dimension_numbers<[1], [0], [0], [1], [0, 0, 1, 1], [], []>} : vector<64x4xbf16>, vector<4x8xbf16>, vector<64x8xf32> -> vector<64x8xf32>
    %42 = arith.addf %35, %41 : vector<64x8xf32>
    %c0_39 = arith.constant 0 : index
    %c1_40 = arith.constant 1 : index
    %c0_41 = arith.constant 0 : index
    %c0_42 = arith.constant 0 : index
    %43 = vector.load %arg1[%c0_39, %c1_40, %c0_41, %c0_42] : memref<1x36x9x4xbf16, #tpu.memory_space<vmem>>, vector<1x8x8x4xbf16>
    %44 = vector.shape_cast %43 : vector<1x8x8x4xbf16> to vector<8x8x4xbf16>
    %45 = vector.shape_cast %44 : vector<8x8x4xbf16> to vector<64x4xbf16>
    %c6 = arith.constant 6 : index
    %c0_43 = arith.constant 0 : index
    %c0_44 = arith.constant 0 : index
    %46 = vector.load %arg2[%c6, %c0_43, %c0_44] : memref<9x4x8xbf16, #tpu.memory_space<vmem>>, vector<1x4x8xbf16>
    %47 = vector.shape_cast %46 : vector<1x4x8xbf16> to vector<4x8xbf16>
    %cst_45 = arith.constant dense<0.000000e+00> : vector<64x8xf32>
    %48 = tpu.matmul %45, %47, %cst_45 {dimension_numbers = #tpu.dot_dimension_numbers<[1], [0], [0], [1], [0, 0, 1, 1], [], []>} : vector<64x4xbf16>, vector<4x8xbf16>, vector<64x8xf32> -> vector<64x8xf32>
    %49 = arith.addf %42, %48 : vector<64x8xf32>
    %c0_46 = arith.constant 0 : index
    %c10 = arith.constant 10 : index
    %c0_47 = arith.constant 0 : index
    %c0_48 = arith.constant 0 : index
    %50 = vector.load %arg1[%c0_46, %c10, %c0_47, %c0_48] : memref<1x36x9x4xbf16, #tpu.memory_space<vmem>>, vector<1x8x8x4xbf16>
    %51 = vector.shape_cast %50 : vector<1x8x8x4xbf16> to vector<8x8x4xbf16>
    %52 = vector.shape_cast %51 : vector<8x8x4xbf16> to vector<64x4xbf16>
    %c7 = arith.constant 7 : index
    %c0_49 = arith.constant 0 : index
    %c0_50 = arith.constant 0 : index
    %53 = vector.load %arg2[%c7, %c0_49, %c0_50] : memref<9x4x8xbf16, #tpu.memory_space<vmem>>, vector<1x4x8xbf16>
    %54 = vector.shape_cast %53 : vector<1x4x8xbf16> to vector<4x8xbf16>
    %cst_51 = arith.constant dense<0.000000e+00> : vector<64x8xf32>
    %55 = tpu.matmul %52, %54, %cst_51 {dimension_numbers = #tpu.dot_dimension_numbers<[1], [0], [0], [1], [0, 0, 1, 1], [], []>} : vector<64x4xbf16>, vector<4x8xbf16>, vector<64x8xf32> -> vector<64x8xf32>
    %56 = arith.addf %49, %55 : vector<64x8xf32>
    %c0_52 = arith.constant 0 : index
    %c1_53 = arith.constant 1 : index
    %c1_54 = arith.constant 1 : index
    %c0_55 = arith.constant 0 : index
    %57 = vector.load %arg1[%c0_52, %c1_53, %c1_54, %c0_55] : memref<1x36x9x4xbf16, #tpu.memory_space<vmem>>, vector<1x8x8x4xbf16>
    %58 = vector.shape_cast %57 : vector<1x8x8x4xbf16> to vector<8x8x4xbf16>
    %59 = vector.shape_cast %58 : vector<8x8x4xbf16> to vector<64x4xbf16>
    %c8 = arith.constant 8 : index
    %c0_56 = arith.constant 0 : index
    %c0_57 = arith.constant 0 : index
    %60 = vector.load %arg2[%c8, %c0_56, %c0_57] : memref<9x4x8xbf16, #tpu.memory_space<vmem>>, vector<1x4x8xbf16>
    %61 = vector.shape_cast %60 : vector<1x4x8xbf16> to vector<4x8xbf16>
    %cst_58 = arith.constant dense<0.000000e+00> : vector<64x8xf32>
    %62 = tpu.matmul %59, %61, %cst_58 {dimension_numbers = #tpu.dot_dimension_numbers<[1], [0], [0], [1], [0, 0, 1, 1], [], []>} : vector<64x4xbf16>, vector<4x8xbf16>, vector<64x8xf32> -> vector<64x8xf32>
    %63 = arith.addf %56, %62 : vector<64x8xf32>
    %c0_59 = arith.constant 0 : index
    %c27_60 = arith.constant 27 : index
    %c0_61 = arith.constant 0 : index
    %c0_62 = arith.constant 0 : index
    %64 = vector.load %arg1[%c0_59, %c27_60, %c0_61, %c0_62] : memref<1x36x9x4xbf16, #tpu.memory_space<vmem>>, vector<1x8x8x4xbf16>
    %65 = vector.shape_cast %64 : vector<1x8x8x4xbf16> to vector<8x8x4xbf16>
    %66 = vector.shape_cast %65 : vector<8x8x4xbf16> to vector<64x4xbf16>
    %c0_63 = arith.constant 0 : index
    %c0_64 = arith.constant 0 : index
    %67 = vector.load %arg4[%c0_63, %c0_64] : memref<4x8xbf16, #tpu.memory_space<vmem>>, vector<4x8xbf16>
    %cst_65 = arith.constant dense<0.000000e+00> : vector<64x8xf32>
    %68 = tpu.matmul %66, %67, %cst_65 {dimension_numbers = #tpu.dot_dimension_numbers<[1], [0], [0], [1], [0, 0, 1, 1], [], []>} : vector<64x4xbf16>, vector<4x8xbf16>, vector<64x8xf32> -> vector<64x8xf32>
    %c0_66 = arith.constant 0 : index
    %c0_67 = arith.constant 0 : index
    %69 = vector.load %arg5[%c0_66, %c0_67] : memref<1x8xf32, #tpu.memory_space<vmem>>, vector<1x8xf32>
    %70 = vector.broadcast %69 : vector<1x8xf32> to vector<64x8xf32>
    %71 = arith.mulf %63, %70 : vector<64x8xf32>
    %c0_68 = arith.constant 0 : index
    %c0_69 = arith.constant 0 : index
    %72 = vector.load %arg6[%c0_68, %c0_69] : memref<1x8xf32, #tpu.memory_space<vmem>>, vector<1x8xf32>
    %73 = vector.broadcast %72 : vector<1x8xf32> to vector<64x8xf32>
    %74 = arith.addf %71, %73 : vector<64x8xf32>
    %cst_70 = arith.constant 0.000000e+00 : f32
    %75 = vector.broadcast %cst_70 : f32 to vector<64x8xf32>
    %76 = arith.maximumf %74, %75 : vector<64x8xf32>
    %cst_71 = arith.constant 0.000000e+00 : bf16
    %77 = vector.broadcast %cst_71 : bf16 to vector<10x10x8xbf16>
    %c0_72 = arith.constant 0 : index
    %c0_73 = arith.constant 0 : index
    %c0_74 = arith.constant 0 : index
    %78 = vector.load %arg10[%c0_72, %c0_73, %c0_74] : memref<10x10x8xbf16, #tpu.memory_space<vmem>>, vector<10x10x8xbf16>
    tpu.vector_store %arg10[%c0_72, %c0_73, %c0_74], %77 {strides = array<i32>} : memref<10x10x8xbf16, #tpu.memory_space<vmem>>, vector<10x10x8xbf16>,
    %79 = vector.shape_cast %76 : vector<64x8xf32> to vector<8x8x8xf32>
    %80 = arith.truncf %79 : vector<8x8x8xf32> to vector<8x8x8xbf16>
    %c1_75 = arith.constant 1 : index
    %c1_76 = arith.constant 1 : index
    %c0_77 = arith.constant 0 : index
    %81 = vector.load %arg10[%c1_75, %c1_76, %c0_77] : memref<10x10x8xbf16, #tpu.memory_space<vmem>>, vector<8x8x8xbf16>
    tpu.vector_store %arg10[%c1_75, %c1_76, %c0_77], %80 {strides = array<i32>} : memref<10x10x8xbf16, #tpu.memory_space<vmem>>, vector<8x8x8xbf16>,
    %cst_78 = arith.constant 0.000000e+00 : f32
    %82 = vector.broadcast %cst_78 : f32 to vector<64x8xf32>
    %c0_79 = arith.constant 0 : index
    %c0_80 = arith.constant 0 : index
    %c0_81 = arith.constant 0 : index
    %83 = vector.load %arg10[%c0_79, %c0_80, %c0_81] : memref<10x10x8xbf16, #tpu.memory_space<vmem>>, vector<8x8x8xbf16>
    %84 = vector.shape_cast %83 : vector<8x8x8xbf16> to vector<64x8xbf16>
    %c0_82 = arith.constant 0 : index
    %c0_83 = arith.constant 0 : index
    %c0_84 = arith.constant 0 : index
    %85 = vector.load %arg3[%c0_82, %c0_83, %c0_84] : memref<9x8x8xbf16, #tpu.memory_space<vmem>>, vector<1x8x8xbf16>
    %86 = vector.shape_cast %85 : vector<1x8x8xbf16> to vector<8x8xbf16>
    %cst_85 = arith.constant dense<0.000000e+00> : vector<64x8xf32>
    %87 = tpu.matmul %84, %86, %cst_85 {dimension_numbers = #tpu.dot_dimension_numbers<[1], [0], [0], [1], [0, 0, 1, 1], [], []>} : vector<64x8xbf16>, vector<8x8xbf16>, vector<64x8xf32> -> vector<64x8xf32>
    %88 = arith.addf %82, %87 : vector<64x8xf32>
    %c0_86 = arith.constant 0 : index
    %c1_87 = arith.constant 1 : index
    %c0_88 = arith.constant 0 : index
    %89 = vector.load %arg10[%c0_86, %c1_87, %c0_88] : memref<10x10x8xbf16, #tpu.memory_space<vmem>>, vector<8x8x8xbf16>
    %90 = vector.shape_cast %89 : vector<8x8x8xbf16> to vector<64x8xbf16>
    %c1_89 = arith.constant 1 : index
    %c0_90 = arith.constant 0 : index
    %c0_91 = arith.constant 0 : index
    %91 = vector.load %arg3[%c1_89, %c0_90, %c0_91] : memref<9x8x8xbf16, #tpu.memory_space<vmem>>, vector<1x8x8xbf16>
    %92 = vector.shape_cast %91 : vector<1x8x8xbf16> to vector<8x8xbf16>
    %cst_92 = arith.constant dense<0.000000e+00> : vector<64x8xf32>
    %93 = tpu.matmul %90, %92, %cst_92 {dimension_numbers = #tpu.dot_dimension_numbers<[1], [0], [0], [1], [0, 0, 1, 1], [], []>} : vector<64x8xbf16>, vector<8x8xbf16>, vector<64x8xf32> -> vector<64x8xf32>
    %94 = arith.addf %88, %93 : vector<64x8xf32>
    %c0_93 = arith.constant 0 : index
    %c2_94 = arith.constant 2 : index
    %c0_95 = arith.constant 0 : index
    %95 = vector.load %arg10[%c0_93, %c2_94, %c0_95] : memref<10x10x8xbf16, #tpu.memory_space<vmem>>, vector<8x8x8xbf16>
    %96 = vector.shape_cast %95 : vector<8x8x8xbf16> to vector<64x8xbf16>
    %c2_96 = arith.constant 2 : index
    %c0_97 = arith.constant 0 : index
    %c0_98 = arith.constant 0 : index
    %97 = vector.load %arg3[%c2_96, %c0_97, %c0_98] : memref<9x8x8xbf16, #tpu.memory_space<vmem>>, vector<1x8x8xbf16>
    %98 = vector.shape_cast %97 : vector<1x8x8xbf16> to vector<8x8xbf16>
    %cst_99 = arith.constant dense<0.000000e+00> : vector<64x8xf32>
    %99 = tpu.matmul %96, %98, %cst_99 {dimension_numbers = #tpu.dot_dimension_numbers<[1], [0], [0], [1], [0, 0, 1, 1], [], []>} : vector<64x8xbf16>, vector<8x8xbf16>, vector<64x8xf32> -> vector<64x8xf32>
    %100 = arith.addf %94, %99 : vector<64x8xf32>
    %c1_100 = arith.constant 1 : index
    %c0_101 = arith.constant 0 : index
    %c0_102 = arith.constant 0 : index
    %101 = vector.load %arg10[%c1_100, %c0_101, %c0_102] : memref<10x10x8xbf16, #tpu.memory_space<vmem>>, vector<8x8x8xbf16>
    %102 = vector.shape_cast %101 : vector<8x8x8xbf16> to vector<64x8xbf16>
    %c3_103 = arith.constant 3 : index
    %c0_104 = arith.constant 0 : index
    %c0_105 = arith.constant 0 : index
    %103 = vector.load %arg3[%c3_103, %c0_104, %c0_105] : memref<9x8x8xbf16, #tpu.memory_space<vmem>>, vector<1x8x8xbf16>
    %104 = vector.shape_cast %103 : vector<1x8x8xbf16> to vector<8x8xbf16>
    %cst_106 = arith.constant dense<0.000000e+00> : vector<64x8xf32>
    %105 = tpu.matmul %102, %104, %cst_106 {dimension_numbers = #tpu.dot_dimension_numbers<[1], [0], [0], [1], [0, 0, 1, 1], [], []>} : vector<64x8xbf16>, vector<8x8xbf16>, vector<64x8xf32> -> vector<64x8xf32>
    %106 = arith.addf %100, %105 : vector<64x8xf32>
    %c1_107 = arith.constant 1 : index
    %c1_108 = arith.constant 1 : index
    %c0_109 = arith.constant 0 : index
    %107 = vector.load %arg10[%c1_107, %c1_108, %c0_109] : memref<10x10x8xbf16, #tpu.memory_space<vmem>>, vector<8x8x8xbf16>
    %108 = vector.shape_cast %107 : vector<8x8x8xbf16> to vector<64x8xbf16>
    %c4_110 = arith.constant 4 : index
    %c0_111 = arith.constant 0 : index
    %c0_112 = arith.constant 0 : index
    %109 = vector.load %arg3[%c4_110, %c0_111, %c0_112] : memref<9x8x8xbf16, #tpu.memory_space<vmem>>, vector<1x8x8xbf16>
    %110 = vector.shape_cast %109 : vector<1x8x8xbf16> to vector<8x8xbf16>
    %cst_113 = arith.constant dense<0.000000e+00> : vector<64x8xf32>
    %111 = tpu.matmul %108, %110, %cst_113 {dimension_numbers = #tpu.dot_dimension_numbers<[1], [0], [0], [1], [0, 0, 1, 1], [], []>} : vector<64x8xbf16>, vector<8x8xbf16>, vector<64x8xf32> -> vector<64x8xf32>
    %112 = arith.addf %106, %111 : vector<64x8xf32>
    %c1_114 = arith.constant 1 : index
    %c2_115 = arith.constant 2 : index
    %c0_116 = arith.constant 0 : index
    %113 = vector.load %arg10[%c1_114, %c2_115, %c0_116] : memref<10x10x8xbf16, #tpu.memory_space<vmem>>, vector<8x8x8xbf16>
    %114 = vector.shape_cast %113 : vector<8x8x8xbf16> to vector<64x8xbf16>
    %c5_117 = arith.constant 5 : index
    %c0_118 = arith.constant 0 : index
    %c0_119 = arith.constant 0 : index
    %115 = vector.load %arg3[%c5_117, %c0_118, %c0_119] : memref<9x8x8xbf16, #tpu.memory_space<vmem>>, vector<1x8x8xbf16>
    %116 = vector.shape_cast %115 : vector<1x8x8xbf16> to vector<8x8xbf16>
    %cst_120 = arith.constant dense<0.000000e+00> : vector<64x8xf32>
    %117 = tpu.matmul %114, %116, %cst_120 {dimension_numbers = #tpu.dot_dimension_numbers<[1], [0], [0], [1], [0, 0, 1, 1], [], []>} : vector<64x8xbf16>, vector<8x8xbf16>, vector<64x8xf32> -> vector<64x8xf32>
    %118 = arith.addf %112, %117 : vector<64x8xf32>
    %c2_121 = arith.constant 2 : index
    %c0_122 = arith.constant 0 : index
    %c0_123 = arith.constant 0 : index
    %119 = vector.load %arg10[%c2_121, %c0_122, %c0_123] : memref<10x10x8xbf16, #tpu.memory_space<vmem>>, vector<8x8x8xbf16>
    %120 = vector.shape_cast %119 : vector<8x8x8xbf16> to vector<64x8xbf16>
    %c6_124 = arith.constant 6 : index
    %c0_125 = arith.constant 0 : index
    %c0_126 = arith.constant 0 : index
    %121 = vector.load %arg3[%c6_124, %c0_125, %c0_126] : memref<9x8x8xbf16, #tpu.memory_space<vmem>>, vector<1x8x8xbf16>
    %122 = vector.shape_cast %121 : vector<1x8x8xbf16> to vector<8x8xbf16>
    %cst_127 = arith.constant dense<0.000000e+00> : vector<64x8xf32>
    %123 = tpu.matmul %120, %122, %cst_127 {dimension_numbers = #tpu.dot_dimension_numbers<[1], [0], [0], [1], [0, 0, 1, 1], [], []>} : vector<64x8xbf16>, vector<8x8xbf16>, vector<64x8xf32> -> vector<64x8xf32>
    %124 = arith.addf %118, %123 : vector<64x8xf32>
    %c2_128 = arith.constant 2 : index
    %c1_129 = arith.constant 1 : index
    %c0_130 = arith.constant 0 : index
    %125 = vector.load %arg10[%c2_128, %c1_129, %c0_130] : memref<10x10x8xbf16, #tpu.memory_space<vmem>>, vector<8x8x8xbf16>
    %126 = vector.shape_cast %125 : vector<8x8x8xbf16> to vector<64x8xbf16>
    %c7_131 = arith.constant 7 : index
    %c0_132 = arith.constant 0 : index
    %c0_133 = arith.constant 0 : index
    %127 = vector.load %arg3[%c7_131, %c0_132, %c0_133] : memref<9x8x8xbf16, #tpu.memory_space<vmem>>, vector<1x8x8xbf16>
    %128 = vector.shape_cast %127 : vector<1x8x8xbf16> to vector<8x8xbf16>
    %cst_134 = arith.constant dense<0.000000e+00> : vector<64x8xf32>
    %129 = tpu.matmul %126, %128, %cst_134 {dimension_numbers = #tpu.dot_dimension_numbers<[1], [0], [0], [1], [0, 0, 1, 1], [], []>} : vector<64x8xbf16>, vector<8x8xbf16>, vector<64x8xf32> -> vector<64x8xf32>
    %130 = arith.addf %124, %129 : vector<64x8xf32>
    %c2_135 = arith.constant 2 : index
    %c2_136 = arith.constant 2 : index
    %c0_137 = arith.constant 0 : index
    %131 = vector.load %arg10[%c2_135, %c2_136, %c0_137] : memref<10x10x8xbf16, #tpu.memory_space<vmem>>, vector<8x8x8xbf16>
    %132 = vector.shape_cast %131 : vector<8x8x8xbf16> to vector<64x8xbf16>
    %c8_138 = arith.constant 8 : index
    %c0_139 = arith.constant 0 : index
    %c0_140 = arith.constant 0 : index
    %133 = vector.load %arg3[%c8_138, %c0_139, %c0_140] : memref<9x8x8xbf16, #tpu.memory_space<vmem>>, vector<1x8x8xbf16>
    %134 = vector.shape_cast %133 : vector<1x8x8xbf16> to vector<8x8xbf16>
    %cst_141 = arith.constant dense<0.000000e+00> : vector<64x8xf32>
    %135 = tpu.matmul %132, %134, %cst_141 {dimension_numbers = #tpu.dot_dimension_numbers<[1], [0], [0], [1], [0, 0, 1, 1], [], []>} : vector<64x8xbf16>, vector<8x8xbf16>, vector<64x8xf32> -> vector<64x8xf32>
    %136 = arith.addf %130, %135 : vector<64x8xf32>
    %c0_142 = arith.constant 0 : index
    %c0_143 = arith.constant 0 : index
    %137 = vector.load %arg7[%c0_142, %c0_143] : memref<1x8xf32, #tpu.memory_space<vmem>>, vector<1x8xf32>
    %138 = vector.broadcast %137 : vector<1x8xf32> to vector<64x8xf32>
    %139 = arith.mulf %136, %138 : vector<64x8xf32>
    %c0_144 = arith.constant 0 : index
    %c0_145 = arith.constant 0 : index
    %140 = vector.load %arg8[%c0_144, %c0_145] : memref<1x8xf32, #tpu.memory_space<vmem>>, vector<1x8xf32>
    %141 = vector.broadcast %140 : vector<1x8xf32> to vector<64x8xf32>
    %142 = arith.addf %139, %141 : vector<64x8xf32>
    %143 = arith.addf %142, %68 : vector<64x8xf32>
    %cst_146 = arith.constant 0.000000e+00 : f32
    %144 = vector.broadcast %cst_146 : f32 to vector<64x8xf32>
    %145 = arith.maximumf %143, %144 : vector<64x8xf32>
    %146 = vector.shape_cast %145 : vector<64x8xf32> to vector<8x8x8xf32>
    %c0_147 = arith.constant 0 : index
    %c0_148 = arith.constant 0 : index
    %c0_149 = arith.constant 0 : index
    %c0_150 = arith.constant 0 : index
    %147 = vector.load %arg9[%c0_147, %c0_148, %c0_149, %c0_150] : memref<1x8x8x8xf32, #tpu.memory_space<vmem>>, vector<1x8x8x8xf32>
    %148 = vector.shape_cast %147 : vector<1x8x8x8xf32> to vector<8x8x8xf32>
    %149 = vector.shape_cast %146 : vector<8x8x8xf32> to vector<1x8x8x8xf32>
    tpu.vector_store %arg9[%c0_147, %c0_148, %c0_149, %c0_150], %149 {strides = array<i32>} : memref<1x8x8x8xf32, #tpu.memory_space<vmem>>, vector<1x8x8x8xf32>,
    return
  }
  func.func @transform_0(%arg0: i32) -> (i32, i32, i32, i32) {
    %c0_i32 = arith.constant 0 : i32
    %c0_i32_0 = arith.constant 0 : i32
    %c0_i32_1 = arith.constant 0 : i32
    %c0_i32_2 = arith.constant 0 : i32
    return %arg0, %c0_i32, %c0_i32_0, %c0_i32_1 : i32, i32, i32, i32
  }
  func.func @transform_1(%arg0: i32) -> (i32, i32, i32) {
    %c0_i32 = arith.constant 0 : i32
    %c0_i32_0 = arith.constant 0 : i32
    %c0_i32_1 = arith.constant 0 : i32
    %c0_i32_2 = arith.constant 0 : i32
    return %c0_i32, %c0_i32_0, %c0_i32_1 : i32, i32, i32
  }
  func.func @transform_2(%arg0: i32) -> (i32, i32, i32) {
    %c0_i32 = arith.constant 0 : i32
    %c0_i32_0 = arith.constant 0 : i32
    %c0_i32_1 = arith.constant 0 : i32
    %c0_i32_2 = arith.constant 0 : i32
    return %c0_i32, %c0_i32_0, %c0_i32_1 : i32, i32, i32
  }
  func.func @transform_3(%arg0: i32) -> (i32, i32) {
    %c0_i32 = arith.constant 0 : i32
    %c0_i32_0 = arith.constant 0 : i32
    %c0_i32_1 = arith.constant 0 : i32
    return %c0_i32, %c0_i32_0 : i32, i32
  }
  func.func @transform_4(%arg0: i32) -> (i32, i32) {
    %c0_i32 = arith.constant 0 : i32
    %c0_i32_0 = arith.constant 0 : i32
    %c0_i32_1 = arith.constant 0 : i32
    return %c0_i32, %c0_i32_0 : i32, i32
  }
  func.func @transform_5(%arg0: i32) -> (i32, i32) {
    %c0_i32 = arith.constant 0 : i32
    %c0_i32_0 = arith.constant 0 : i32
    %c0_i32_1 = arith.constant 0 : i32
    return %c0_i32, %c0_i32_0 : i32, i32
  }
  func.func @transform_6(%arg0: i32) -> (i32, i32) {
    %c0_i32 = arith.constant 0 : i32
    %c0_i32_0 = arith.constant 0 : i32
    %c0_i32_1 = arith.constant 0 : i32
    return %c0_i32, %c0_i32_0 : i32, i32
  }
  func.func @transform_7(%arg0: i32) -> (i32, i32) {
    %c0_i32 = arith.constant 0 : i32
    %c0_i32_0 = arith.constant 0 : i32
    %c0_i32_1 = arith.constant 0 : i32
    return %c0_i32, %c0_i32_0 : i32, i32
  }
  func.func @transform_8(%arg0: i32) -> (i32, i32, i32, i32) {
    %c0_i32 = arith.constant 0 : i32
    %c0_i32_0 = arith.constant 0 : i32
    %c0_i32_1 = arith.constant 0 : i32
    %c0_i32_2 = arith.constant 0 : i32
    return %arg0, %c0_i32, %c0_i32_0, %c0_i32_1 : i32, i32, i32, i32
  }
}

</mosaic_0001>

<llo_original>
// kernel: sfp_encoder_block.1
$region0: #{sfp_encoder_block.1}
  #allocation0 [shape = 'u32[]', space=smem, size = 0x4, offset = 0x4, fixed_abs, tag = 'smem constant byte address 0x4 - core index']
  #allocation1 [shape = 'u32[144,128]{1,0:T(1,128)}', space=vmem, size = 0x12000, scoped, tag = 'internal scratch']
  #allocation2 [shape = 'bf16[10,10,8]{2,1,0:T(8,128)(2,1)}', space=vmem, size = 0xa000, scoped, tag = 'scratch operand']
  %s0 = inlined_call_operand.vmem [shape: bf16[2,36,9,4], index: 0, kind: input, shape index: {}]
  %s1 = inlined_call_operand.vmem [shape: bf16[9,4,8], index: 1, kind: input, shape index: {}]
  %s2 = inlined_call_operand.vmem [shape: bf16[9,8,8], index: 2, kind: input, shape index: {}]
  %s3 = inlined_call_operand.vmem [shape: bf16[4,8], index: 3, kind: input, shape index: {}]
  %s4 = inlined_call_operand.vmem [shape: f32[1,8], index: 4, kind: input, shape index: {}]
  %s5 = inlined_call_operand.vmem [shape: f32[1,8], index: 5, kind: input, shape index: {}]
  %s6 = inlined_call_operand.vmem [shape: f32[1,8], index: 6, kind: input, shape index: {}]
  %s7 = inlined_call_operand.vmem [shape: f32[1,8], index: 7, kind: input, shape index: {}]
  %s8 = inlined_call_operand.vmem [shape: f32[2,8,8,8], index: 8, kind: output, shape index: {}]
  %s9 = sld [smem:[#allocation0]]
  $region65: #{sfp_encoder_block.1} parent=0
    _
  %s11 = ssub.s32 1, %s9
  %s12 = scalar_select 0, %s11, %s9
  loop: start=0, step=1, limit=4
  $region2: #{sfp_encoder_block.1} parent=0 // loop_pre_header
    _
  $region3: #{sfp_encoder_block.1} parent=0 // loop_header
    %s14 = sphi 0, %s18
    %p15 = scmp.ge.s32.totalorder %s14, 4
    %s24 = sphi 0, %s26
    %s27 = sphi 0, %s24
    %s28 = sphi 0, %s27
    %s44 = sphi 0, %s28
    %s48 = sphi 0, %s48
    %s50 = sphi 0, %s48
    %s51 = sphi 0, %s50
    %s65 = sphi 0, %s51
    %s69 = sphi 0, %s69
    %s71 = sphi 0, %s69
    %s72 = sphi 0, %s71
    %s86 = sphi 0, %s72
    %s90 = sphi 0, %s90
    %s92 = sphi 0, %s90
    %s93 = sphi 0, %s92
    %s107 = sphi 0, %s93
    %s111 = sphi 0, %s111
    %s113 = sphi 0, %s111
    %s114 = sphi 0, %s113
    %s128 = sphi 0, %s114
    %s132 = sphi 0, %s132
    %s134 = sphi 0, %s132
    %s135 = sphi 0, %s134
    %s149 = sphi 0, %s135
    %s153 = sphi 0, %s153
    %s155 = sphi 0, %s153
    %s156 = sphi 0, %s155
    %s170 = sphi 0, %s156
    %s174 = sphi 0, %s174
    %s176 = sphi 0, %s174
    %s177 = sphi 0, %s176
    %s191 = sphi 0, %s177
    %s197 = sphi 0, %s199
    %s200 = sphi 0, %s197
    %s201 = sphi 0, %s200
    %s217 = sphi 0, %s201
  $region4: #{sfp_encoder_block.1} parent=0 // loop_header_branch
    %17 = sbr.rel (%p15) target = $region8
  $region5: #{sfp_encoder_block.1} parent=0 // loop_body
    %s19 = ssub.s32 %s14, 1
    %s20 = ssub.s32 %s14, 2
    %s21 = sadd.s32 %s14, 1
    %s22 = ssub.s32 %s14, %s21
    %p23 = scmp.eq.s32.totalorder %s22, 0
    %s25 = sadd.s32 %s24, 1
    %s26 = scalar_select %p23, %s24, %s25
    %p29 = pneg %p23
    %p30 = scmp.eq.s32.totalorder %s14, 1
    %p31 = por %p29, %p30
    %p32 = scmp.ne.s32.totalorder %s24, %s27
    %p33 = scmp.eq.s32.totalorder %s14, 0
    %p34 = por %p32, %p33
    %p35 = scmp.ne.s32.totalorder %s24, %s27
    %p36 = scmp.eq.s32.totalorder %s19, 1
    %p37 = por %p35, %p36
    %p38 = scmp.ne.s32.totalorder %s27, %s28
    %p39 = scmp.eq.s32.totalorder %s19, 0
    %p40 = por %p38, %p39
    %p41 = scmp.ne.s32.totalorder %s27, %s28
    %p42 = scmp.eq.s32.totalorder %s20, 1
    %p43 = por %p41, %p42
    %p45 = scmp.ne.s32.totalorder %s28, %s44
    %p46 = scmp.eq.s32.totalorder %s20, 0
    %p47 = por %p45, %p46
    %s49 = sadd.s32 %s48, 1
    %p52 = scmp.eq.s32.totalorder %s14, 1
    %p53 = scmp.ne.s32.totalorder %s48, %s50
    %p54 = scmp.eq.s32.totalorder %s14, 0
    %p55 = por %p53, %p54
    %p56 = scmp.ne.s32.totalorder %s48, %s50
    %p57 = scmp.eq.s32.totalorder %s19, 1
    %p58 = por %p56, %p57
    %p59 = scmp.ne.s32.totalorder %s50, %s51
    %p60 = scmp.eq.s32.totalorder %s19, 0
    %p61 = por %p59, %p60
    %p62 = scmp.ne.s32.totalorder %s50, %s51
    %p63 = scmp.eq.s32.totalorder %s20, 1
    %p64 = por %p62, %p63
    %p66 = scmp.ne.s32.totalorder %s51, %s65
    %p67 = scmp.eq.s32.totalorder %s20, 0
    %p68 = por %p66, %p67
    %s70 = sadd.s32 %s69, 1
    %p73 = scmp.eq.s32.totalorder %s14, 1
    %p74 = scmp.ne.s32.totalorder %s69, %s71
    %p75 = scmp.eq.s32.totalorder %s14, 0
    %p76 = por %p74, %p75
    %p77 = scmp.ne.s32.totalorder %s69, %s71
    %p78 = scmp.eq.s32.totalorder %s19, 1
    %p79 = por %p77, %p78
    %p80 = scmp.ne.s32.totalorder %s71, %s72
    %p81 = scmp.eq.s32.totalorder %s19, 0
    %p82 = por %p80, %p81
    %p83 = scmp.ne.s32.totalorder %s71, %s72
    %p84 = scmp.eq.s32.totalorder %s20, 1
    %p85 = por %p83, %p84
    %p87 = scmp.ne.s32.totalorder %s72, %s86
    %p88 = scmp.eq.s32.totalorder %s20, 0
    %p89 = por %p87, %p88
    %s91 = sadd.s32 %s90, 1
    %p94 = scmp.eq.s32.totalorder %s14, 1
    %p95 = scmp.ne.s32.totalorder %s90, %s92
    %p96 = scmp.eq.s32.totalorder %s14, 0
    %p97 = por %p95, %p96
    %p98 = scmp.ne.s32.totalorder %s90, %s92
    %p99 = scmp.eq.s32.totalorder %s19, 1
    %p100 = por %p98, %p99
    %p101 = scmp.ne.s32.totalorder %s92, %s93
    %p102 = scmp.eq.s32.totalorder %s19, 0
    %p103 = por %p101, %p102
    %p104 = scmp.ne.s32.totalorder %s92, %s93
    %p105 = scmp.eq.s32.totalorder %s20, 1
    %p106 = por %p104, %p105
    %p108 = scmp.ne.s32.totalorder %s93, %s107
    %p109 = scmp.eq.s32.totalorder %s20, 0
    %p110 = por %p108, %p109
    %s112 = sadd.s32 %s111, 1
    %p115 = scmp.eq.s32.totalorder %s14, 1
    %p116 = scmp.ne.s32.totalorder %s111, %s113
    %p117 = scmp.eq.s32.totalorder %s14, 0
    %p118 = por %p116, %p117
    %p119 = scmp.ne.s32.totalorder %s111, %s113
    %p120 = scmp.eq.s32.totalorder %s19, 1
    %p121 = por %p119, %p120
    %p122 = scmp.ne.s32.totalorder %s113, %s114
    %p123 = scmp.eq.s32.totalorder %s19, 0
    %p124 = por %p122, %p123
    %p125 = scmp.ne.s32.totalorder %s113, %s114
    %p126 = scmp.eq.s32.totalorder %s20, 1
    %p127 = por %p125, %p126
    %p129 = scmp.ne.s32.totalorder %s114, %s128
    %p130 = scmp.eq.s32.totalorder %s20, 0
    %p131 = por %p129, %p130
    %s133 = sadd.s32 %s132, 1
    %p136 = scmp.eq.s32.totalorder %s14, 1
    %p137 = scmp.ne.s32.totalorder %s132, %s134
    %p138 = scmp.eq.s32.totalorder %s14, 0
    %p139 = por %p137, %p138
    %p140 = scmp.ne.s32.totalorder %s132, %s134
    %p141 = scmp.eq.s32.totalorder %s19, 1
    %p142 = por %p140, %p141
    %p143 = scmp.ne.s32.totalorder %s134, %s135
    %p144 = scmp.eq.s32.totalorder %s19, 0
    %p145 = por %p143, %p144
    %p146 = scmp.ne.s32.totalorder %s134, %s135
    %p147 = scmp.eq.s32.totalorder %s20, 1
    %p148 = por %p146, %p147
    %p150 = scmp.ne.s32.totalorder %s135, %s149
    %p151 = scmp.eq.s32.totalorder %s20, 0
    %p152 = por %p150, %p151
    %s154 = sadd.s32 %s153, 1
    %p157 = scmp.eq.s32.totalorder %s14, 1
    %p158 = scmp.ne.s32.totalorder %s153, %s155
    %p159 = scmp.eq.s32.totalorder %s14, 0
    %p160 = por %p158, %p159
    %p161 = scmp.ne.s32.totalorder %s153, %s155
    %p162 = scmp.eq.s32.totalorder %s19, 1
    %p163 = por %p161, %p162
    %p164 = scmp.ne.s32.totalorder %s155, %s156
    %p165 = scmp.eq.s32.totalorder %s19, 0
    %p166 = por %p164, %p165
    %p167 = scmp.ne.s32.totalorder %s155, %s156
    %p168 = scmp.eq.s32.totalorder %s20, 1
    %p169 = por %p167, %p168
    %p171 = scmp.ne.s32.totalorder %s156, %s170
    %p172 = scmp.eq.s32.totalorder %s20, 0
    %p173 = por %p171, %p172
    %s175 = sadd.s32 %s174, 1
    %p178 = scmp.eq.s32.totalorder %s14, 1
    %p179 = scmp.ne.s32.totalorder %s174, %s176
    %p180 = scmp.eq.s32.totalorder %s14, 0
    %p181 = por %p179, %p180
    %p182 = scmp.ne.s32.totalorder %s174, %s176
    %p183 = scmp.eq.s32.totalorder %s19, 1
    %p184 = por %p182, %p183
    %p185 = scmp.ne.s32.totalorder %s176, %s177
    %p186 = scmp.eq.s32.totalorder %s19, 0
    %p187 = por %p185, %p186
    %p188 = scmp.ne.s32.totalorder %s176, %s177
    %p189 = scmp.eq.s32.totalorder %s20, 1
    %p190 = por %p188, %p189
    %p192 = scmp.ne.s32.totalorder %s177, %s191
    %p193 = scmp.eq.s32.totalorder %s20, 0
    %p194 = por %p192, %p193
    %s195 = ssub.s32 %s14, %s21
    %p196 = scmp.eq.s32.totalorder %s195, 0
    %s198 = sadd.s32 %s197, 1
    %s199 = scalar_select %p196, %s197, %s198
    %p202 = pneg %p196
    %p203 = scmp.eq.s32.totalorder %s14, 1
    %p204 = por %p202, %p203
    %p205 = scmp.ne.s32.totalorder %s197, %s200
    %p206 = scmp.eq.s32.totalorder %s14, 0
    %p207 = por %p205, %p206
    %p208 = scmp.ne.s32.totalorder %s197, %s200
    %p209 = scmp.eq.s32.totalorder %s19, 1
    %p210 = por %p208, %p209
    %p211 = scmp.ne.s32.totalorder %s200, %s201
    %p212 = scmp.eq.s32.totalorder %s19, 0
    %p213 = por %p211, %p212
    %p214 = scmp.ne.s32.totalorder %s200, %s201
    %p215 = scmp.eq.s32.totalorder %s20, 1
    %p216 = por %p214, %p215
    %p218 = scmp.ne.s32.totalorder %s201, %s217
    %p219 = scmp.eq.s32.totalorder %s20, 0
    %p220 = por %p218, %p219
    %p221 = scmp.le.s32.totalorder 1, %s14
    %p222 = scmp.lt.s32.totalorder %s14, 3
    %p223 = pnand %p221, %p222
    %p224 = pneg %p223
    // Predicated region
    $region9: #{sfp_encoder_block.1} parent=5 // pred_check
      _
    $region10: #{sfp_encoder_block.1} parent=5 // pred_check_branch
      %226 = sbr.rel (%p223) target = $region12
    $region11: #{sfp_encoder_block.1} parent=5 // pred_region
      %s227 = ssub.s32 %s14, 1
      // Predicated region
      $region13: #{sfp_encoder_block.1} parent=11 // pred_check
        %p228 = pneg %p61
      $region14: #{sfp_encoder_block.1} parent=11 // pred_check_branch
        %230 = sbr.rel (%p228) target = $region16
      $region15: #{sfp_encoder_block.1} parent=11 // pred_region
        _
      $region16: #{sfp_encoder_block.1} parent=11 // pred_fallthru
        _
      // Predicated region
      $region17: #{sfp_encoder_block.1} parent=11 // pred_check
        %p231 = pneg %p82
      $region18: #{sfp_encoder_block.1} parent=11 // pred_check_branch
        %233 = sbr.rel (%p231) target = $region20
      $region19: #{sfp_encoder_block.1} parent=11 // pred_region
        _
      $region20: #{sfp_encoder_block.1} parent=11 // pred_fallthru
        _
      // Predicated region
      $region21: #{sfp_encoder_block.1} parent=11 // pred_check
        %p234 = pneg %p103
      $region22: #{sfp_encoder_block.1} parent=11 // pred_check_branch
        %236 = sbr.rel (%p234) target = $region24
      $region23: #{sfp_encoder_block.1} parent=11 // pred_region
        _
      $region24: #{sfp_encoder_block.1} parent=11 // pred_fallthru
        _
      // Predicated region
      $region25: #{sfp_encoder_block.1} parent=11 // pred_check
        %p237 = pneg %p124
      $region26: #{sfp_encoder_block.1} parent=11 // pred_check_branch
        %239 = sbr.rel (%p237) target = $region28
      $region27: #{sfp_encoder_block.1} parent=11 // pred_region
        _
      $region28: #{sfp_encoder_block.1} parent=11 // pred_fallthru
        _
      // Predicated region
      $region29: #{sfp_encoder_block.1} parent=11 // pred_check
        %p240 = pneg %p145
      $region30: #{sfp_encoder_block.1} parent=11 // pred_check_branch
        %242 = sbr.rel (%p240) target = $region32
      $region31: #{sfp_encoder_block.1} parent=11 // pred_region
        _
      $region32: #{sfp_encoder_block.1} parent=11 // pred_fallthru
        _
      // Predicated region
      $region33: #{sfp_encoder_block.1} parent=11 // pred_check
        %p243 = pneg %p166
      $region34: #{sfp_encoder_block.1} parent=11 // pred_check_branch
        %245 = sbr.rel (%p243) target = $region36
      $region35: #{sfp_encoder_block.1} parent=11 // pred_region
        _
      $region36: #{sfp_encoder_block.1} parent=11 // pred_fallthru
        _
      // Predicated region
      $region37: #{sfp_encoder_block.1} parent=11 // pred_check
        %p246 = pneg %p187
      $region38: #{sfp_encoder_block.1} parent=11 // pred_check_branch
        %248 = sbr.rel (%p246) target = $region40
      $region39: #{sfp_encoder_block.1} parent=11 // pred_region
        _
      $region40: #{sfp_encoder_block.1} parent=11 // pred_fallthru
        _
    $region12: #{sfp_encoder_block.1} parent=5 // pred_fallthru
      _
    %p249 = scmp.lt.s32.totalorder %s14, 2
    // Predicated region
    $region41: #{sfp_encoder_block.1} parent=5 // pred_check
      %p250 = pneg %p249
    $region42: #{sfp_encoder_block.1} parent=5 // pred_check_branch
      %252 = sbr.rel (%p250) target = $region44
    $region43: #{sfp_encoder_block.1} parent=5 // pred_region
      // Predicated region
      $region45: #{sfp_encoder_block.1} parent=43 // pred_check
        %p253 = pneg %p34
      $region46: #{sfp_encoder_block.1} parent=43 // pred_check_branch
        %255 = sbr.rel (%p253) target = $region48
      $region47: #{sfp_encoder_block.1} parent=43 // pred_region
        %p256 = scmp.lt.s32.totalorder %s14, 1
        %s257 = scalar_select %p256, %s14, 1
        %s258 = smul.addr %s257, 72
        %s259 = smul.addr %s258, 4
        %s260 = scalar_lea.vmem %s0, %s259
      $region48: #{sfp_encoder_block.1} parent=43 // pred_fallthru
        _
    $region44: #{sfp_encoder_block.1} parent=5 // pred_fallthru
      _
    %p261 = scmp.le.s32.totalorder 1, %s14
    %p262 = scmp.lt.s32.totalorder %s14, 3
    %p263 = pnand %p261, %p262
    %p264 = pneg %p263
    // Predicated region
    $region49: #{sfp_encoder_block.1} parent=5 // pred_check
      _
    $region50: #{sfp_encoder_block.1} parent=5 // pred_check_branch
      %266 = sbr.rel (%p263) target = $region52
    $region51: #{sfp_encoder_block.1} parent=5 // pred_region
      %s267 = ssub.s32 %s14, 1
      %p268 = scmp.lt.s32.totalorder %s19, 1
      %s269 = scalar_select %p268, %s19, 1
      %s270 = smul.addr %s269, 72
      %s271 = smul.addr %s270, 4
      %s272 = scalar_lea.vmem %s0, %s271
      %p273 = pneg %p40
      %p274 = pneg %p37
      %p275 = pneg %p61
      %p276 = pneg %p58
      %p277 = pneg %p82
      %p278 = pneg %p79
      %p279 = pneg %p103
      %p280 = pneg %p100
      %p281 = pneg %p124
      %p282 = pneg %p121
      %p283 = pneg %p145
      %p284 = pneg %p142
      %p285 = pneg %p166
      %p286 = pneg %p163
      %p287 = pneg %p187
      %p288 = pneg %p184
      %p289 = pneg %p213
      %p290 = pneg %p210
      %p291 = scmp.lt.s32.totalorder %s19, 1
      %s292 = scalar_select %p291, %s19, 1
      %s293 = smul.addr %s292, 8
      %s294 = smul.addr %s293, 8
      %s295 = scalar_lea.vmem %s8, %s294
      %p296 = scmp.lt.s32.totalorder %s19, 1
      %s297 = scalar_select %p296, %s19, 1
      %s298 = smul.addr %s297, 72
      %s299 = smul.addr %s298, 4
      %s300 = scalar_lea.vmem %s0, %s299
      %p301 = scmp.lt.s32.totalorder %s19, 1
      %s302 = scalar_select %p301, %s19, 1
      %s303 = smul.addr %s302, 8
      %s304 = smul.addr %s303, 8
      %s305 = scalar_lea.vmem %s8, %s304
      %v307 = vld [vmem:[%s300] sm:$0xf]
      %v308 = vld [vmem:[%s300 + $0x8] sm:$0xf]
      %v309 = vld [vmem:[%s300 + $0x10] sm:$0xf]
      %v310 = vld [vmem:[%s300 + $0x18] sm:$0xf]
      %v311 = vld [vmem:[%s300 + $0x20] sm:$0xf]
      %v312 = vld [vmem:[%s300 + $0x28] sm:$0xf]
      %v313 = vld [vmem:[%s300 + $0x30] sm:$0xf]
      %v314 = vld [vmem:[%s300 + $0x38] sm:$0xf]
      %v315 = vld [vmem:[%s1] sm:$0x3]
      %s316 = scalar_lea.vmem %s300, 72
      %v317 = vld [vmem:[%s316] sm:$0xf]
      %v318 = vld [vmem:[%s316 + $0x8] sm:$0xf]
      %v319 = vld [vmem:[%s316 + $0x10] sm:$0xf]
      %v320 = vld [vmem:[%s316 + $0x18] sm:$0xf]
      %v321 = vld [vmem:[%s316 + $0x20] sm:$0xf]
      %v322 = vld [vmem:[%s316 + $0x28] sm:$0xf]
      %v323 = vld [vmem:[%s316 + $0x30] sm:$0xf]
      %v324 = vld [vmem:[%s316 + $0x38] sm:$0xf]
      %s325 = scalar_lea.vmem %s1, 2
      %v326 = vld [vmem:[%s325] sm:$0x3]
      %v335 = vunpack.c.l.b16 %v317
      %v336 = vunpack.c.l.b16 %v318
      %v337 = vunpack.c.l.b16 %v319
      %v338 = vunpack.c.l.b16 %v320
      %v339 = vunpack.c.l.b16 %v321
      %v340 = vunpack.c.l.b16 %v322
      %v341 = vunpack.c.l.b16 %v323
      %v342 = vunpack.c.l.b16 %v324
      %v343 = vpack.c.b16 %v336, %v335
      %v344 = vpack.c.b16 %v338, %v337
      %v345 = vpack.c.b16 %v340, %v339
      %v346 = vpack.c.b16 %v342, %v341
      %vm347 = vcmask 31744
      %v349 = vsel %vm347, %v343, 0
      %v352 = vsel %vm347, %v344, 0
      %v355 = vsel %vm347, %v345, 0
      %v358 = vsel %vm347, %v346, 0
      %vm360 = vcmask 1041408
      %v362 = vsel %vm360, %v326, 0
      %364 = vmatprep.subr.bf16.mxu0 0
      %365 = vmatpush1.bf16.msra.mxu0 %v362
      %366 = vmatprep.subr.bf16.mxu0 0
      %367 = vmatpush1.bf16.msra.mxu0 0
      %368 = vmatprep.subr.bf16.mxu0 0
      %369 = vmatpush1.bf16.msra.mxu0 0
      %370 = vmatprep.subr.bf16.mxu0 0
      %371 = vmatpush1.bf16.msra.mxu0 0
      %372 = vmatprep.subr.bf16.mxu0 0
      %373 = vmatpush1.bf16.msra.mxu0 0
      %374 = vmatprep.subr.bf16.mxu0 0
      %375 = vmatpush1.bf16.msra.mxu0 0
      %376 = vmatprep.subr.bf16.mxu0 0
      %377 = vmatpush1.bf16.msra.mxu0 0
      %378 = vmatprep.subr.bf16.mxu0 0
      %379 = vmatpush1.bf16.msra.mxu0 0
      %380 = vmatprep.subr.bf16.mxu0 0
      %381 = vmatpush1.bf16.msra.mxu0 0
      %382 = vmatprep.subr.bf16.mxu0 0
      %383 = vmatpush1.bf16.msra.mxu0 0
      %384 = vmatprep.subr.bf16.mxu0 0
      %385 = vmatpush1.bf16.msra.mxu0 0
      %386 = vmatprep.subr.bf16.mxu0 0
      %387 = vmatpush1.bf16.msra.mxu0 0
      %388 = vmatprep.subr.bf16.mxu0 0
      %389 = vmatpush1.bf16.msra.mxu0 0
      %390 = vmatprep.subr.bf16.mxu0 0
      %391 = vmatpush1.bf16.msra.mxu0 0
      %392 = vmatprep.subr.bf16.mxu0 0
      %393 = vmatpush1.bf16.msra.mxu0 0
      %394 = vmatprep.subr.bf16.mxu0 0
      %395 = vmatpush1.bf16.msra.mxu0 0
      %396 = vmatprep.mubr.bf16.mxu0 0
      %397 = vmatmul.mubr.bf16.gmra.mrb[0].mxu0 %v349
      %v398 = vpop.f32.mrb[0].mxu0
      %v399 = vadd.f32 0.0, %v398
      %v400 = vpop.f32.mrb[0].mxu0
      %v401 = vpop.f32.mrb[0].mxu0
      %v402 = vadd.f32 0.0, %v401
      %v403 = vpop.f32.mrb[0].mxu0
      %404 = vmatprep.mubr.bf16.mxu0 0
      %405 = vmatmul.mubr.bf16.gmra.mrb[0].mxu0 %v352
      %v406 = vpop.f32.mrb[0].mxu0
      %v407 = vadd.f32 0.0, %v406
      %v408 = vpop.f32.mrb[0].mxu0
      %v409 = vpop.f32.mrb[0].mxu0
      %v410 = vadd.f32 0.0, %v409
      %v411 = vpop.f32.mrb[0].mxu0
      %412 = vmatprep.mubr.bf16.mxu0 0
      %413 = vmatmul.mubr.bf16.gmra.mrb[0].mxu0 %v355
      %v414 = vpop.f32.mrb[0].mxu0
      %v415 = vadd.f32 0.0, %v414
      %v416 = vpop.f32.mrb[0].mxu0
      %v417 = vpop.f32.mrb[0].mxu0
      %v418 = vadd.f32 0.0, %v417
      %v419 = vpop.f32.mrb[0].mxu0
      %420 = vmatprep.mubr.bf16.mxu0 0
      %421 = vmatmul.mubr.bf16.gmra.mrb[0].mxu0 %v358
      %v422 = vpop.f32.mrb[0].mxu0
      %v423 = vadd.f32 0.0, %v422
      %v424 = vpop.f32.mrb[0].mxu0
      %v425 = vpop.f32.mrb[0].mxu0
      %v426 = vadd.f32 0.0, %v425
      %v427 = vpop.f32.mrb[0].mxu0
      %428 = vdwg.mxu0
      %v437 = vunpack.c.l.b16 %v307
      %v438 = vunpack.c.l.b16 %v308
      %v439 = vunpack.c.l.b16 %v309
      %v440 = vunpack.c.l.b16 %v310
      %v441 = vunpack.c.l.b16 %v311
      %v442 = vunpack.c.l.b16 %v312
      %v443 = vunpack.c.l.b16 %v313
      %v444 = vunpack.c.l.b16 %v314
      %v445 = vpack.c.b16 %v438, %v437
      %v446 = vpack.c.b16 %v440, %v439
      %v447 = vpack.c.b16 %v442, %v441
      %v448 = vpack.c.b16 %v444, %v443
      %v450 = vsel %vm347, %v445, 0
      %v453 = vsel %vm347, %v446, 0
      %v456 = vsel %vm347, %v447, 0
      %v459 = vsel %vm347, %v448, 0
      %v462 = vsel %vm360, %v315, 0
      %464 = vmatprep.subr.bf16.mxu0 0
      %465 = vmatpush1.bf16.msra.mxu0 %v462
      %466 = vmatprep.subr.bf16.mxu0 0
      %467 = vmatpush1.bf16.msra.mxu0 0
      %468 = vmatprep.subr.bf16.mxu0 0
      %469 = vmatpush1.bf16.msra.mxu0 0
      %470 = vmatprep.subr.bf16.mxu0 0
      %471 = vmatpush1.bf16.msra.mxu0 0
      %472 = vmatprep.subr.bf16.mxu0 0
      %473 = vmatpush1.bf16.msra.mxu0 0
      %474 = vmatprep.subr.bf16.mxu0 0
      %475 = vmatpush1.bf16.msra.mxu0 0
      %476 = vmatprep.subr.bf16.mxu0 0
      %477 = vmatpush1.bf16.msra.mxu0 0
      %478 = vmatprep.subr.bf16.mxu0 0
      %479 = vmatpush1.bf16.msra.mxu0 0
      %480 = vmatprep.subr.bf16.mxu0 0
      %481 = vmatpush1.bf16.msra.mxu0 0
      %482 = vmatprep.subr.bf16.mxu0 0
      %483 = vmatpush1.bf16.msra.mxu0 0
      %484 = vmatprep.subr.bf16.mxu0 0
      %485 = vmatpush1.bf16.msra.mxu0 0
      %486 = vmatprep.subr.bf16.mxu0 0
      %487 = vmatpush1.bf16.msra.mxu0 0
      %488 = vmatprep.subr.bf16.mxu0 0
      %489 = vmatpush1.bf16.msra.mxu0 0
      %490 = vmatprep.subr.bf16.mxu0 0
      %491 = vmatpush1.bf16.msra.mxu0 0
      %492 = vmatprep.subr.bf16.mxu0 0
      %493 = vmatpush1.bf16.msra.mxu0 0
      %494 = vmatprep.subr.bf16.mxu0 0
      %495 = vmatpush1.bf16.msra.mxu0 0
      %496 = vmatprep.mubr.bf16.mxu0 0
      %497 = vmatmul.mubr.bf16.gmra.mrb[0].mxu0 %v450
      %v498 = vpop.f32.mrb[0].mxu0
      %v499 = vadd.f32 %v399, %v498
      %v500 = vpop.f32.mrb[0].mxu0
      %v501 = vpop.f32.mrb[0].mxu0
      %v502 = vadd.f32 %v402, %v501
      %v503 = vpop.f32.mrb[0].mxu0
      %504 = vmatprep.mubr.bf16.mxu0 0
      %505 = vmatmul.mubr.bf16.gmra.mrb[0].mxu0 %v453
      %v506 = vpop.f32.mrb[0].mxu0
      %v507 = vadd.f32 %v407, %v506
      %v508 = vpop.f32.mrb[0].mxu0
      %v509 = vpop.f32.mrb[0].mxu0
      %v510 = vadd.f32 %v410, %v509
      %v511 = vpop.f32.mrb[0].mxu0
      %512 = vmatprep.mubr.bf16.mxu0 0
      %513 = vmatmul.mubr.bf16.gmra.mrb[0].mxu0 %v456
      %v514 = vpop.f32.mrb[0].mxu0
      %v515 = vadd.f32 %v415, %v514
      %v516 = vpop.f32.mrb[0].mxu0
      %v517 = vpop.f32.mrb[0].mxu0
      %v518 = vadd.f32 %v418, %v517
      %v519 = vpop.f32.mrb[0].mxu0
      %520 = vmatprep.mubr.bf16.mxu0 0
      %521 = vmatmul.mubr.bf16.gmra.mrb[0].mxu0 %v459
      %v522 = vpop.f32.mrb[0].mxu0
      %v523 = vadd.f32 %v423, %v522
      %v524 = vpop.f32.mrb[0].mxu0
      %v525 = vpop.f32.mrb[0].mxu0
      %v526 = vadd.f32 %v426, %v525
      %v527 = vpop.f32.mrb[0].mxu0
      %528 = vdwg.mxu0
      %v529 = vld [vmem:[%s300] sm:$0xf]
      %v530 = vld [vmem:[%s300 + $0x4] sm:$0x1]
      %v531 = vld [vmem:[%s300 + $0x8] sm:$0xf]
      %v532 = vld [vmem:[%s300 + $0xc] sm:$0x1]
      %v533 = vld [vmem:[%s300 + $0x10] sm:$0xf]
      %v534 = vld [vmem:[%s300 + $0x14] sm:$0x1]
      %v535 = vld [vmem:[%s300 + $0x18] sm:$0xf]
      %v536 = vld [vmem:[%s300 + $0x1c] sm:$0x1]
      %v537 = vld [vmem:[%s300 + $0x20] sm:$0xf]
      %v538 = vld [vmem:[%s300 + $0x24] sm:$0x1]
      %v539 = vld [vmem:[%s300 + $0x28] sm:$0xf]
      %v540 = vld [vmem:[%s300 + $0x2c] sm:$0x1]
      %v541 = vld [vmem:[%s300 + $0x30] sm:$0xf]
      %v542 = vld [vmem:[%s300 + $0x34] sm:$0x1]
      %v543 = vld [vmem:[%s300 + $0x38] sm:$0xf]
      %v544 = vld [vmem:[%s300 + $0x3c] sm:$0x1]
      %vm545 = vsmask.f32 3328
      %vm546 = vsmask.f32 7440
      %vm547 = vmor %vm545, %vm546
      %v549 = vshrl.u32 %v529, 16
      %v551 = vrot.slane %v549, 4
      %v552 = vshll.u32 %v529, 16
      %v554 = vrot.slane %v552, 5
      %v555 = vor.u32 %v551, %v554
      %v556 = vrot.slane %v555, 4
      %v558 = vshll.u32 %v530, 16
      %v560 = vrot.slane %v558, 5
      %v561 = vsel %vm547, %v556, %v560
      %v563 = vshrl.u32 %v531, 16
      %v565 = vrot.slane %v563, 4
      %v566 = vshll.u32 %v531, 16
      %v568 = vrot.slane %v566, 5
      %v569 = vor.u32 %v565, %v568
      %v570 = vrot.slane %v569, 4
      %v572 = vshll.u32 %v532, 16
      %v574 = vrot.slane %v572, 5
      %v575 = vsel %vm547, %v570, %v574
      %v577 = vshrl.u32 %v533, 16
      %v579 = vrot.slane %v577, 4
      %v580 = vshll.u32 %v533, 16
      %v582 = vrot.slane %v580, 5
      %v583 = vor.u32 %v579, %v582
      %v584 = vrot.slane %v583, 4
      %v586 = vshll.u32 %v534, 16
      %v588 = vrot.slane %v586, 5
      %v589 = vsel %vm547, %v584, %v588
      %v591 = vshrl.u32 %v535, 16
      %v593 = vrot.slane %v591, 4
      %v594 = vshll.u32 %v535, 16
      %v596 = vrot.slane %v594, 5
      %v597 = vor.u32 %v593, %v596
      %v598 = vrot.slane %v597, 4
      %v600 = vshll.u32 %v536, 16
      %v602 = vrot.slane %v600, 5
      %v603 = vsel %vm547, %v598, %v602
      %v605 = vshrl.u32 %v537, 16
      %v607 = vrot.slane %v605, 4
      %v608 = vshll.u32 %v537, 16
      %v610 = vrot.slane %v608, 5
      %v611 = vor.u32 %v607, %v610
      %v612 = vrot.slane %v611, 4
      %v614 = vshll.u32 %v538, 16
      %v616 = vrot.slane %v614, 5
      %v617 = vsel %vm547, %v612, %v616
      %v619 = vshrl.u32 %v539, 16
      %v621 = vrot.slane %v619, 4
      %v622 = vshll.u32 %v539, 16
      %v624 = vrot.slane %v622, 5
      %v625 = vor.u32 %v621, %v624
      %v626 = vrot.slane %v625, 4
      %v628 = vshll.u32 %v540, 16
      %v630 = vrot.slane %v628, 5
      %v631 = vsel %vm547, %v626, %v630
      %v633 = vshrl.u32 %v541, 16
      %v635 = vrot.slane %v633, 4
      %v636 = vshll.u32 %v541, 16
      %v638 = vrot.slane %v636, 5
      %v639 = vor.u32 %v635, %v638
      %v640 = vrot.slane %v639, 4
      %v642 = vshll.u32 %v542, 16
      %v644 = vrot.slane %v642, 5
      %v645 = vsel %vm547, %v640, %v644
      %v647 = vshrl.u32 %v543, 16
      %v649 = vrot.slane %v647, 4
      %v650 = vshll.u32 %v543, 16
      %v652 = vrot.slane %v650, 5
      %v653 = vor.u32 %v649, %v652
      %v654 = vrot.slane %v653, 4
      %v656 = vshll.u32 %v544, 16
      %v658 = vrot.slane %v656, 5
      %v659 = vsel %vm547, %v654, %v658
      %s660 = scalar_lea.vmem %s1, 4
      %v661 = vld [vmem:[%s660] sm:$0x3]
      %v662 = vunpack.c.l.b16 %v561
      %v663 = vunpack.c.l.b16 %v575
      %v664 = vunpack.c.l.b16 %v589
      %v665 = vunpack.c.l.b16 %v603
      %v666 = vunpack.c.l.b16 %v617
      %v667 = vunpack.c.l.b16 %v631
      %v668 = vunpack.c.l.b16 %v645
      %v669 = vunpack.c.l.b16 %v659
      %v670 = vpack.c.b16 %v663, %v662
      %v671 = vpack.c.b16 %v665, %v664
      %v672 = vpack.c.b16 %v667, %v666
      %v673 = vpack.c.b16 %v669, %v668
      %v675 = vsel %vm347, %v670, 0
      %v678 = vsel %vm347, %v671, 0
      %v681 = vsel %vm347, %v672, 0
      %v684 = vsel %vm347, %v673, 0
      %v687 = vsel %vm360, %v661, 0
      %689 = vmatprep.subr.bf16.mxu0 0
      %690 = vmatpush1.bf16.msra.mxu0 %v687
      %691 = vmatprep.subr.bf16.mxu0 0
      %692 = vmatpush1.bf16.msra.mxu0 0
      %693 = vmatprep.subr.bf16.mxu0 0
      %694 = vmatpush1.bf16.msra.mxu0 0
      %695 = vmatprep.subr.bf16.mxu0 0
      %696 = vmatpush1.bf16.msra.mxu0 0
      %697 = vmatprep.subr.bf16.mxu0 0
      %698 = vmatpush1.bf16.msra.mxu0 0
      %699 = vmatprep.subr.bf16.mxu0 0
      %700 = vmatpush1.bf16.msra.mxu0 0
      %701 = vmatprep.subr.bf16.mxu0 0
      %702 = vmatpush1.bf16.msra.mxu0 0
      %703 = vmatprep.subr.bf16.mxu0 0
      %704 = vmatpush1.bf16.msra.mxu0 0
      %705 = vmatprep.subr.bf16.mxu0 0
      %706 = vmatpush1.bf16.msra.mxu0 0
      %707 = vmatprep.subr.bf16.mxu0 0
      %708 = vmatpush1.bf16.msra.mxu0 0
      %709 = vmatprep.subr.bf16.mxu0 0
      %710 = vmatpush1.bf16.msra.mxu0 0
      %711 = vmatprep.subr.bf16.mxu0 0
      %712 = vmatpush1.bf16.msra.mxu0 0
      %713 = vmatprep.subr.bf16.mxu0 0
      %714 = vmatpush1.bf16.msra.mxu0 0
      %715 = vmatprep.subr.bf16.mxu0 0
      %716 = vmatpush1.bf16.msra.mxu0 0
      %717 = vmatprep.subr.bf16.mxu0 0
      %718 = vmatpush1.bf16.msra.mxu0 0
      %719 = vmatprep.subr.bf16.mxu0 0
      %720 = vmatpush1.bf16.msra.mxu0 0
      %721 = vmatprep.mubr.bf16.mxu0 0
      %722 = vmatmul.mubr.bf16.gmra.mrb[0].mxu0 %v675
      %v723 = vpop.f32.mrb[0].mxu0
      %v724 = vadd.f32 0.0, %v723
      %v725 = vpop.f32.mrb[0].mxu0
      %v726 = vpop.f32.mrb[0].mxu0
      %v727 = vadd.f32 0.0, %v726
      %v728 = vpop.f32.mrb[0].mxu0
      %729 = vmatprep.mubr.bf16.mxu0 0
      %730 = vmatmul.mubr.bf16.gmra.mrb[0].mxu0 %v678
      %v731 = vpop.f32.mrb[0].mxu0
      %v732 = vadd.f32 0.0, %v731
      %v733 = vpop.f32.mrb[0].mxu0
      %v734 = vpop.f32.mrb[0].mxu0
      %v735 = vadd.f32 0.0, %v734
      %v736 = vpop.f32.mrb[0].mxu0
      %737 = vmatprep.mubr.bf16.mxu0 0
      %738 = vmatmul.mubr.bf16.gmra.mrb[0].mxu0 %v681
      %v739 = vpop.f32.mrb[0].mxu0
      %v740 = vadd.f32 0.0, %v739
      %v741 = vpop.f32.mrb[0].mxu0
      %v742 = vpop.f32.mrb[0].mxu0
      %v743 = vadd.f32 0.0, %v742
      %v744 = vpop.f32.mrb[0].mxu0
      %745 = vmatprep.mubr.bf16.mxu0 0
      %746 = vmatmul.mubr.bf16.gmra.mrb[0].mxu0 %v684
      %v747 = vpop.f32.mrb[0].mxu0
      %v748 = vadd.f32 0.0, %v747
      %v749 = vpop.f32.mrb[0].mxu0
      %v750 = vpop.f32.mrb[0].mxu0
      %v751 = vadd.f32 0.0, %v750
      %v752 = vpop.f32.mrb[0].mxu0
      %753 = vdwg.mxu0
      %v754 = vadd.f32 %v499, %v724
      %v755 = vadd.f32 %v502, %v727
      %v756 = vadd.f32 %v507, %v732
      %v757 = vadd.f32 %v510, %v735
      %v758 = vadd.f32 %v515, %v740
      %v759 = vadd.f32 %v518, %v743
      %v760 = vadd.f32 %v523, %v748
      %v761 = vadd.f32 %v526, %v751
      %s762 = scalar_lea.vmem %s300, 144
      %v763 = vld [vmem:[%s762] sm:$0xf]
      %v764 = vld [vmem:[%s762 + $0x8] sm:$0xf]
      %v765 = vld [vmem:[%s762 + $0x10] sm:$0xf]
      %v766 = vld [vmem:[%s762 + $0x18] sm:$0xf]
      %v767 = vld [vmem:[%s762 + $0x20] sm:$0xf]
      %v768 = vld [vmem:[%s762 + $0x28] sm:$0xf]
      %v769 = vld [vmem:[%s762 + $0x30] sm:$0xf]
      %v770 = vld [vmem:[%s762 + $0x38] sm:$0xf]
      %s771 = scalar_lea.vmem %s1, 6
      %v772 = vld [vmem:[%s771] sm:$0x3]
      %v781 = vunpack.c.l.b16 %v763
      %v782 = vunpack.c.l.b16 %v764
      %v783 = vunpack.c.l.b16 %v765
      %v784 = vunpack.c.l.b16 %v766
      %v785 = vunpack.c.l.b16 %v767
      %v786 = vunpack.c.l.b16 %v768
      %v787 = vunpack.c.l.b16 %v769
      %v788 = vunpack.c.l.b16 %v770
      %v789 = vpack.c.b16 %v782, %v781
      %v790 = vpack.c.b16 %v784, %v783
      %v791 = vpack.c.b16 %v786, %v785
      %v792 = vpack.c.b16 %v788, %v787
      %v794 = vsel %vm347, %v789, 0
      %v797 = vsel %vm347, %v790, 0
      %v800 = vsel %vm347, %v791, 0
      %v803 = vsel %vm347, %v792, 0
      %v806 = vsel %vm360, %v772, 0
      %808 = vmatprep.subr.bf16.mxu0 0
      %809 = vmatpush1.bf16.msra.mxu0 %v806
      %810 = vmatprep.subr.bf16.mxu0 0
      %811 = vmatpush1.bf16.msra.mxu0 0
      %812 = vmatprep.subr.bf16.mxu0 0
      %813 = vmatpush1.bf16.msra.mxu0 0
      %814 = vmatprep.subr.bf16.mxu0 0
      %815 = vmatpush1.bf16.msra.mxu0 0
      %816 = vmatprep.subr.bf16.mxu0 0
      %817 = vmatpush1.bf16.msra.mxu0 0
      %818 = vmatprep.subr.bf16.mxu0 0
      %819 = vmatpush1.bf16.msra.mxu0 0
      %820 = vmatprep.subr.bf16.mxu0 0
      %821 = vmatpush1.bf16.msra.mxu0 0
      %822 = vmatprep.subr.bf16.mxu0 0
      %823 = vmatpush1.bf16.msra.mxu0 0
      %824 = vmatprep.subr.bf16.mxu0 0
      %825 = vmatpush1.bf16.msra.mxu0 0
      %826 = vmatprep.subr.bf16.mxu0 0
      %827 = vmatpush1.bf16.msra.mxu0 0
      %828 = vmatprep.subr.bf16.mxu0 0
      %829 = vmatpush1.bf16.msra.mxu0 0
      %830 = vmatprep.subr.bf16.mxu0 0
      %831 = vmatpush1.bf16.msra.mxu0 0
      %832 = vmatprep.subr.bf16.mxu0 0
      %833 = vmatpush1.bf16.msra.mxu0 0
      %834 = vmatprep.subr.bf16.mxu0 0
      %835 = vmatpush1.bf16.msra.mxu0 0
      %836 = vmatprep.subr.bf16.mxu0 0
      %837 = vmatpush1.bf16.msra.mxu0 0
      %838 = vmatprep.subr.bf16.mxu0 0
      %839 = vmatpush1.bf16.msra.mxu0 0
      %840 = vmatprep.mubr.bf16.mxu0 0
      %841 = vmatmul.mubr.bf16.gmra.mrb[0].mxu0 %v794
      %v842 = vpop.f32.mrb[0].mxu0
      %v843 = vadd.f32 0.0, %v842
      %v844 = vpop.f32.mrb[0].mxu0
      %v845 = vpop.f32.mrb[0].mxu0
      %v846 = vadd.f32 0.0, %v845
      %v847 = vpop.f32.mrb[0].mxu0
      %848 = vmatprep.mubr.bf16.mxu0 0
      %849 = vmatmul.mubr.bf16.gmra.mrb[0].mxu0 %v797
      %v850 = vpop.f32.mrb[0].mxu0
      %v851 = vadd.f32 0.0, %v850
      %v852 = vpop.f32.mrb[0].mxu0
      %v853 = vpop.f32.mrb[0].mxu0
      %v854 = vadd.f32 0.0, %v853
      %v855 = vpop.f32.mrb[0].mxu0
      %856 = vmatprep.mubr.bf16.mxu0 0
      %857 = vmatmul.mubr.bf16.gmra.mrb[0].mxu0 %v800
      %v858 = vpop.f32.mrb[0].mxu0
      %v859 = vadd.f32 0.0, %v858
      %v860 = vpop.f32.mrb[0].mxu0
      %v861 = vpop.f32.mrb[0].mxu0
      %v862 = vadd.f32 0.0, %v861
      %v863 = vpop.f32.mrb[0].mxu0
      %864 = vmatprep.mubr.bf16.mxu0 0
      %865 = vmatmul.mubr.bf16.gmra.mrb[0].mxu0 %v803
      %v866 = vpop.f32.mrb[0].mxu0
      %v867 = vadd.f32 0.0, %v866
      %v868 = vpop.f32.mrb[0].mxu0
      %v869 = vpop.f32.mrb[0].mxu0
      %v870 = vadd.f32 0.0, %v869
      %v871 = vpop.f32.mrb[0].mxu0
      %872 = vdwg.mxu0
      %v873 = vadd.f32 %v754, %v843
      %v874 = vadd.f32 %v755, %v846
      %v875 = vadd.f32 %v756, %v851
      %v876 = vadd.f32 %v757, %v854
      %v877 = vadd.f32 %v758, %v859
      %v878 = vadd.f32 %v759, %v862
      %v879 = vadd.f32 %v760, %v867
      %v880 = vadd.f32 %v761, %v870
      %s881 = scalar_lea.vmem %s300, 216
      %v882 = vld [vmem:[%s881] sm:$0xf]
      %v883 = vld [vmem:[%s881 + $0x8] sm:$0xf]
      %v884 = vld [vmem:[%s881 + $0x10] sm:$0xf]
      %v885 = vld [vmem:[%s881 + $0x18] sm:$0xf]
      %v886 = vld [vmem:[%s881 + $0x20] sm:$0xf]
      %v887 = vld [vmem:[%s881 + $0x28] sm:$0xf]
      %v888 = vld [vmem:[%s881 + $0x30] sm:$0xf]
      %v889 = vld [vmem:[%s881 + $0x38] sm:$0xf]
      %s890 = scalar_lea.vmem %s1, 8
      %v891 = vld [vmem:[%s890] sm:$0x3]
      %v900 = vunpack.c.l.b16 %v882
      %v901 = vunpack.c.l.b16 %v883
      %v902 = vunpack.c.l.b16 %v884
      %v903 = vunpack.c.l.b16 %v885
      %v904 = vunpack.c.l.b16 %v886
      %v905 = vunpack.c.l.b16 %v887
      %v906 = vunpack.c.l.b16 %v888
      %v907 = vunpack.c.l.b16 %v889
      %v908 = vpack.c.b16 %v901, %v900
      %v909 = vpack.c.b16 %v903, %v902
      %v910 = vpack.c.b16 %v905, %v904
      %v911 = vpack.c.b16 %v907, %v906
      %v913 = vsel %vm347, %v908, 0
      %v916 = vsel %vm347, %v909, 0
      %v919 = vsel %vm347, %v910, 0
      %v922 = vsel %vm347, %v911, 0
      %v925 = vsel %vm360, %v891, 0
      %927 = vmatprep.subr.bf16.mxu0 0
      %928 = vmatpush1.bf16.msra.mxu0 %v925
      %929 = vmatprep.subr.bf16.mxu0 0
      %930 = vmatpush1.bf16.msra.mxu0 0
      %931 = vmatprep.subr.bf16.mxu0 0
      %932 = vmatpush1.bf16.msra.mxu0 0
      %933 = vmatprep.subr.bf16.mxu0 0
      %934 = vmatpush1.bf16.msra.mxu0 0
      %935 = vmatprep.subr.bf16.mxu0 0
      %936 = vmatpush1.bf16.msra.mxu0 0
      %937 = vmatprep.subr.bf16.mxu0 0
      %938 = vmatpush1.bf16.msra.mxu0 0
      %939 = vmatprep.subr.bf16.mxu0 0
      %940 = vmatpush1.bf16.msra.mxu0 0
      %941 = vmatprep.subr.bf16.mxu0 0
      %942 = vmatpush1.bf16.msra.mxu0 0
      %943 = vmatprep.subr.bf16.mxu0 0
      %944 = vmatpush1.bf16.msra.mxu0 0
      %945 = vmatprep.subr.bf16.mxu0 0
      %946 = vmatpush1.bf16.msra.mxu0 0
      %947 = vmatprep.subr.bf16.mxu0 0
      %948 = vmatpush1.bf16.msra.mxu0 0
      %949 = vmatprep.subr.bf16.mxu0 0
      %950 = vmatpush1.bf16.msra.mxu0 0
      %951 = vmatprep.subr.bf16.mxu0 0
      %952 = vmatpush1.bf16.msra.mxu0 0
      %953 = vmatprep.subr.bf16.mxu0 0
      %954 = vmatpush1.bf16.msra.mxu0 0
      %955 = vmatprep.subr.bf16.mxu0 0
      %956 = vmatpush1.bf16.msra.mxu0 0
      %957 = vmatprep.subr.bf16.mxu0 0
      %958 = vmatpush1.bf16.msra.mxu0 0
      %959 = vmatprep.mubr.bf16.mxu0 0
      %960 = vmatmul.mubr.bf16.gmra.mrb[0].mxu0 %v913
      %v961 = vpop.f32.mrb[0].mxu0
      %v962 = vadd.f32 0.0, %v961
      %v963 = vpop.f32.mrb[0].mxu0
      %v964 = vpop.f32.mrb[0].mxu0
      %v965 = vadd.f32 0.0, %v964
      %v966 = vpop.f32.mrb[0].mxu0
      %967 = vmatprep.mubr.bf16.mxu0 0
      %968 = vmatmul.mubr.bf16.gmra.mrb[0].mxu0 %v916
      %v969 = vpop.f32.mrb[0].mxu0
      %v970 = vadd.f32 0.0, %v969
      %v971 = vpop.f32.mrb[0].mxu0
      %v972 = vpop.f32.mrb[0].mxu0
      %v973 = vadd.f32 0.0, %v972
      %v974 = vpop.f32.mrb[0].mxu0
      %975 = vmatprep.mubr.bf16.mxu0 0
      %976 = vmatmul.mubr.bf16.gmra.mrb[0].mxu0 %v919
      %v977 = vpop.f32.mrb[0].mxu0
      %v978 = vadd.f32 0.0, %v977
      %v979 = vpop.f32.mrb[0].mxu0
      %v980 = vpop.f32.mrb[0].mxu0
      %v981 = vadd.f32 0.0, %v980
      %v982 = vpop.f32.mrb[0].mxu0
      %983 = vmatprep.mubr.bf16.mxu0 0
      %984 = vmatmul.mubr.bf16.gmra.mrb[0].mxu0 %v922
      %v985 = vpop.f32.mrb[0].mxu0
      %v986 = vadd.f32 0.0, %v985
      %v987 = vpop.f32.mrb[0].mxu0
      %v988 = vpop.f32.mrb[0].mxu0
      %v989 = vadd.f32 0.0, %v988
      %v990 = vpop.f32.mrb[0].mxu0
      %991 = vdwg.mxu0
      %v992 = vadd.f32 %v873, %v962
      %v993 = vadd.f32 %v874, %v965
      %v994 = vadd.f32 %v875, %v970
      %v995 = vadd.f32 %v876, %v973
      %v996 = vadd.f32 %v877, %v978
      %v997 = vadd.f32 %v878, %v981
      %v998 = vadd.f32 %v879, %v986
      %v999 = vadd.f32 %v880, %v989
      %v1000 = vld [vmem:[%s762] sm:$0xf]
      %v1001 = vld [vmem:[%s762 + $0x4] sm:$0x1]
      %v1002 = vld [vmem:[%s762 + $0x8] sm:$0xf]
      %v1003 = vld [vmem:[%s762 + $0xc] sm:$0x1]
      %v1004 = vld [vmem:[%s762 + $0x10] sm:$0xf]
      %v1005 = vld [vmem:[%s762 + $0x14] sm:$0x1]
      %v1006 = vld [vmem:[%s762 + $0x18] sm:$0xf]
      %v1007 = vld [vmem:[%s762 + $0x1c] sm:$0x1]
      %v1008 = vld [vmem:[%s762 + $0x20] sm:$0xf]
      %v1009 = vld [vmem:[%s762 + $0x24] sm:$0x1]
      %v1010 = vld [vmem:[%s762 + $0x28] sm:$0xf]
      %v1011 = vld [vmem:[%s762 + $0x2c] sm:$0x1]
      %v1012 = vld [vmem:[%s762 + $0x30] sm:$0xf]
      %v1013 = vld [vmem:[%s762 + $0x34] sm:$0x1]
      %v1014 = vld [vmem:[%s762 + $0x38] sm:$0xf]
      %v1015 = vld [vmem:[%s762 + $0x3c] sm:$0x1]
      %v1017 = vshrl.u32 %v1000, 16
      %v1019 = vrot.slane %v1017, 4
      %v1020 = vshll.u32 %v1000, 16
      %v1022 = vrot.slane %v1020, 5
      %v1023 = vor.u32 %v1019, %v1022
      %v1024 = vrot.slane %v1023, 4
      %v1026 = vshll.u32 %v1001, 16
      %v1028 = vrot.slane %v1026, 5
      %v1029 = vsel %vm547, %v1024, %v1028
      %v1031 = vshrl.u32 %v1002, 16
      %v1033 = vrot.slane %v1031, 4
      %v1034 = vshll.u32 %v1002, 16
      %v1036 = vrot.slane %v1034, 5
      %v1037 = vor.u32 %v1033, %v1036
      %v1038 = vrot.slane %v1037, 4
      %v1040 = vshll.u32 %v1003, 16
      %v1042 = vrot.slane %v1040, 5
      %v1043 = vsel %vm547, %v1038, %v1042
      %v1045 = vshrl.u32 %v1004, 16
      %v1047 = vrot.slane %v1045, 4
      %v1048 = vshll.u32 %v1004, 16
      %v1050 = vrot.slane %v1048, 5
      %v1051 = vor.u32 %v1047, %v1050
      %v1052 = vrot.slane %v1051, 4
      %v1054 = vshll.u32 %v1005, 16
      %v1056 = vrot.slane %v1054, 5
      %v1057 = vsel %vm547, %v1052, %v1056
      %v1059 = vshrl.u32 %v1006, 16
      %v1061 = vrot.slane %v1059, 4
      %v1062 = vshll.u32 %v1006, 16
      %v1064 = vrot.slane %v1062, 5
      %v1065 = vor.u32 %v1061, %v1064
      %v1066 = vrot.slane %v1065, 4
      %v1068 = vshll.u32 %v1007, 16
      %v1070 = vrot.slane %v1068, 5
      %v1071 = vsel %vm547, %v1066, %v1070
      %v1073 = vshrl.u32 %v1008, 16
      %v1075 = vrot.slane %v1073, 4
      %v1076 = vshll.u32 %v1008, 16
      %v1078 = vrot.slane %v1076, 5
      %v1079 = vor.u32 %v1075, %v1078
      %v1080 = vrot.slane %v1079, 4
      %v1082 = vshll.u32 %v1009, 16
      %v1084 = vrot.slane %v1082, 5
      %v1085 = vsel %vm547, %v1080, %v1084
      %v1087 = vshrl.u32 %v1010, 16
      %v1089 = vrot.slane %v1087, 4
      %v1090 = vshll.u32 %v1010, 16
      %v1092 = vrot.slane %v1090, 5
      %v1093 = vor.u32 %v1089, %v1092
      %v1094 = vrot.slane %v1093, 4
      %v1096 = vshll.u32 %v1011, 16
      %v1098 = vrot.slane %v1096, 5
      %v1099 = vsel %vm547, %v1094, %v1098
      %v1101 = vshrl.u32 %v1012, 16
      %v1103 = vrot.slane %v1101, 4
      %v1104 = vshll.u32 %v1012, 16
      %v1106 = vrot.slane %v1104, 5
      %v1107 = vor.u32 %v1103, %v1106
      %v1108 = vrot.slane %v1107, 4
      %v1110 = vshll.u32 %v1013, 16
      %v1112 = vrot.slane %v1110, 5
      %v1113 = vsel %vm547, %v1108, %v1112
      %v1115 = vshrl.u32 %v1014, 16
      %v1117 = vrot.slane %v1115, 4
      %v1118 = vshll.u32 %v1014, 16
      %v1120 = vrot.slane %v1118, 5
      %v1121 = vor.u32 %v1117, %v1120
      %v1122 = vrot.slane %v1121, 4
      %v1124 = vshll.u32 %v1015, 16
      %v1126 = vrot.slane %v1124, 5
      %v1127 = vsel %vm547, %v1122, %v1126
      %s1128 = scalar_lea.vmem %s1, 10
      %v1129 = vld [vmem:[%s1128] sm:$0x3]
      %v1130 = vunpack.c.l.b16 %v1029
      %v1131 = vunpack.c.l.b16 %v1043
      %v1132 = vunpack.c.l.b16 %v1057
      %v1133 = vunpack.c.l.b16 %v1071
      %v1134 = vunpack.c.l.b16 %v1085
      %v1135 = vunpack.c.l.b16 %v1099
      %v1136 = vunpack.c.l.b16 %v1113
      %v1137 = vunpack.c.l.b16 %v1127
      %v1138 = vpack.c.b16 %v1131, %v1130
      %v1139 = vpack.c.b16 %v1133, %v1132
      %v1140 = vpack.c.b16 %v1135, %v1134
      %v1141 = vpack.c.b16 %v1137, %v1136
      %v1143 = vsel %vm347, %v1138, 0
      %v1146 = vsel %vm347, %v1139, 0
      %v1149 = vsel %vm347, %v1140, 0
      %v1152 = vsel %vm347, %v1141, 0
      %v1155 = vsel %vm360, %v1129, 0
      %1157 = vmatprep.subr.bf16.mxu0 0
      %1158 = vmatpush1.bf16.msra.mxu0 %v1155
      %1159 = vmatprep.subr.bf16.mxu0 0
      %1160 = vmatpush1.bf16.msra.mxu0 0
      %1161 = vmatprep.subr.bf16.mxu0 0
      %1162 = vmatpush1.bf16.msra.mxu0 0
      %1163 = vmatprep.subr.bf16.mxu0 0
      %1164 = vmatpush1.bf16.msra.mxu0 0
      %1165 = vmatprep.subr.bf16.mxu0 0
      %1166 = vmatpush1.bf16.msra.mxu0 0
      %1167 = vmatprep.subr.bf16.mxu0 0
      %1168 = vmatpush1.bf16.msra.mxu0 0
      %1169 = vmatprep.subr.bf16.mxu0 0
      %1170 = vmatpush1.bf16.msra.mxu0 0
      %1171 = vmatprep.subr.bf16.mxu0 0
      %1172 = vmatpush1.bf16.msra.mxu0 0
      %1173 = vmatprep.subr.bf16.mxu0 0
      %1174 = vmatpush1.bf16.msra.mxu0 0
      %1175 = vmatprep.subr.bf16.mxu0 0
      %1176 = vmatpush1.bf16.msra.mxu0 0
      %1177 = vmatprep.subr.bf16.mxu0 0
      %1178 = vmatpush1.bf16.msra.mxu0 0
      %1179 = vmatprep.subr.bf16.mxu0 0
      %1180 = vmatpush1.bf16.msra.mxu0 0
      %1181 = vmatprep.subr.bf16.mxu0 0
      %1182 = vmatpush1.bf16.msra.mxu0 0
      %1183 = vmatprep.subr.bf16.mxu0 0
      %1184 = vmatpush1.bf16.msra.mxu0 0
      %1185 = vmatprep.subr.bf16.mxu0 0
      %1186 = vmatpush1.bf16.msra.mxu0 0
      %1187 = vmatprep.subr.bf16.mxu0 0
      %1188 = vmatpush1.bf16.msra.mxu0 0
      %1189 = vmatprep.mubr.bf16.mxu0 0
      %1190 = vmatmul.mubr.bf16.gmra.mrb[0].mxu0 %v1143
      %v1191 = vpop.f32.mrb[0].mxu0
      %v1192 = vadd.f32 0.0, %v1191
      %v1193 = vpop.f32.mrb[0].mxu0
      %v1194 = vpop.f32.mrb[0].mxu0
      %v1195 = vadd.f32 0.0, %v1194
      %v1196 = vpop.f32.mrb[0].mxu0
      %1197 = vmatprep.mubr.bf16.mxu0 0
      %1198 = vmatmul.mubr.bf16.gmra.mrb[0].mxu0 %v1146
      %v1199 = vpop.f32.mrb[0].mxu0
      %v1200 = vadd.f32 0.0, %v1199
      %v1201 = vpop.f32.mrb[0].mxu0
      %v1202 = vpop.f32.mrb[0].mxu0
      %v1203 = vadd.f32 0.0, %v1202
      %v1204 = vpop.f32.mrb[0].mxu0
      %1205 = vmatprep.mubr.bf16.mxu0 0
      %1206 = vmatmul.mubr.bf16.gmra.mrb[0].mxu0 %v1149
      %v1207 = vpop.f32.mrb[0].mxu0
      %v1208 = vadd.f32 0.0, %v1207
      %v1209 = vpop.f32.mrb[0].mxu0
      %v1210 = vpop.f32.mrb[0].mxu0
      %v1211 = vadd.f32 0.0, %v1210
      %v1212 = vpop.f32.mrb[0].mxu0
      %1213 = vmatprep.mubr.bf16.mxu0 0
      %1214 = vmatmul.mubr.bf16.gmra.mrb[0].mxu0 %v1152
      %v1215 = vpop.f32.mrb[0].mxu0
      %v1216 = vadd.f32 0.0, %v1215
      %v1217 = vpop.f32.mrb[0].mxu0
      %v1218 = vpop.f32.mrb[0].mxu0
      %v1219 = vadd.f32 0.0, %v1218
      %v1220 = vpop.f32.mrb[0].mxu0
      %1221 = vdwg.mxu0
      %v1222 = vadd.f32 %v992, %v1192
      %v1223 = vadd.f32 %v993, %v1195
      %v1224 = vadd.f32 %v994, %v1200
      %v1225 = vadd.f32 %v995, %v1203
      %v1226 = vadd.f32 %v996, %v1208
      %v1227 = vadd.f32 %v997, %v1211
      %v1228 = vadd.f32 %v998, %v1216
      %v1229 = vadd.f32 %v999, %v1219
      %s1230 = scalar_lea.vmem %s300, 8
      %v1231 = vld [vmem:[%s1230] sm:$0xf]
      %v1232 = vld [vmem:[%s1230 + $0x8] sm:$0xf]
      %v1233 = vld [vmem:[%s1230 + $0x10] sm:$0xf]
      %v1234 = vld [vmem:[%s1230 + $0x18] sm:$0xf]
      %v1235 = vld [vmem:[%s1230 + $0x20] sm:$0xf]
      %v1236 = vld [vmem:[%s1230 + $0x28] sm:$0xf]
      %v1237 = vld [vmem:[%s1230 + $0x30] sm:$0xf]
      %v1238 = vld [vmem:[%s1230 + $0x38] sm:$0xf]
      %s1239 = scalar_lea.vmem %s1, 12
      %v1240 = vld [vmem:[%s1239] sm:$0x3]
      %v1249 = vunpack.c.l.b16 %v1231
      %v1250 = vunpack.c.l.b16 %v1232
      %v1251 = vunpack.c.l.b16 %v1233
      %v1252 = vunpack.c.l.b16 %v1234
      %v1253 = vunpack.c.l.b16 %v1235
      %v1254 = vunpack.c.l.b16 %v1236
      %v1255 = vunpack.c.l.b16 %v1237
      %v1256 = vunpack.c.l.b16 %v1238
      %v1257 = vpack.c.b16 %v1250, %v1249
      %v1258 = vpack.c.b16 %v1252, %v1251
      %v1259 = vpack.c.b16 %v1254, %v1253
      %v1260 = vpack.c.b16 %v1256, %v1255
      %v1262 = vsel %vm347, %v1257, 0
      %v1265 = vsel %vm347, %v1258, 0
      %v1268 = vsel %vm347, %v1259, 0
      %v1271 = vsel %vm347, %v1260, 0
      %v1274 = vsel %vm360, %v1240, 0
      %1276 = vmatprep.subr.bf16.mxu0 0
      %1277 = vmatpush1.bf16.msra.mxu0 %v1274
      %1278 = vmatprep.subr.bf16.mxu0 0
      %1279 = vmatpush1.bf16.msra.mxu0 0
      %1280 = vmatprep.subr.bf16.mxu0 0
      %1281 = vmatpush1.bf16.msra.mxu0 0
      %1282 = vmatprep.subr.bf16.mxu0 0
      %1283 = vmatpush1.bf16.msra.mxu0 0
      %1284 = vmatprep.subr.bf16.mxu0 0
      %1285 = vmatpush1.bf16.msra.mxu0 0
      %1286 = vmatprep.subr.bf16.mxu0 0
      %1287 = vmatpush1.bf16.msra.mxu0 0
      %1288 = vmatprep.subr.bf16.mxu0 0
      %1289 = vmatpush1.bf16.msra.mxu0 0
      %1290 = vmatprep.subr.bf16.mxu0 0
      %1291 = vmatpush1.bf16.msra.mxu0 0
      %1292 = vmatprep.subr.bf16.mxu0 0
      %1293 = vmatpush1.bf16.msra.mxu0 0
      %1294 = vmatprep.subr.bf16.mxu0 0
      %1295 = vmatpush1.bf16.msra.mxu0 0
      %1296 = vmatprep.subr.bf16.mxu0 0
      %1297 = vmatpush1.bf16.msra.mxu0 0
      %1298 = vmatprep.subr.bf16.mxu0 0
      %1299 = vmatpush1.bf16.msra.mxu0 0
      %1300 = vmatprep.subr.bf16.mxu0 0
      %1301 = vmatpush1.bf16.msra.mxu0 0
      %1302 = vmatprep.subr.bf16.mxu0 0
      %1303 = vmatpush1.bf16.msra.mxu0 0
      %1304 = vmatprep.subr.bf16.mxu0 0
      %1305 = vmatpush1.bf16.msra.mxu0 0
      %1306 = vmatprep.subr.bf16.mxu0 0
      %1307 = vmatpush1.bf16.msra.mxu0 0
      %1308 = vmatprep.mubr.bf16.mxu0 0
      %1309 = vmatmul.mubr.bf16.gmra.mrb[0].mxu0 %v1262
      %v1310 = vpop.f32.mrb[0].mxu0
      %v1311 = vadd.f32 0.0, %v1310
      %v1312 = vpop.f32.mrb[0].mxu0
      %v1313 = vpop.f32.mrb[0].mxu0
      %v1314 = vadd.f32 0.0, %v1313
      %v1315 = vpop.f32.mrb[0].mxu0
      %1316 = vmatprep.mubr.bf16.mxu0 0
      %1317 = vmatmul.mubr.bf16.gmra.mrb[0].mxu0 %v1265
      %v1318 = vpop.f32.mrb[0].mxu0
      %v1319 = vadd.f32 0.0, %v1318
      %v1320 = vpop.f32.mrb[0].mxu0
      %v1321 = vpop.f32.mrb[0].mxu0
      %v1322 = vadd.f32 0.0, %v1321
      %v1323 = vpop.f32.mrb[0].mxu0
      %1324 = vmatprep.mubr.bf16.mxu0 0
      %1325 = vmatmul.mubr.bf16.gmra.mrb[0].mxu0 %v1268
      %v1326 = vpop.f32.mrb[0].mxu0
      %v1327 = vadd.f32 0.0, %v1326
      %v1328 = vpop.f32.mrb[0].mxu0
      %v1329 = vpop.f32.mrb[0].mxu0
      %v1330 = vadd.f32 0.0, %v1329
      %v1331 = vpop.f32.mrb[0].mxu0
      %1332 = vmatprep.mubr.bf16.mxu0 0
      %1333 = vmatmul.mubr.bf16.gmra.mrb[0].mxu0 %v1271
      %v1334 = vpop.f32.mrb[0].mxu0
      %v1335 = vadd.f32 0.0, %v1334
      %v1336 = vpop.f32.mrb[0].mxu0
      %v1337 = vpop.f32.mrb[0].mxu0
      %v1338 = vadd.f32 0.0, %v1337
      %v1339 = vpop.f32.mrb[0].mxu0
      %1340 = vdwg.mxu0
      %v1341 = vadd.f32 %v1222, %v1311
      %v1342 = vadd.f32 %v1223, %v1314
      %v1343 = vadd.f32 %v1224, %v1319
      %v1344 = vadd.f32 %v1225, %v1322
      %v1345 = vadd.f32 %v1226, %v1327
      %v1346 = vadd.f32 %v1227, %v1330
      %v1347 = vadd.f32 %v1228, %v1335
      %v1348 = vadd.f32 %v1229, %v1338
      %s1349 = scalar_lea.vmem %s300, 80
      %v1350 = vld [vmem:[%s1349] sm:$0xf]
      %v1351 = vld [vmem:[%s1349 + $0x8] sm:$0xf]
      %v1352 = vld [vmem:[%s1349 + $0x10] sm:$0xf]
      %v1353 = vld [vmem:[%s1349 + $0x18] sm:$0xf]
      %v1354 = vld [vmem:[%s1349 + $0x20] sm:$0xf]
      %v1355 = vld [vmem:[%s1349 + $0x28] sm:$0xf]
      %v1356 = vld [vmem:[%s1349 + $0x30] sm:$0xf]
      %v1357 = vld [vmem:[%s1349 + $0x38] sm:$0xf]
      %s1358 = scalar_lea.vmem %s1, 14
      %v1359 = vld [vmem:[%s1358] sm:$0x3]
      %v1368 = vunpack.c.l.b16 %v1350
      %v1369 = vunpack.c.l.b16 %v1351
      %v1370 = vunpack.c.l.b16 %v1352
      %v1371 = vunpack.c.l.b16 %v1353
      %v1372 = vunpack.c.l.b16 %v1354
      %v1373 = vunpack.c.l.b16 %v1355
      %v1374 = vunpack.c.l.b16 %v1356
      %v1375 = vunpack.c.l.b16 %v1357
      %v1376 = vpack.c.b16 %v1369, %v1368
      %v1377 = vpack.c.b16 %v1371, %v1370
      %v1378 = vpack.c.b16 %v1373, %v1372
      %v1379 = vpack.c.b16 %v1375, %v1374
      %v1381 = vsel %vm347, %v1376, 0
      %v1384 = vsel %vm347, %v1377, 0
      %v1387 = vsel %vm347, %v1378, 0
      %v1390 = vsel %vm347, %v1379, 0
      %v1393 = vsel %vm360, %v1359, 0
      %1395 = vmatprep.subr.bf16.mxu0 0
      %1396 = vmatpush1.bf16.msra.mxu0 %v1393
      %1397 = vmatprep.subr.bf16.mxu0 0
      %1398 = vmatpush1.bf16.msra.mxu0 0
      %1399 = vmatprep.subr.bf16.mxu0 0
      %1400 = vmatpush1.bf16.msra.mxu0 0
      %1401 = vmatprep.subr.bf16.mxu0 0
      %1402 = vmatpush1.bf16.msra.mxu0 0
      %1403 = vmatprep.subr.bf16.mxu0 0
      %1404 = vmatpush1.bf16.msra.mxu0 0
      %1405 = vmatprep.subr.bf16.mxu0 0
      %1406 = vmatpush1.bf16.msra.mxu0 0
      %1407 = vmatprep.subr.bf16.mxu0 0
      %1408 = vmatpush1.bf16.msra.mxu0 0
      %1409 = vmatprep.subr.bf16.mxu0 0
      %1410 = vmatpush1.bf16.msra.mxu0 0
      %1411 = vmatprep.subr.bf16.mxu0 0
      %1412 = vmatpush1.bf16.msra.mxu0 0
      %1413 = vmatprep.subr.bf16.mxu0 0
      %1414 = vmatpush1.bf16.msra.mxu0 0
      %1415 = vmatprep.subr.bf16.mxu0 0
      %1416 = vmatpush1.bf16.msra.mxu0 0
      %1417 = vmatprep.subr.bf16.mxu0 0
      %1418 = vmatpush1.bf16.msra.mxu0 0
      %1419 = vmatprep.subr.bf16.mxu0 0
      %1420 = vmatpush1.bf16.msra.mxu0 0
      %1421 = vmatprep.subr.bf16.mxu0 0
      %1422 = vmatpush1.bf16.msra.mxu0 0
      %1423 = vmatprep.subr.bf16.mxu0 0
      %1424 = vmatpush1.bf16.msra.mxu0 0
      %1425 = vmatprep.subr.bf16.mxu0 0
      %1426 = vmatpush1.bf16.msra.mxu0 0
      %1427 = vmatprep.mubr.bf16.mxu0 0
      %1428 = vmatmul.mubr.bf16.gmra.mrb[0].mxu0 %v1381
      %v1429 = vpop.f32.mrb[0].mxu0
      %v1430 = vadd.f32 0.0, %v1429
      %v1431 = vpop.f32.mrb[0].mxu0
      %v1432 = vpop.f32.mrb[0].mxu0
      %v1433 = vadd.f32 0.0, %v1432
      %v1434 = vpop.f32.mrb[0].mxu0
      %1435 = vmatprep.mubr.bf16.mxu0 0
      %1436 = vmatmul.mubr.bf16.gmra.mrb[0].mxu0 %v1384
      %v1437 = vpop.f32.mrb[0].mxu0
      %v1438 = vadd.f32 0.0, %v1437
      %v1439 = vpop.f32.mrb[0].mxu0
      %v1440 = vpop.f32.mrb[0].mxu0
      %v1441 = vadd.f32 0.0, %v1440
      %v1442 = vpop.f32.mrb[0].mxu0
      %1443 = vmatprep.mubr.bf16.mxu0 0
      %1444 = vmatmul.mubr.bf16.gmra.mrb[0].mxu0 %v1387
      %v1445 = vpop.f32.mrb[0].mxu0
      %v1446 = vadd.f32 0.0, %v1445
      %v1447 = vpop.f32.mrb[0].mxu0
      %v1448 = vpop.f32.mrb[0].mxu0
      %v1449 = vadd.f32 0.0, %v1448
      %v1450 = vpop.f32.mrb[0].mxu0
      %1451 = vmatprep.mubr.bf16.mxu0 0
      %1452 = vmatmul.mubr.bf16.gmra.mrb[0].mxu0 %v1390
      %v1453 = vpop.f32.mrb[0].mxu0
      %v1454 = vadd.f32 0.0, %v1453
      %v1455 = vpop.f32.mrb[0].mxu0
      %v1456 = vpop.f32.mrb[0].mxu0
      %v1457 = vadd.f32 0.0, %v1456
      %v1458 = vpop.f32.mrb[0].mxu0
      %1459 = vdwg.mxu0
      %v1460 = vadd.f32 %v1341, %v1430
      %v1461 = vadd.f32 %v1342, %v1433
      %v1462 = vadd.f32 %v1343, %v1438
      %v1463 = vadd.f32 %v1344, %v1441
      %v1464 = vadd.f32 %v1345, %v1446
      %v1465 = vadd.f32 %v1346, %v1449
      %v1466 = vadd.f32 %v1347, %v1454
      %v1467 = vadd.f32 %v1348, %v1457
      %v1468 = vld [vmem:[%s1230] sm:$0xf]
      %v1469 = vld [vmem:[%s1230 + $0x4] sm:$0x1]
      %v1470 = vld [vmem:[%s1230 + $0x8] sm:$0xf]
      %v1471 = vld [vmem:[%s1230 + $0xc] sm:$0x1]
      %v1472 = vld [vmem:[%s1230 + $0x10] sm:$0xf]
      %v1473 = vld [vmem:[%s1230 + $0x14] sm:$0x1]
      %v1474 = vld [vmem:[%s1230 + $0x18] sm:$0xf]
      %v1475 = vld [vmem:[%s1230 + $0x1c] sm:$0x1]
      %v1476 = vld [vmem:[%s1230 + $0x20] sm:$0xf]
      %v1477 = vld [vmem:[%s1230 + $0x24] sm:$0x1]
      %v1478 = vld [vmem:[%s1230 + $0x28] sm:$0xf]
      %v1479 = vld [vmem:[%s1230 + $0x2c] sm:$0x1]
      %v1480 = vld [vmem:[%s1230 + $0x30] sm:$0xf]
      %v1481 = vld [vmem:[%s1230 + $0x34] sm:$0x1]
      %v1482 = vld [vmem:[%s1230 + $0x38] sm:$0xf]
      %v1483 = vld [vmem:[%s1230 + $0x3c] sm:$0x1]
      %v1485 = vshrl.u32 %v1468, 16
      %v1487 = vrot.slane %v1485, 4
      %v1488 = vshll.u32 %v1468, 16
      %v1490 = vrot.slane %v1488, 5
      %v1491 = vor.u32 %v1487, %v1490
      %v1492 = vrot.slane %v1491, 4
      %v1494 = vshll.u32 %v1469, 16
      %v1496 = vrot.slane %v1494, 5
      %v1497 = vsel %vm547, %v1492, %v1496
      %v1499 = vshrl.u32 %v1470, 16
      %v1501 = vrot.slane %v1499, 4
      %v1502 = vshll.u32 %v1470, 16
      %v1504 = vrot.slane %v1502, 5
      %v1505 = vor.u32 %v1501, %v1504
      %v1506 = vrot.slane %v1505, 4
      %v1508 = vshll.u32 %v1471, 16
      %v1510 = vrot.slane %v1508, 5
      %v1511 = vsel %vm547, %v1506, %v1510
      %v1513 = vshrl.u32 %v1472, 16
      %v1515 = vrot.slane %v1513, 4
      %v1516 = vshll.u32 %v1472, 16
      %v1518 = vrot.slane %v1516, 5
      %v1519 = vor.u32 %v1515, %v1518
      %v1520 = vrot.slane %v1519, 4
      %v1522 = vshll.u32 %v1473, 16
      %v1524 = vrot.slane %v1522, 5
      %v1525 = vsel %vm547, %v1520, %v1524
      %v1527 = vshrl.u32 %v1474, 16
      %v1529 = vrot.slane %v1527, 4
      %v1530 = vshll.u32 %v1474, 16
      %v1532 = vrot.slane %v1530, 5
      %v1533 = vor.u32 %v1529, %v1532
      %v1534 = vrot.slane %v1533, 4
      %v1536 = vshll.u32 %v1475, 16
      %v1538 = vrot.slane %v1536, 5
      %v1539 = vsel %vm547, %v1534, %v1538
      %v1541 = vshrl.u32 %v1476, 16
      %v1543 = vrot.slane %v1541, 4
      %v1544 = vshll.u32 %v1476, 16
      %v1546 = vrot.slane %v1544, 5
      %v1547 = vor.u32 %v1543, %v1546
      %v1548 = vrot.slane %v1547, 4
      %v1550 = vshll.u32 %v1477, 16
      %v1552 = vrot.slane %v1550, 5
      %v1553 = vsel %vm547, %v1548, %v1552
      %v1555 = vshrl.u32 %v1478, 16
      %v1557 = vrot.slane %v1555, 4
      %v1558 = vshll.u32 %v1478, 16
      %v1560 = vrot.slane %v1558, 5
      %v1561 = vor.u32 %v1557, %v1560
      %v1562 = vrot.slane %v1561, 4
      %v1564 = vshll.u32 %v1479, 16
      %v1566 = vrot.slane %v1564, 5
      %v1567 = vsel %vm547, %v1562, %v1566
      %v1569 = vshrl.u32 %v1480, 16
      %v1571 = vrot.slane %v1569, 4
      %v1572 = vshll.u32 %v1480, 16
      %v1574 = vrot.slane %v1572, 5
      %v1575 = vor.u32 %v1571, %v1574
      %v1576 = vrot.slane %v1575, 4
      %v1578 = vshll.u32 %v1481, 16
      %v1580 = vrot.slane %v1578, 5
      %v1581 = vsel %vm547, %v1576, %v1580
      %v1583 = vshrl.u32 %v1482, 16
      %v1585 = vrot.slane %v1583, 4
      %v1586 = vshll.u32 %v1482, 16
      %v1588 = vrot.slane %v1586, 5
      %v1589 = vor.u32 %v1585, %v1588
      %v1590 = vrot.slane %v1589, 4
      %v1592 = vshll.u32 %v1483, 16
      %v1594 = vrot.slane %v1592, 5
      %v1595 = vsel %vm547, %v1590, %v1594
      %s1596 = scalar_lea.vmem %s1, 16
      %v1597 = vld [vmem:[%s1596] sm:$0x3]
      %v1598 = vunpack.c.l.b16 %v1497
      %v1599 = vunpack.c.l.b16 %v1511
      %v1600 = vunpack.c.l.b16 %v1525
      %v1601 = vunpack.c.l.b16 %v1539
      %v1602 = vunpack.c.l.b16 %v1553
      %v1603 = vunpack.c.l.b16 %v1567
      %v1604 = vunpack.c.l.b16 %v1581
      %v1605 = vunpack.c.l.b16 %v1595
      %v1606 = vpack.c.b16 %v1599, %v1598
      %v1607 = vpack.c.b16 %v1601, %v1600
      %v1608 = vpack.c.b16 %v1603, %v1602
      %v1609 = vpack.c.b16 %v1605, %v1604
      %v1611 = vsel %vm347, %v1606, 0
      %v1614 = vsel %vm347, %v1607, 0
      %v1617 = vsel %vm347, %v1608, 0
      %v1620 = vsel %vm347, %v1609, 0
      %v1623 = vsel %vm360, %v1597, 0
      %1625 = vmatprep.subr.bf16.mxu0 0
      %1626 = vmatpush1.bf16.msra.mxu0 %v1623
      %1627 = vmatprep.subr.bf16.mxu0 0
      %1628 = vmatpush1.bf16.msra.mxu0 0
      %1629 = vmatprep.subr.bf16.mxu0 0
      %1630 = vmatpush1.bf16.msra.mxu0 0
      %1631 = vmatprep.subr.bf16.mxu0 0
      %1632 = vmatpush1.bf16.msra.mxu0 0
      %1633 = vmatprep.subr.bf16.mxu0 0
      %1634 = vmatpush1.bf16.msra.mxu0 0
      %1635 = vmatprep.subr.bf16.mxu0 0
      %1636 = vmatpush1.bf16.msra.mxu0 0
      %1637 = vmatprep.subr.bf16.mxu0 0
      %1638 = vmatpush1.bf16.msra.mxu0 0
      %1639 = vmatprep.subr.bf16.mxu0 0
      %1640 = vmatpush1.bf16.msra.mxu0 0
      %1641 = vmatprep.subr.bf16.mxu0 0
      %1642 = vmatpush1.bf16.msra.mxu0 0
      %1643 = vmatprep.subr.bf16.mxu0 0
      %1644 = vmatpush1.bf16.msra.mxu0 0
      %1645 = vmatprep.subr.bf16.mxu0 0
      %1646 = vmatpush1.bf16.msra.mxu0 0
      %1647 = vmatprep.subr.bf16.mxu0 0
      %1648 = vmatpush1.bf16.msra.mxu0 0
      %1649 = vmatprep.subr.bf16.mxu0 0
      %1650 = vmatpush1.bf16.msra.mxu0 0
      %1651 = vmatprep.subr.bf16.mxu0 0
      %1652 = vmatpush1.bf16.msra.mxu0 0
      %1653 = vmatprep.subr.bf16.mxu0 0
      %1654 = vmatpush1.bf16.msra.mxu0 0
      %1655 = vmatprep.subr.bf16.mxu0 0
      %1656 = vmatpush1.bf16.msra.mxu0 0
      %1657 = vmatprep.mubr.bf16.mxu0 0
      %1658 = vmatmul.mubr.bf16.gmra.mrb[0].mxu0 %v1611
      %v1659 = vpop.f32.mrb[0].mxu0
      %v1660 = vadd.f32 0.0, %v1659
      %v1661 = vpop.f32.mrb[0].mxu0
      %v1662 = vpop.f32.mrb[0].mxu0
      %v1663 = vadd.f32 0.0, %v1662
      %v1664 = vpop.f32.mrb[0].mxu0
      %1665 = vmatprep.mubr.bf16.mxu0 0
      %1666 = vmatmul.mubr.bf16.gmra.mrb[0].mxu0 %v1614
      %v1667 = vpop.f32.mrb[0].mxu0
      %v1668 = vadd.f32 0.0, %v1667
      %v1669 = vpop.f32.mrb[0].mxu0
      %v1670 = vpop.f32.mrb[0].mxu0
      %v1671 = vadd.f32 0.0, %v1670
      %v1672 = vpop.f32.mrb[0].mxu0
      %1673 = vmatprep.mubr.bf16.mxu0 0
      %1674 = vmatmul.mubr.bf16.gmra.mrb[0].mxu0 %v1617
      %v1675 = vpop.f32.mrb[0].mxu0
      %v1676 = vadd.f32 0.0, %v1675
      %v1677 = vpop.f32.mrb[0].mxu0
      %v1678 = vpop.f32.mrb[0].mxu0
      %v1679 = vadd.f32 0.0, %v1678
      %v1680 = vpop.f32.mrb[0].mxu0
      %1681 = vmatprep.mubr.bf16.mxu0 0
      %1682 = vmatmul.mubr.bf16.gmra.mrb[0].mxu0 %v1620
      %v1683 = vpop.f32.mrb[0].mxu0
      %v1684 = vadd.f32 0.0, %v1683
      %v1685 = vpop.f32.mrb[0].mxu0
      %v1686 = vpop.f32.mrb[0].mxu0
      %v1687 = vadd.f32 0.0, %v1686
      %v1688 = vpop.f32.mrb[0].mxu0
      %1689 = vdwg.mxu0
      %v1690 = vadd.f32 %v1460, %v1660
      %v1691 = vadd.f32 %v1461, %v1663
      %v1692 = vadd.f32 %v1462, %v1668
      %v1693 = vadd.f32 %v1463, %v1671
      %v1694 = vadd.f32 %v1464, %v1676
      %v1695 = vadd.f32 %v1465, %v1679
      %v1696 = vadd.f32 %v1466, %v1684
      %v1697 = vadd.f32 %v1467, %v1687
      %v1698 = vld [vmem:[%s3] sm:$0x3]
      %v1700 = vsel %vm360, %v1698, 0
      %1702 = vmatprep.subr.bf16.mxu0 0
      %1703 = vmatpush1.bf16.msra.mxu0 %v1700
      %1704 = vmatprep.subr.bf16.mxu0 0
      %1705 = vmatpush1.bf16.msra.mxu0 0
      %1706 = vmatprep.subr.bf16.mxu0 0
      %1707 = vmatpush1.bf16.msra.mxu0 0
      %1708 = vmatprep.subr.bf16.mxu0 0
      %1709 = vmatpush1.bf16.msra.mxu0 0
      %1710 = vmatprep.subr.bf16.mxu0 0
      %1711 = vmatpush1.bf16.msra.mxu0 0
      %1712 = vmatprep.subr.bf16.mxu0 0
      %1713 = vmatpush1.bf16.msra.mxu0 0
      %1714 = vmatprep.subr.bf16.mxu0 0
      %1715 = vmatpush1.bf16.msra.mxu0 0
      %1716 = vmatprep.subr.bf16.mxu0 0
      %1717 = vmatpush1.bf16.msra.mxu0 0
      %1718 = vmatprep.subr.bf16.mxu0 0
      %1719 = vmatpush1.bf16.msra.mxu0 0
      %1720 = vmatprep.subr.bf16.mxu0 0
      %1721 = vmatpush1.bf16.msra.mxu0 0
      %1722 = vmatprep.subr.bf16.mxu0 0
      %1723 = vmatpush1.bf16.msra.mxu0 0
      %1724 = vmatprep.subr.bf16.mxu0 0
      %1725 = vmatpush1.bf16.msra.mxu0 0
      %1726 = vmatprep.subr.bf16.mxu0 0
      %1727 = vmatpush1.bf16.msra.mxu0 0
      %1728 = vmatprep.subr.bf16.mxu0 0
      %1729 = vmatpush1.bf16.msra.mxu0 0
      %1730 = vmatprep.subr.bf16.mxu0 0
      %1731 = vmatpush1.bf16.msra.mxu0 0
      %1732 = vmatprep.subr.bf16.mxu0 0
      %1733 = vmatpush1.bf16.msra.mxu0 0
      %1734 = vmatprep.mubr.bf16.mxu0 0
      %1735 = vmatmul.mubr.bf16.gmra.mrb[0].mxu0 %v913
      %v1736 = vpop.f32.mrb[0].mxu0
      %v1737 = vadd.f32 0.0, %v1736
      %v1738 = vpop.f32.mrb[0].mxu0
      %v1739 = vpop.f32.mrb[0].mxu0
      %v1740 = vadd.f32 0.0, %v1739
      %v1741 = vpop.f32.mrb[0].mxu0
      %1742 = vmatprep.mubr.bf16.mxu0 0
      %1743 = vmatmul.mubr.bf16.gmra.mrb[0].mxu0 %v916
      %v1744 = vpop.f32.mrb[0].mxu0
      %v1745 = vadd.f32 0.0, %v1744
      %v1746 = vpop.f32.mrb[0].mxu0
      %v1747 = vpop.f32.mrb[0].mxu0
      %v1748 = vadd.f32 0.0, %v1747
      %v1749 = vpop.f32.mrb[0].mxu0
      %1750 = vmatprep.mubr.bf16.mxu0 0
      %1751 = vmatmul.mubr.bf16.gmra.mrb[0].mxu0 %v919
      %v1752 = vpop.f32.mrb[0].mxu0
      %v1753 = vadd.f32 0.0, %v1752
      %v1754 = vpop.f32.mrb[0].mxu0
      %v1755 = vpop.f32.mrb[0].mxu0
      %v1756 = vadd.f32 0.0, %v1755
      %v1757 = vpop.f32.mrb[0].mxu0
      %1758 = vmatprep.mubr.bf16.mxu0 0
      %1759 = vmatmul.mubr.bf16.gmra.mrb[0].mxu0 %v922
      %v1760 = vpop.f32.mrb[0].mxu0
      %v1761 = vadd.f32 0.0, %v1760
      %v1762 = vpop.f32.mrb[0].mxu0
      %v1763 = vpop.f32.mrb[0].mxu0
      %v1764 = vadd.f32 0.0, %v1763
      %v1765 = vpop.f32.mrb[0].mxu0
      %1766 = vdwg.mxu0
      %v1767 = vld [vmem:[%s4] sm:$0x1]
      %v1769 = vlaneseq
      %v1770 = vshrl.u32 %v1769, 7
      %v1771 = vsub.s32 0, %v1770
      %v1772 = vrot.slane %v1767, %v1771
      %v1774 = vmul.f32 %v1690, %v1772
      %v1775 = vmul.f32 %v1691, %v1772
      %v1776 = vmul.f32 %v1692, %v1772
      %v1777 = vmul.f32 %v1693, %v1772
      %v1778 = vmul.f32 %v1694, %v1772
      %v1779 = vmul.f32 %v1695, %v1772
      %v1780 = vmul.f32 %v1696, %v1772
      %v1781 = vmul.f32 %v1697, %v1772
      %v1782 = vld [vmem:[%s5] sm:$0x1]
      %v1784 = vlaneseq
      %v1785 = vshrl.u32 %v1784, 7
      %v1786 = vsub.s32 0, %v1785
      %v1787 = vrot.slane %v1782, %v1786
      %v1789 = vadd.f32 %v1774, %v1787
      %v1790 = vadd.f32 %v1775, %v1787
      %v1791 = vadd.f32 %v1776, %v1787
      %v1792 = vadd.f32 %v1777, %v1787
      %v1793 = vadd.f32 %v1778, %v1787
      %v1794 = vadd.f32 %v1779, %v1787
      %v1795 = vadd.f32 %v1780, %v1787
      %v1796 = vadd.f32 %v1781, %v1787
      %v1797 = vmax.f32 %v1789, 0.0
      %v1798 = vmax.f32 %v1790, 0.0
      %v1799 = vmax.f32 %v1791, 0.0
      %v1800 = vmax.f32 %v1792, 0.0
      %v1801 = vmax.f32 %v1793, 0.0
      %v1802 = vmax.f32 %v1794, 0.0
      %v1803 = vmax.f32 %v1795, 0.0
      %v1804 = vmax.f32 %v1796, 0.0
      %vm1805 = vcmask 60416
      %1806 = vst.msk [vmem:[#allocation2] sm:$0xf] %vm1805, 0
      %vm1807 = vcmask 57344
      %1808 = vst.msk [vmem:[#allocation2 + $0x4] sm:$0x1] %vm1807, 0
      %1809 = vst.msk [vmem:[#allocation2 + $0x8] sm:$0xf] %vm1805, 0
      %1810 = vst.msk [vmem:[#allocation2 + $0xc] sm:$0x1] %vm1807, 0
      %1811 = vst.msk [vmem:[#allocation2 + $0x10] sm:$0xf] %vm1805, 0
      %1812 = vst.msk [vmem:[#allocation2 + $0x14] sm:$0x1] %vm1807, 0
      %1813 = vst.msk [vmem:[#allocation2 + $0x18] sm:$0xf] %vm1805, 0
      %1814 = vst.msk [vmem:[#allocation2 + $0x1c] sm:$0x1] %vm1807, 0
      %1815 = vst.msk [vmem:[#allocation2 + $0x20] sm:$0xf] %vm1805, 0
      %1816 = vst.msk [vmem:[#allocation2 + $0x24] sm:$0x1] %vm1807, 0
      %1817 = vst.msk [vmem:[#allocation2 + $0x28] sm:$0xf] %vm1805, 0
      %1818 = vst.msk [vmem:[#allocation2 + $0x2c] sm:$0x1] %vm1807, 0
      %1819 = vst.msk [vmem:[#allocation2 + $0x30] sm:$0xf] %vm1805, 0
      %1820 = vst.msk [vmem:[#allocation2 + $0x34] sm:$0x1] %vm1807, 0
      %1821 = vst.msk [vmem:[#allocation2 + $0x38] sm:$0xf] %vm1805, 0
      %1822 = vst.msk [vmem:[#allocation2 + $0x3c] sm:$0x1] %vm1807, 0
      %1823 = vst.msk [vmem:[#allocation2 + $0x40] sm:$0xf] %vm1805, 0
      %1824 = vst.msk [vmem:[#allocation2 + $0x44] sm:$0x1] %vm1807, 0
      %1825 = vst.msk [vmem:[#allocation2 + $0x48] sm:$0xf] %vm1805, 0
      %1826 = vst.msk [vmem:[#allocation2 + $0x4c] sm:$0x1] %vm1807, 0
      %v1827 = vpack.c.bf16 %v1797, %v1797
      %v1828 = vpack.c.bf16 %v1798, %v1798
      %v1829 = vpack.c.bf16 %v1799, %v1799
      %v1830 = vpack.c.bf16 %v1800, %v1800
      %v1831 = vpack.c.bf16 %v1801, %v1801
      %v1832 = vpack.c.bf16 %v1802, %v1802
      %v1833 = vpack.c.bf16 %v1803, %v1803
      %v1834 = vpack.c.bf16 %v1804, %v1804
      %v1843 = vunpack.c.l.b16 %v1827
      %v1844 = vunpack.c.l.b16 %v1828
      %v1845 = vunpack.c.l.b16 %v1829
      %v1846 = vunpack.c.l.b16 %v1830
      %v1847 = vunpack.c.l.b16 %v1831
      %v1848 = vunpack.c.l.b16 %v1832
      %v1849 = vunpack.c.l.b16 %v1833
      %v1850 = vunpack.c.l.b16 %v1834
      %v1851 = vpack.c.b16 %v1843, %v1843
      %v1852 = vpack.c.b16 %v1844, %v1844
      %v1853 = vpack.c.b16 %v1845, %v1845
      %v1854 = vpack.c.b16 %v1846, %v1846
      %v1855 = vpack.c.b16 %v1847, %v1847
      %v1856 = vpack.c.b16 %v1848, %v1848
      %v1857 = vpack.c.b16 %v1849, %v1849
      %v1858 = vpack.c.b16 %v1850, %v1850
      %v1860 = vshrl.u32 %v1851, 16
      %v1862 = vrot.slane %v1860, 7
      %v1863 = vshll.u32 %v1851, 16
      %v1865 = vor.u32 %v1862, %v1863
      %v1866 = vrot.slane %v1862, 4
      %v1868 = vshrl.u32 %v1852, 16
      %v1870 = vrot.slane %v1868, 7
      %v1871 = vshll.u32 %v1852, 16
      %v1873 = vor.u32 %v1870, %v1871
      %v1874 = vrot.slane %v1870, 4
      %v1876 = vshrl.u32 %v1853, 16
      %v1878 = vrot.slane %v1876, 7
      %v1879 = vshll.u32 %v1853, 16
      %v1881 = vor.u32 %v1878, %v1879
      %v1882 = vrot.slane %v1878, 4
      %v1884 = vshrl.u32 %v1854, 16
      %v1886 = vrot.slane %v1884, 7
      %v1887 = vshll.u32 %v1854, 16
      %v1889 = vor.u32 %v1886, %v1887
      %v1890 = vrot.slane %v1886, 4
      %v1892 = vshrl.u32 %v1855, 16
      %v1894 = vrot.slane %v1892, 7
      %v1895 = vshll.u32 %v1855, 16
      %v1897 = vor.u32 %v1894, %v1895
      %v1898 = vrot.slane %v1894, 4
      %v1900 = vshrl.u32 %v1856, 16
      %v1902 = vrot.slane %v1900, 7
      %v1903 = vshll.u32 %v1856, 16
      %v1905 = vor.u32 %v1902, %v1903
      %v1906 = vrot.slane %v1902, 4
      %v1908 = vshrl.u32 %v1857, 16
      %v1910 = vrot.slane %v1908, 7
      %v1911 = vshll.u32 %v1857, 16
      %v1913 = vor.u32 %v1910, %v1911
      %v1914 = vrot.slane %v1910, 4
      %v1916 = vshrl.u32 %v1858, 16
      %v1918 = vrot.slane %v1916, 7
      %v1919 = vshll.u32 %v1858, 16
      %v1921 = vor.u32 %v1918, %v1919
      %v1922 = vrot.slane %v1918, 4
      %s1939 = scalar_lea.vmem [#allocation2], 8
      %vm1940 = vcmask 60416
      %vm1941 = vsmask.f32 7938
      %vm1942 = vmand %vm1940, %vm1941
      %v1943 = vld [vmem:[%s1939] sm:$0xf]
      %v1944 = vsel %vm1942, %v1865, %v1943
      %1945 = vst [vmem:[%s1939] sm:$0xf] %v1944
      %vm1946 = vcmask 57344
      %vm1947 = vsmask.f32 256
      %vm1948 = vmand %vm1946, %vm1947
      %v1949 = vld [vmem:[%s1939 + $0x4] sm:$0x1]
      %v1950 = vsel %vm1948, %v1866, %v1949
      %1951 = vst [vmem:[%s1939 + $0x4] sm:$0x1] %v1950
      %v1952 = vld [vmem:[%s1939 + $0x8] sm:$0xf]
      %v1953 = vsel %vm1942, %v1873, %v1952
      %1954 = vst [vmem:[%s1939 + $0x8] sm:$0xf] %v1953
      %v1955 = vld [vmem:[%s1939 + $0xc] sm:$0x1]
      %v1956 = vsel %vm1948, %v1874, %v1955
      %1957 = vst [vmem:[%s1939 + $0xc] sm:$0x1] %v1956
      %v1958 = vld [vmem:[%s1939 + $0x10] sm:$0xf]
      %v1959 = vsel %vm1942, %v1881, %v1958
      %1960 = vst [vmem:[%s1939 + $0x10] sm:$0xf] %v1959
      %v1961 = vld [vmem:[%s1939 + $0x14] sm:$0x1]
      %v1962 = vsel %vm1948, %v1882, %v1961
      %1963 = vst [vmem:[%s1939 + $0x14] sm:$0x1] %v1962
      %v1964 = vld [vmem:[%s1939 + $0x18] sm:$0xf]
      %v1965 = vsel %vm1942, %v1889, %v1964
      %1966 = vst [vmem:[%s1939 + $0x18] sm:$0xf] %v1965
      %v1967 = vld [vmem:[%s1939 + $0x1c] sm:$0x1]
      %v1968 = vsel %vm1948, %v1890, %v1967
      %1969 = vst [vmem:[%s1939 + $0x1c] sm:$0x1] %v1968
      %v1970 = vld [vmem:[%s1939 + $0x20] sm:$0xf]
      %v1971 = vsel %vm1942, %v1897, %v1970
      %1972 = vst [vmem:[%s1939 + $0x20] sm:$0xf] %v1971
      %v1973 = vld [vmem:[%s1939 + $0x24] sm:$0x1]
      %v1974 = vsel %vm1948, %v1898, %v1973
      %1975 = vst [vmem:[%s1939 + $0x24] sm:$0x1] %v1974
      %v1976 = vld [vmem:[%s1939 + $0x28] sm:$0xf]
      %v1977 = vsel %vm1942, %v1905, %v1976
      %1978 = vst [vmem:[%s1939 + $0x28] sm:$0xf] %v1977
      %v1979 = vld [vmem:[%s1939 + $0x2c] sm:$0x1]
      %v1980 = vsel %vm1948, %v1906, %v1979
      %1981 = vst [vmem:[%s1939 + $0x2c] sm:$0x1] %v1980
      %v1982 = vld [vmem:[%s1939 + $0x30] sm:$0xf]
      %v1983 = vsel %vm1942, %v1913, %v1982
      %1984 = vst [vmem:[%s1939 + $0x30] sm:$0xf] %v1983
      %v1985 = vld [vmem:[%s1939 + $0x34] sm:$0x1]
      %v1986 = vsel %vm1948, %v1914, %v1985
      %1987 = vst [vmem:[%s1939 + $0x34] sm:$0x1] %v1986
      %v1988 = vld [vmem:[%s1939 + $0x38] sm:$0xf]
      %v1989 = vsel %vm1942, %v1921, %v1988
      %1990 = vst [vmem:[%s1939 + $0x38] sm:$0xf] %v1989
      %v1991 = vld [vmem:[%s1939 + $0x3c] sm:$0x1]
      %v1992 = vsel %vm1948, %v1922, %v1991
      %1993 = vst [vmem:[%s1939 + $0x3c] sm:$0x1] %v1992
      %v1994 = vld [vmem:[#allocation2] sm:$0xf]
      %v1995 = vld [vmem:[#allocation2 + $0x8] sm:$0xf]
      %v1996 = vld [vmem:[#allocation2 + $0x10] sm:$0xf]
      %v1997 = vld [vmem:[#allocation2 + $0x18] sm:$0xf]
      %v1998 = vld [vmem:[#allocation2 + $0x20] sm:$0xf]
      %v1999 = vld [vmem:[#allocation2 + $0x28] sm:$0xf]
      %v2000 = vld [vmem:[#allocation2 + $0x30] sm:$0xf]
      %v2001 = vld [vmem:[#allocation2 + $0x38] sm:$0xf]
      %v2002 = vld [vmem:[%s2] sm:$0xf]
      %v2003 = vld [vmem:[#allocation2 + $0x4] sm:$0x1]
      %v2004 = vld [vmem:[#allocation2 + $0xc] sm:$0x1]
      %v2005 = vld [vmem:[#allocation2 + $0x14] sm:$0x1]
      %v2006 = vld [vmem:[#allocation2 + $0x1c] sm:$0x1]
      %v2007 = vld [vmem:[#allocation2 + $0x24] sm:$0x1]
      %v2008 = vld [vmem:[#allocation2 + $0x2c] sm:$0x1]
      %v2009 = vld [vmem:[#allocation2 + $0x34] sm:$0x1]
      %v2010 = vld [vmem:[#allocation2 + $0x3c] sm:$0x1]
      %v2012 = vshrl.u32 %v1994, 16
      %v2014 = vrot.slane %v2012, 4
      %v2015 = vshll.u32 %v1994, 16
      %v2017 = vrot.slane %v2015, 5
      %v2018 = vor.u32 %v2014, %v2017
      %v2019 = vrot.slane %v2018, 4
      %v2021 = vshll.u32 %v2003, 16
      %v2023 = vrot.slane %v2021, 5
      %v2024 = vsel %vm547, %v2019, %v2023
      %v2026 = vshrl.u32 %v1995, 16
      %v2028 = vrot.slane %v2026, 4
      %v2029 = vshll.u32 %v1995, 16
      %v2031 = vrot.slane %v2029, 5
      %v2032 = vor.u32 %v2028, %v2031
      %v2033 = vrot.slane %v2032, 4
      %v2035 = vshll.u32 %v2004, 16
      %v2037 = vrot.slane %v2035, 5
      %v2038 = vsel %vm547, %v2033, %v2037
      %v2040 = vshrl.u32 %v1996, 16
      %v2042 = vrot.slane %v2040, 4
      %v2043 = vshll.u32 %v1996, 16
      %v2045 = vrot.slane %v2043, 5
      %v2046 = vor.u32 %v2042, %v2045
      %v2047 = vrot.slane %v2046, 4
      %v2049 = vshll.u32 %v2005, 16
      %v2051 = vrot.slane %v2049, 5
      %v2052 = vsel %vm547, %v2047, %v2051
      %v2054 = vshrl.u32 %v1997, 16
      %v2056 = vrot.slane %v2054, 4
      %v2057 = vshll.u32 %v1997, 16
      %v2059 = vrot.slane %v2057, 5
      %v2060 = vor.u32 %v2056, %v2059
      %v2061 = vrot.slane %v2060, 4
      %v2063 = vshll.u32 %v2006, 16
      %v2065 = vrot.slane %v2063, 5
      %v2066 = vsel %vm547, %v2061, %v2065
      %v2068 = vshrl.u32 %v1998, 16
      %v2070 = vrot.slane %v2068, 4
      %v2071 = vshll.u32 %v1998, 16
      %v2073 = vrot.slane %v2071, 5
      %v2074 = vor.u32 %v2070, %v2073
      %v2075 = vrot.slane %v2074, 4
      %v2077 = vshll.u32 %v2007, 16
      %v2079 = vrot.slane %v2077, 5
      %v2080 = vsel %vm547, %v2075, %v2079
      %v2082 = vshrl.u32 %v1999, 16
      %v2084 = vrot.slane %v2082, 4
      %v2085 = vshll.u32 %v1999, 16
      %v2087 = vrot.slane %v2085, 5
      %v2088 = vor.u32 %v2084, %v2087
      %v2089 = vrot.slane %v2088, 4
      %v2091 = vshll.u32 %v2008, 16
      %v2093 = vrot.slane %v2091, 5
      %v2094 = vsel %vm547, %v2089, %v2093
      %v2096 = vshrl.u32 %v2000, 16
      %v2098 = vrot.slane %v2096, 4
      %v2099 = vshll.u32 %v2000, 16
      %v2101 = vrot.slane %v2099, 5
      %v2102 = vor.u32 %v2098, %v2101
      %v2103 = vrot.slane %v2102, 4
      %v2105 = vshll.u32 %v2009, 16
      %v2107 = vrot.slane %v2105, 5
      %v2108 = vsel %vm547, %v2103, %v2107
      %v2110 = vshrl.u32 %v2001, 16
      %v2112 = vrot.slane %v2110, 4
      %v2113 = vshll.u32 %v2001, 16
      %v2115 = vrot.slane %v2113, 5
      %v2116 = vor.u32 %v2112, %v2115
      %v2117 = vrot.slane %v2116, 4
      %v2119 = vshll.u32 %v2010, 16
      %v2121 = vrot.slane %v2119, 5
      %v2122 = vsel %vm547, %v2117, %v2121
      %s2123 = scalar_lea.vmem %s2, 4
      %v2124 = vld [vmem:[%s2123] sm:$0xf]
      %v2125 = vunpack.c.l.b16 %v2024
      %v2126 = vunpack.c.l.b16 %v2038
      %v2127 = vunpack.c.l.b16 %v2052
      %v2128 = vunpack.c.l.b16 %v2066
      %v2129 = vunpack.c.l.b16 %v2080
      %v2130 = vunpack.c.l.b16 %v2094
      %v2131 = vunpack.c.l.b16 %v2108
      %v2132 = vunpack.c.l.b16 %v2122
      %v2133 = vpack.c.b16 %v2126, %v2125
      %v2134 = vpack.c.b16 %v2128, %v2127
      %v2135 = vpack.c.b16 %v2130, %v2129
      %v2136 = vpack.c.b16 %v2132, %v2131
      %vm2137 = vcmask 64512
      %v2139 = vsel %vm2137, %v2133, 0
      %v2142 = vsel %vm2137, %v2134, 0
      %v2145 = vsel %vm2137, %v2135, 0
      %v2148 = vsel %vm2137, %v2136, 0
      %vm2150 = vcmask 1043456
      %v2152 = vsel %vm2150, %v2124, 0
      %2154 = vmatprep.subr.bf16.mxu0 0
      %2155 = vmatpush1.bf16.msra.mxu0 %v2152
      %2156 = vmatprep.subr.bf16.mxu0 0
      %2157 = vmatpush1.bf16.msra.mxu0 0
      %2158 = vmatprep.subr.bf16.mxu0 0
      %2159 = vmatpush1.bf16.msra.mxu0 0
      %2160 = vmatprep.subr.bf16.mxu0 0
      %2161 = vmatpush1.bf16.msra.mxu0 0
      %2162 = vmatprep.subr.bf16.mxu0 0
      %2163 = vmatpush1.bf16.msra.mxu0 0
      %2164 = vmatprep.subr.bf16.mxu0 0
      %2165 = vmatpush1.bf16.msra.mxu0 0
      %2166 = vmatprep.subr.bf16.mxu0 0
      %2167 = vmatpush1.bf16.msra.mxu0 0
      %2168 = vmatprep.subr.bf16.mxu0 0
      %2169 = vmatpush1.bf16.msra.mxu0 0
      %2170 = vmatprep.subr.bf16.mxu0 0
      %2171 = vmatpush1.bf16.msra.mxu0 0
      %2172 = vmatprep.subr.bf16.mxu0 0
      %2173 = vmatpush1.bf16.msra.mxu0 0
      %2174 = vmatprep.subr.bf16.mxu0 0
      %2175 = vmatpush1.bf16.msra.mxu0 0
      %2176 = vmatprep.subr.bf16.mxu0 0
      %2177 = vmatpush1.bf16.msra.mxu0 0
      %2178 = vmatprep.subr.bf16.mxu0 0
      %2179 = vmatpush1.bf16.msra.mxu0 0
      %2180 = vmatprep.subr.bf16.mxu0 0
      %2181 = vmatpush1.bf16.msra.mxu0 0
      %2182 = vmatprep.subr.bf16.mxu0 0
      %2183 = vmatpush1.bf16.msra.mxu0 0
      %2184 = vmatprep.subr.bf16.mxu0 0
      %2185 = vmatpush1.bf16.msra.mxu0 0
      %2186 = vmatprep.mubr.bf16.mxu0 0
      %2187 = vmatmul.mubr.bf16.gmra.mrb[0].mxu0 %v2139
      %v2188 = vpop.f32.mrb[0].mxu0
      %v2189 = vadd.f32 0.0, %v2188
      %v2190 = vpop.f32.mrb[0].mxu0
      %v2191 = vpop.f32.mrb[0].mxu0
      %v2192 = vadd.f32 0.0, %v2191
      %v2193 = vpop.f32.mrb[0].mxu0
      %2194 = vmatprep.mubr.bf16.mxu0 0
      %2195 = vmatmul.mubr.bf16.gmra.mrb[0].mxu0 %v2142
      %v2196 = vpop.f32.mrb[0].mxu0
      %v2197 = vadd.f32 0.0, %v2196
      %v2198 = vpop.f32.mrb[0].mxu0
      %v2199 = vpop.f32.mrb[0].mxu0
      %v2200 = vadd.f32 0.0, %v2199
      %v2201 = vpop.f32.mrb[0].mxu0
      %2202 = vmatprep.mubr.bf16.mxu0 0
      %2203 = vmatmul.mubr.bf16.gmra.mrb[0].mxu0 %v2145
      %v2204 = vpop.f32.mrb[0].mxu0
      %v2205 = vadd.f32 0.0, %v2204
      %v2206 = vpop.f32.mrb[0].mxu0
      %v2207 = vpop.f32.mrb[0].mxu0
      %v2208 = vadd.f32 0.0, %v2207
      %v2209 = vpop.f32.mrb[0].mxu0
      %2210 = vmatprep.mubr.bf16.mxu0 0
      %2211 = vmatmul.mubr.bf16.gmra.mrb[0].mxu0 %v2148
      %v2212 = vpop.f32.mrb[0].mxu0
      %v2213 = vadd.f32 0.0, %v2212
      %v2214 = vpop.f32.mrb[0].mxu0
      %v2215 = vpop.f32.mrb[0].mxu0
      %v2216 = vadd.f32 0.0, %v2215
      %v2217 = vpop.f32.mrb[0].mxu0
      %2218 = vdwg.mxu0
      %v2227 = vunpack.c.l.b16 %v1994
      %v2228 = vunpack.c.l.b16 %v1995
      %v2229 = vunpack.c.l.b16 %v1996
      %v2230 = vunpack.c.l.b16 %v1997
      %v2231 = vunpack.c.l.b16 %v1998
      %v2232 = vunpack.c.l.b16 %v1999
      %v2233 = vunpack.c.l.b16 %v2000
      %v2234 = vunpack.c.l.b16 %v2001
      %v2235 = vpack.c.b16 %v2228, %v2227
      %v2236 = vpack.c.b16 %v2230, %v2229
      %v2237 = vpack.c.b16 %v2232, %v2231
      %v2238 = vpack.c.b16 %v2234, %v2233
      %v2240 = vsel %vm2137, %v2235, 0
      %v2243 = vsel %vm2137, %v2236, 0
      %v2246 = vsel %vm2137, %v2237, 0
      %v2249 = vsel %vm2137, %v2238, 0
      %v2252 = vsel %vm2150, %v2002, 0
      %2254 = vmatprep.subr.bf16.mxu0 0
      %2255 = vmatpush1.bf16.msra.mxu0 %v2252
      %2256 = vmatprep.subr.bf16.mxu0 0
      %2257 = vmatpush1.bf16.msra.mxu0 0
      %2258 = vmatprep.subr.bf16.mxu0 0
      %2259 = vmatpush1.bf16.msra.mxu0 0
      %2260 = vmatprep.subr.bf16.mxu0 0
      %2261 = vmatpush1.bf16.msra.mxu0 0
      %2262 = vmatprep.subr.bf16.mxu0 0
      %2263 = vmatpush1.bf16.msra.mxu0 0
      %2264 = vmatprep.subr.bf16.mxu0 0
      %2265 = vmatpush1.bf16.msra.mxu0 0
      %2266 = vmatprep.subr.bf16.mxu0 0
      %2267 = vmatpush1.bf16.msra.mxu0 0
      %2268 = vmatprep.subr.bf16.mxu0 0
      %2269 = vmatpush1.bf16.msra.mxu0 0
      %2270 = vmatprep.subr.bf16.mxu0 0
      %2271 = vmatpush1.bf16.msra.mxu0 0
      %2272 = vmatprep.subr.bf16.mxu0 0
      %2273 = vmatpush1.bf16.msra.mxu0 0
      %2274 = vmatprep.subr.bf16.mxu0 0
      %2275 = vmatpush1.bf16.msra.mxu0 0
      %2276 = vmatprep.subr.bf16.mxu0 0
      %2277 = vmatpush1.bf16.msra.mxu0 0
      %2278 = vmatprep.subr.bf16.mxu0 0
      %2279 = vmatpush1.bf16.msra.mxu0 0
      %2280 = vmatprep.subr.bf16.mxu0 0
      %2281 = vmatpush1.bf16.msra.mxu0 0
      %2282 = vmatprep.subr.bf16.mxu0 0
      %2283 = vmatpush1.bf16.msra.mxu0 0
      %2284 = vmatprep.subr.bf16.mxu0 0
      %2285 = vmatpush1.bf16.msra.mxu0 0
      %2286 = vmatprep.mubr.bf16.mxu0 0
      %2287 = vmatmul.mubr.bf16.gmra.mrb[0].mxu0 %v2240
      %v2288 = vpop.f32.mrb[0].mxu0
      %v2289 = vadd.f32 %v2189, %v2288
      %v2290 = vpop.f32.mrb[0].mxu0
      %v2291 = vpop.f32.mrb[0].mxu0
      %v2292 = vadd.f32 %v2192, %v2291
      %v2293 = vpop.f32.mrb[0].mxu0
      %2294 = vmatprep.mubr.bf16.mxu0 0
      %2295 = vmatmul.mubr.bf16.gmra.mrb[0].mxu0 %v2243
      %v2296 = vpop.f32.mrb[0].mxu0
      %v2297 = vadd.f32 %v2197, %v2296
      %v2298 = vpop.f32.mrb[0].mxu0
      %v2299 = vpop.f32.mrb[0].mxu0
      %v2300 = vadd.f32 %v2200, %v2299
      %v2301 = vpop.f32.mrb[0].mxu0
      %2302 = vmatprep.mubr.bf16.mxu0 0
      %2303 = vmatmul.mubr.bf16.gmra.mrb[0].mxu0 %v2246
      %v2304 = vpop.f32.mrb[0].mxu0
      %v2305 = vadd.f32 %v2205, %v2304
      %v2306 = vpop.f32.mrb[0].mxu0
      %v2307 = vpop.f32.mrb[0].mxu0
      %v2308 = vadd.f32 %v2208, %v2307
      %v2309 = vpop.f32.mrb[0].mxu0
      %2310 = vmatprep.mubr.bf16.mxu0 0
      %2311 = vmatmul.mubr.bf16.gmra.mrb[0].mxu0 %v2249
      %v2312 = vpop.f32.mrb[0].mxu0
      %v2313 = vadd.f32 %v2213, %v2312
      %v2314 = vpop.f32.mrb[0].mxu0
      %v2315 = vpop.f32.mrb[0].mxu0
      %v2316 = vadd.f32 %v2216, %v2315
      %v2317 = vpop.f32.mrb[0].mxu0
      %2318 = vdwg.mxu0
      %v2319 = vld [vmem:[#allocation2] sm:$0xe]
      %v2320 = vld [vmem:[#allocation2 + $0x8] sm:$0xe]
      %v2321 = vld [vmem:[#allocation2 + $0x10] sm:$0xe]
      %v2322 = vld [vmem:[#allocation2 + $0x18] sm:$0xe]
      %v2323 = vld [vmem:[#allocation2 + $0x20] sm:$0xe]
      %v2324 = vld [vmem:[#allocation2 + $0x28] sm:$0xe]
      %v2325 = vld [vmem:[#allocation2 + $0x30] sm:$0xe]
      %v2326 = vld [vmem:[#allocation2 + $0x38] sm:$0xe]
      %vm2343 = vcmask 1042432
      %vm2344 = vcmask 1046532
      %vm2345 = vmor %vm2343, %vm2344
      %v2346 = vrot.slane %v2319, 5
      %v2347 = vrot.slane %v2346, 4
      %v2348 = vrot.slane %v2003, 5
      %v2349 = vsel %vm2345, %v2347, %v2348
      %v2350 = vrot.slane %v2320, 5
      %v2351 = vrot.slane %v2350, 4
      %v2352 = vrot.slane %v2004, 5
      %v2353 = vsel %vm2345, %v2351, %v2352
      %v2354 = vrot.slane %v2321, 5
      %v2355 = vrot.slane %v2354, 4
      %v2356 = vrot.slane %v2005, 5
      %v2357 = vsel %vm2345, %v2355, %v2356
      %v2358 = vrot.slane %v2322, 5
      %v2359 = vrot.slane %v2358, 4
      %v2360 = vrot.slane %v2006, 5
      %v2361 = vsel %vm2345, %v2359, %v2360
      %v2362 = vrot.slane %v2323, 5
      %v2363 = vrot.slane %v2362, 4
      %v2364 = vrot.slane %v2007, 5
      %v2365 = vsel %vm2345, %v2363, %v2364
      %v2366 = vrot.slane %v2324, 5
      %v2367 = vrot.slane %v2366, 4
      %v2368 = vrot.slane %v2008, 5
      %v2369 = vsel %vm2345, %v2367, %v2368
      %v2370 = vrot.slane %v2325, 5
      %v2371 = vrot.slane %v2370, 4
      %v2372 = vrot.slane %v2009, 5
      %v2373 = vsel %vm2345, %v2371, %v2372
      %v2374 = vrot.slane %v2326, 5
      %v2375 = vrot.slane %v2374, 4
      %v2376 = vrot.slane %v2010, 5
      %v2377 = vsel %vm2345, %v2375, %v2376
      %s2378 = scalar_lea.vmem %s2, 8
      %v2379 = vld [vmem:[%s2378] sm:$0xf]
      %v2380 = vunpack.c.l.b16 %v2349
      %v2381 = vunpack.c.l.b16 %v2353
      %v2382 = vunpack.c.l.b16 %v2357
      %v2383 = vunpack.c.l.b16 %v2361
      %v2384 = vunpack.c.l.b16 %v2365
      %v2385 = vunpack.c.l.b16 %v2369
      %v2386 = vunpack.c.l.b16 %v2373
      %v2387 = vunpack.c.l.b16 %v2377
      %v2388 = vpack.c.b16 %v2381, %v2380
      %v2389 = vpack.c.b16 %v2383, %v2382
      %v2390 = vpack.c.b16 %v2385, %v2384
      %v2391 = vpack.c.b16 %v2387, %v2386
      %v2393 = vsel %vm2137, %v2388, 0
      %v2396 = vsel %vm2137, %v2389, 0
      %v2399 = vsel %vm2137, %v2390, 0
      %v2402 = vsel %vm2137, %v2391, 0
      %v2405 = vsel %vm2150, %v2379, 0
      %2407 = vmatprep.subr.bf16.mxu0 0
      %2408 = vmatpush1.bf16.msra.mxu0 %v2405
      %2409 = vmatprep.subr.bf16.mxu0 0
      %2410 = vmatpush1.bf16.msra.mxu0 0
      %2411 = vmatprep.subr.bf16.mxu0 0
      %2412 = vmatpush1.bf16.msra.mxu0 0
      %2413 = vmatprep.subr.bf16.mxu0 0
      %2414 = vmatpush1.bf16.msra.mxu0 0
      %2415 = vmatprep.subr.bf16.mxu0 0
      %2416 = vmatpush1.bf16.msra.mxu0 0
      %2417 = vmatprep.subr.bf16.mxu0 0
      %2418 = vmatpush1.bf16.msra.mxu0 0
      %2419 = vmatprep.subr.bf16.mxu0 0
      %2420 = vmatpush1.bf16.msra.mxu0 0
      %2421 = vmatprep.subr.bf16.mxu0 0
      %2422 = vmatpush1.bf16.msra.mxu0 0
      %2423 = vmatprep.subr.bf16.mxu0 0
      %2424 = vmatpush1.bf16.msra.mxu0 0
      %2425 = vmatprep.subr.bf16.mxu0 0
      %2426 = vmatpush1.bf16.msra.mxu0 0
      %2427 = vmatprep.subr.bf16.mxu0 0
      %2428 = vmatpush1.bf16.msra.mxu0 0
      %2429 = vmatprep.subr.bf16.mxu0 0
      %2430 = vmatpush1.bf16.msra.mxu0 0
      %2431 = vmatprep.subr.bf16.mxu0 0
      %2432 = vmatpush1.bf16.msra.mxu0 0
      %2433 = vmatprep.subr.bf16.mxu0 0
      %2434 = vmatpush1.bf16.msra.mxu0 0
      %2435 = vmatprep.subr.bf16.mxu0 0
      %2436 = vmatpush1.bf16.msra.mxu0 0
      %2437 = vmatprep.subr.bf16.mxu0 0
      %2438 = vmatpush1.bf16.msra.mxu0 0
      %2439 = vmatprep.mubr.bf16.mxu0 0
      %2440 = vmatmul.mubr.bf16.gmra.mrb[0].mxu0 %v2393
      %v2441 = vpop.f32.mrb[0].mxu0
      %v2442 = vadd.f32 0.0, %v2441
      %v2443 = vpop.f32.mrb[0].mxu0
      %v2444 = vpop.f32.mrb[0].mxu0
      %v2445 = vadd.f32 0.0, %v2444
      %v2446 = vpop.f32.mrb[0].mxu0
      %2447 = vmatprep.mubr.bf16.mxu0 0
      %2448 = vmatmul.mubr.bf16.gmra.mrb[0].mxu0 %v2396
      %v2449 = vpop.f32.mrb[0].mxu0
      %v2450 = vadd.f32 0.0, %v2449
      %v2451 = vpop.f32.mrb[0].mxu0
      %v2452 = vpop.f32.mrb[0].mxu0
      %v2453 = vadd.f32 0.0, %v2452
      %v2454 = vpop.f32.mrb[0].mxu0
      %2455 = vmatprep.mubr.bf16.mxu0 0
      %2456 = vmatmul.mubr.bf16.gmra.mrb[0].mxu0 %v2399
      %v2457 = vpop.f32.mrb[0].mxu0
      %v2458 = vadd.f32 0.0, %v2457
      %v2459 = vpop.f32.mrb[0].mxu0
      %v2460 = vpop.f32.mrb[0].mxu0
      %v2461 = vadd.f32 0.0, %v2460
      %v2462 = vpop.f32.mrb[0].mxu0
      %2463 = vmatprep.mubr.bf16.mxu0 0
      %2464 = vmatmul.mubr.bf16.gmra.mrb[0].mxu0 %v2402
      %v2465 = vpop.f32.mrb[0].mxu0
      %v2466 = vadd.f32 0.0, %v2465
      %v2467 = vpop.f32.mrb[0].mxu0
      %v2468 = vpop.f32.mrb[0].mxu0
      %v2469 = vadd.f32 0.0, %v2468
      %v2470 = vpop.f32.mrb[0].mxu0
      %2471 = vdwg.mxu0
      %v2472 = vadd.f32 %v2289, %v2442
      %v2473 = vadd.f32 %v2292, %v2445
      %v2474 = vadd.f32 %v2297, %v2450
      %v2475 = vadd.f32 %v2300, %v2453
      %v2476 = vadd.f32 %v2305, %v2458
      %v2477 = vadd.f32 %v2308, %v2461
      %v2478 = vadd.f32 %v2313, %v2466
      %v2479 = vadd.f32 %v2316, %v2469
      %v2480 = vld [vmem:[%s1939] sm:$0xf]
      %v2481 = vld [vmem:[%s1939 + $0x8] sm:$0xf]
      %v2482 = vld [vmem:[%s1939 + $0x10] sm:$0xf]
      %v2483 = vld [vmem:[%s1939 + $0x18] sm:$0xf]
      %v2484 = vld [vmem:[%s1939 + $0x20] sm:$0xf]
      %v2485 = vld [vmem:[%s1939 + $0x28] sm:$0xf]
      %v2486 = vld [vmem:[%s1939 + $0x30] sm:$0xf]
      %v2487 = vld [vmem:[%s1939 + $0x38] sm:$0xf]
      %s2488 = scalar_lea.vmem %s2, 12
      %v2489 = vld [vmem:[%s2488] sm:$0xf]
      %v2498 = vunpack.c.l.b16 %v2480
      %v2499 = vunpack.c.l.b16 %v2481
      %v2500 = vunpack.c.l.b16 %v2482
      %v2501 = vunpack.c.l.b16 %v2483
      %v2502 = vunpack.c.l.b16 %v2484
      %v2503 = vunpack.c.l.b16 %v2485
      %v2504 = vunpack.c.l.b16 %v2486
      %v2505 = vunpack.c.l.b16 %v2487
      %v2506 = vpack.c.b16 %v2499, %v2498
      %v2507 = vpack.c.b16 %v2501, %v2500
      %v2508 = vpack.c.b16 %v2503, %v2502
      %v2509 = vpack.c.b16 %v2505, %v2504
      %v2511 = vsel %vm2137, %v2506, 0
      %v2514 = vsel %vm2137, %v2507, 0
      %v2517 = vsel %vm2137, %v2508, 0
      %v2520 = vsel %vm2137, %v2509, 0
      %v2523 = vsel %vm2150, %v2489, 0
      %2525 = vmatprep.subr.bf16.mxu0 0
      %2526 = vmatpush1.bf16.msra.mxu0 %v2523
      %2527 = vmatprep.subr.bf16.mxu0 0
      %2528 = vmatpush1.bf16.msra.mxu0 0
      %2529 = vmatprep.subr.bf16.mxu0 0
      %2530 = vmatpush1.bf16.msra.mxu0 0
      %2531 = vmatprep.subr.bf16.mxu0 0
      %2532 = vmatpush1.bf16.msra.mxu0 0
      %2533 = vmatprep.subr.bf16.mxu0 0
      %2534 = vmatpush1.bf16.msra.mxu0 0
      %2535 = vmatprep.subr.bf16.mxu0 0
      %2536 = vmatpush1.bf16.msra.mxu0 0
      %2537 = vmatprep.subr.bf16.mxu0 0
      %2538 = vmatpush1.bf16.msra.mxu0 0
      %2539 = vmatprep.subr.bf16.mxu0 0
      %2540 = vmatpush1.bf16.msra.mxu0 0
      %2541 = vmatprep.subr.bf16.mxu0 0
      %2542 = vmatpush1.bf16.msra.mxu0 0
      %2543 = vmatprep.subr.bf16.mxu0 0
      %2544 = vmatpush1.bf16.msra.mxu0 0
      %2545 = vmatprep.subr.bf16.mxu0 0
      %2546 = vmatpush1.bf16.msra.mxu0 0
      %2547 = vmatprep.subr.bf16.mxu0 0
      %2548 = vmatpush1.bf16.msra.mxu0 0
      %2549 = vmatprep.subr.bf16.mxu0 0
      %2550 = vmatpush1.bf16.msra.mxu0 0
      %2551 = vmatprep.subr.bf16.mxu0 0
      %2552 = vmatpush1.bf16.msra.mxu0 0
      %2553 = vmatprep.subr.bf16.mxu0 0
      %2554 = vmatpush1.bf16.msra.mxu0 0
      %2555 = vmatprep.subr.bf16.mxu0 0
      %2556 = vmatpush1.bf16.msra.mxu0 0
      %2557 = vmatprep.mubr.bf16.mxu0 0
      %2558 = vmatmul.mubr.bf16.gmra.mrb[0].mxu0 %v2511
      %v2559 = vpop.f32.mrb[0].mxu0
      %v2560 = vadd.f32 0.0, %v2559
      %v2561 = vpop.f32.mrb[0].mxu0
      %v2562 = vpop.f32.mrb[0].mxu0
      %v2563 = vadd.f32 0.0, %v2562
      %v2564 = vpop.f32.mrb[0].mxu0
      %2565 = vmatprep.mubr.bf16.mxu0 0
      %2566 = vmatmul.mubr.bf16.gmra.mrb[0].mxu0 %v2514
      %v2567 = vpop.f32.mrb[0].mxu0
      %v2568 = vadd.f32 0.0, %v2567
      %v2569 = vpop.f32.mrb[0].mxu0
      %v2570 = vpop.f32.mrb[0].mxu0
      %v2571 = vadd.f32 0.0, %v2570
      %v2572 = vpop.f32.mrb[0].mxu0
      %2573 = vmatprep.mubr.bf16.mxu0 0
      %2574 = vmatmul.mubr.bf16.gmra.mrb[0].mxu0 %v2517
      %v2575 = vpop.f32.mrb[0].mxu0
      %v2576 = vadd.f32 0.0, %v2575
      %v2577 = vpop.f32.mrb[0].mxu0
      %v2578 = vpop.f32.mrb[0].mxu0
      %v2579 = vadd.f32 0.0, %v2578
      %v2580 = vpop.f32.mrb[0].mxu0
      %2581 = vmatprep.mubr.bf16.mxu0 0
      %2582 = vmatmul.mubr.bf16.gmra.mrb[0].mxu0 %v2520
      %v2583 = vpop.f32.mrb[0].mxu0
      %v2584 = vadd.f32 0.0, %v2583
      %v2585 = vpop.f32.mrb[0].mxu0
      %v2586 = vpop.f32.mrb[0].mxu0
      %v2587 = vadd.f32 0.0, %v2586
      %v2588 = vpop.f32.mrb[0].mxu0
      %2589 = vdwg.mxu0
      %v2590 = vadd.f32 %v2472, %v2560
      %v2591 = vadd.f32 %v2473, %v2563
      %v2592 = vadd.f32 %v2474, %v2568
      %v2593 = vadd.f32 %v2475, %v2571
      %v2594 = vadd.f32 %v2476, %v2576
      %v2595 = vadd.f32 %v2477, %v2579
      %v2596 = vadd.f32 %v2478, %v2584
      %v2597 = vadd.f32 %v2479, %v2587
      %v2598 = vld [vmem:[%s1939] sm:$0xf]
      %v2599 = vld [vmem:[%s1939 + $0x4] sm:$0x1]
      %v2600 = vld [vmem:[%s1939 + $0x8] sm:$0xf]
      %v2601 = vld [vmem:[%s1939 + $0xc] sm:$0x1]
      %v2602 = vld [vmem:[%s1939 + $0x10] sm:$0xf]
      %v2603 = vld [vmem:[%s1939 + $0x14] sm:$0x1]
      %v2604 = vld [vmem:[%s1939 + $0x18] sm:$0xf]
      %v2605 = vld [vmem:[%s1939 + $0x1c] sm:$0x1]
      %v2606 = vld [vmem:[%s1939 + $0x20] sm:$0xf]
      %v2607 = vld [vmem:[%s1939 + $0x24] sm:$0x1]
      %v2608 = vld [vmem:[%s1939 + $0x28] sm:$0xf]
      %v2609 = vld [vmem:[%s1939 + $0x2c] sm:$0x1]
      %v2610 = vld [vmem:[%s1939 + $0x30] sm:$0xf]
      %v2611 = vld [vmem:[%s1939 + $0x34] sm:$0x1]
      %v2612 = vld [vmem:[%s1939 + $0x38] sm:$0xf]
      %v2613 = vld [vmem:[%s1939 + $0x3c] sm:$0x1]
      %v2615 = vshrl.u32 %v2598, 16
      %v2617 = vrot.slane %v2615, 4
      %v2618 = vshll.u32 %v2598, 16
      %v2620 = vrot.slane %v2618, 5
      %v2621 = vor.u32 %v2617, %v2620
      %v2622 = vrot.slane %v2621, 4
      %v2624 = vshll.u32 %v2599, 16
      %v2626 = vrot.slane %v2624, 5
      %v2627 = vsel %vm547, %v2622, %v2626
      %v2629 = vshrl.u32 %v2600, 16
      %v2631 = vrot.slane %v2629, 4
      %v2632 = vshll.u32 %v2600, 16
      %v2634 = vrot.slane %v2632, 5
      %v2635 = vor.u32 %v2631, %v2634
      %v2636 = vrot.slane %v2635, 4
      %v2638 = vshll.u32 %v2601, 16
      %v2640 = vrot.slane %v2638, 5
      %v2641 = vsel %vm547, %v2636, %v2640
      %v2643 = vshrl.u32 %v2602, 16
      %v2645 = vrot.slane %v2643, 4
      %v2646 = vshll.u32 %v2602, 16
      %v2648 = vrot.slane %v2646, 5
      %v2649 = vor.u32 %v2645, %v2648
      %v2650 = vrot.slane %v2649, 4
      %v2652 = vshll.u32 %v2603, 16
      %v2654 = vrot.slane %v2652, 5
      %v2655 = vsel %vm547, %v2650, %v2654
      %v2657 = vshrl.u32 %v2604, 16
      %v2659 = vrot.slane %v2657, 4
      %v2660 = vshll.u32 %v2604, 16
      %v2662 = vrot.slane %v2660, 5
      %v2663 = vor.u32 %v2659, %v2662
      %v2664 = vrot.slane %v2663, 4
      %v2666 = vshll.u32 %v2605, 16
      %v2668 = vrot.slane %v2666, 5
      %v2669 = vsel %vm547, %v2664, %v2668
      %v2671 = vshrl.u32 %v2606, 16
      %v2673 = vrot.slane %v2671, 4
      %v2674 = vshll.u32 %v2606, 16
      %v2676 = vrot.slane %v2674, 5
      %v2677 = vor.u32 %v2673, %v2676
      %v2678 = vrot.slane %v2677, 4
      %v2680 = vshll.u32 %v2607, 16
      %v2682 = vrot.slane %v2680, 5
      %v2683 = vsel %vm547, %v2678, %v2682
      %v2685 = vshrl.u32 %v2608, 16
      %v2687 = vrot.slane %v2685, 4
      %v2688 = vshll.u32 %v2608, 16
      %v2690 = vrot.slane %v2688, 5
      %v2691 = vor.u32 %v2687, %v2690
      %v2692 = vrot.slane %v2691, 4
      %v2694 = vshll.u32 %v2609, 16
      %v2696 = vrot.slane %v2694, 5
      %v2697 = vsel %vm547, %v2692, %v2696
      %v2699 = vshrl.u32 %v2610, 16
      %v2701 = vrot.slane %v2699, 4
      %v2702 = vshll.u32 %v2610, 16
      %v2704 = vrot.slane %v2702, 5
      %v2705 = vor.u32 %v2701, %v2704
      %v2706 = vrot.slane %v2705, 4
      %v2708 = vshll.u32 %v2611, 16
      %v2710 = vrot.slane %v2708, 5
      %v2711 = vsel %vm547, %v2706, %v2710
      %v2713 = vshrl.u32 %v2612, 16
      %v2715 = vrot.slane %v2713, 4
      %v2716 = vshll.u32 %v2612, 16
      %v2718 = vrot.slane %v2716, 5
      %v2719 = vor.u32 %v2715, %v2718
      %v2720 = vrot.slane %v2719, 4
      %v2722 = vshll.u32 %v2613, 16
      %v2724 = vrot.slane %v2722, 5
      %v2725 = vsel %vm547, %v2720, %v2724
      %s2726 = scalar_lea.vmem %s2, 16
      %v2727 = vld [vmem:[%s2726] sm:$0xf]
      %v2728 = vunpack.c.l.b16 %v2627
      %v2729 = vunpack.c.l.b16 %v2641
      %v2730 = vunpack.c.l.b16 %v2655
      %v2731 = vunpack.c.l.b16 %v2669
      %v2732 = vunpack.c.l.b16 %v2683
      %v2733 = vunpack.c.l.b16 %v2697
      %v2734 = vunpack.c.l.b16 %v2711
      %v2735 = vunpack.c.l.b16 %v2725
      %v2736 = vpack.c.b16 %v2729, %v2728
      %v2737 = vpack.c.b16 %v2731, %v2730
      %v2738 = vpack.c.b16 %v2733, %v2732
      %v2739 = vpack.c.b16 %v2735, %v2734
      %v2741 = vsel %vm2137, %v2736, 0
      %v2744 = vsel %vm2137, %v2737, 0
      %v2747 = vsel %vm2137, %v2738, 0
      %v2750 = vsel %vm2137, %v2739, 0
      %v2753 = vsel %vm2150, %v2727, 0
      %2755 = vmatprep.subr.bf16.mxu0 0
      %2756 = vmatpush1.bf16.msra.mxu0 %v2753
      %2757 = vmatprep.subr.bf16.mxu0 0
      %2758 = vmatpush1.bf16.msra.mxu0 0
      %2759 = vmatprep.subr.bf16.mxu0 0
      %2760 = vmatpush1.bf16.msra.mxu0 0
      %2761 = vmatprep.subr.bf16.mxu0 0
      %2762 = vmatpush1.bf16.msra.mxu0 0
      %2763 = vmatprep.subr.bf16.mxu0 0
      %2764 = vmatpush1.bf16.msra.mxu0 0
      %2765 = vmatprep.subr.bf16.mxu0 0
      %2766 = vmatpush1.bf16.msra.mxu0 0
      %2767 = vmatprep.subr.bf16.mxu0 0
      %2768 = vmatpush1.bf16.msra.mxu0 0
      %2769 = vmatprep.subr.bf16.mxu0 0
      %2770 = vmatpush1.bf16.msra.mxu0 0
      %2771 = vmatprep.subr.bf16.mxu0 0
      %2772 = vmatpush1.bf16.msra.mxu0 0
      %2773 = vmatprep.subr.bf16.mxu0 0
      %2774 = vmatpush1.bf16.msra.mxu0 0
      %2775 = vmatprep.subr.bf16.mxu0 0
      %2776 = vmatpush1.bf16.msra.mxu0 0
      %2777 = vmatprep.subr.bf16.mxu0 0
      %2778 = vmatpush1.bf16.msra.mxu0 0
      %2779 = vmatprep.subr.bf16.mxu0 0
      %2780 = vmatpush1.bf16.msra.mxu0 0
      %2781 = vmatprep.subr.bf16.mxu0 0
      %2782 = vmatpush1.bf16.msra.mxu0 0
      %2783 = vmatprep.subr.bf16.mxu0 0
      %2784 = vmatpush1.bf16.msra.mxu0 0
      %2785 = vmatprep.subr.bf16.mxu0 0
      %2786 = vmatpush1.bf16.msra.mxu0 0
      %2787 = vmatprep.mubr.bf16.mxu0 0
      %2788 = vmatmul.mubr.bf16.gmra.mrb[0].mxu0 %v2741
      %v2789 = vpop.f32.mrb[0].mxu0
      %v2790 = vadd.f32 0.0, %v2789
      %v2791 = vpop.f32.mrb[0].mxu0
      %v2792 = vpop.f32.mrb[0].mxu0
      %v2793 = vadd.f32 0.0, %v2792
      %v2794 = vpop.f32.mrb[0].mxu0
      %2795 = vmatprep.mubr.bf16.mxu0 0
      %2796 = vmatmul.mubr.bf16.gmra.mrb[0].mxu0 %v2744
      %v2797 = vpop.f32.mrb[0].mxu0
      %v2798 = vadd.f32 0.0, %v2797
      %v2799 = vpop.f32.mrb[0].mxu0
      %v2800 = vpop.f32.mrb[0].mxu0
      %v2801 = vadd.f32 0.0, %v2800
      %v2802 = vpop.f32.mrb[0].mxu0
      %2803 = vmatprep.mubr.bf16.mxu0 0
      %2804 = vmatmul.mubr.bf16.gmra.mrb[0].mxu0 %v2747
      %v2805 = vpop.f32.mrb[0].mxu0
      %v2806 = vadd.f32 0.0, %v2805
      %v2807 = vpop.f32.mrb[0].mxu0
      %v2808 = vpop.f32.mrb[0].mxu0
      %v2809 = vadd.f32 0.0, %v2808
      %v2810 = vpop.f32.mrb[0].mxu0
      %2811 = vmatprep.mubr.bf16.mxu0 0
      %2812 = vmatmul.mubr.bf16.gmra.mrb[0].mxu0 %v2750
      %v2813 = vpop.f32.mrb[0].mxu0
      %v2814 = vadd.f32 0.0, %v2813
      %v2815 = vpop.f32.mrb[0].mxu0
      %v2816 = vpop.f32.mrb[0].mxu0
      %v2817 = vadd.f32 0.0, %v2816
      %v2818 = vpop.f32.mrb[0].mxu0
      %2819 = vdwg.mxu0
      %v2820 = vadd.f32 %v2590, %v2790
      %v2821 = vadd.f32 %v2591, %v2793
      %v2822 = vadd.f32 %v2592, %v2798
      %v2823 = vadd.f32 %v2593, %v2801
      %v2824 = vadd.f32 %v2594, %v2806
      %v2825 = vadd.f32 %v2595, %v2809
      %v2826 = vadd.f32 %v2596, %v2814
      %v2827 = vadd.f32 %v2597, %v2817
      %v2828 = vld [vmem:[%s1939] sm:$0xe]
      %v2829 = vld [vmem:[%s1939 + $0x8] sm:$0xe]
      %v2830 = vld [vmem:[%s1939 + $0x10] sm:$0xe]
      %v2831 = vld [vmem:[%s1939 + $0x18] sm:$0xe]
      %v2832 = vld [vmem:[%s1939 + $0x20] sm:$0xe]
      %v2833 = vld [vmem:[%s1939 + $0x28] sm:$0xe]
      %v2834 = vld [vmem:[%s1939 + $0x30] sm:$0xe]
      %v2835 = vld [vmem:[%s1939 + $0x38] sm:$0xe]
      %v2852 = vrot.slane %v2828, 5
      %v2853 = vrot.slane %v2852, 4
      %v2854 = vrot.slane %v2599, 5
      %v2855 = vsel %vm2345, %v2853, %v2854
      %v2856 = vrot.slane %v2829, 5
      %v2857 = vrot.slane %v2856, 4
      %v2858 = vrot.slane %v2601, 5
      %v2859 = vsel %vm2345, %v2857, %v2858
      %v2860 = vrot.slane %v2830, 5
      %v2861 = vrot.slane %v2860, 4
      %v2862 = vrot.slane %v2603, 5
      %v2863 = vsel %vm2345, %v2861, %v2862
      %v2864 = vrot.slane %v2831, 5
      %v2865 = vrot.slane %v2864, 4
      %v2866 = vrot.slane %v2605, 5
      %v2867 = vsel %vm2345, %v2865, %v2866
      %v2868 = vrot.slane %v2832, 5
      %v2869 = vrot.slane %v2868, 4
      %v2870 = vrot.slane %v2607, 5
      %v2871 = vsel %vm2345, %v2869, %v2870
      %v2872 = vrot.slane %v2833, 5
      %v2873 = vrot.slane %v2872, 4
      %v2874 = vrot.slane %v2609, 5
      %v2875 = vsel %vm2345, %v2873, %v2874
      %v2876 = vrot.slane %v2834, 5
      %v2877 = vrot.slane %v2876, 4
      %v2878 = vrot.slane %v2611, 5
      %v2879 = vsel %vm2345, %v2877, %v2878
      %v2880 = vrot.slane %v2835, 5
      %v2881 = vrot.slane %v2880, 4
      %v2882 = vrot.slane %v2613, 5
      %v2883 = vsel %vm2345, %v2881, %v2882
      %s2884 = scalar_lea.vmem %s2, 20
      %v2885 = vld [vmem:[%s2884] sm:$0xf]
      %v2886 = vunpack.c.l.b16 %v2855
      %v2887 = vunpack.c.l.b16 %v2859
      %v2888 = vunpack.c.l.b16 %v2863
      %v2889 = vunpack.c.l.b16 %v2867
      %v2890 = vunpack.c.l.b16 %v2871
      %v2891 = vunpack.c.l.b16 %v2875
      %v2892 = vunpack.c.l.b16 %v2879
      %v2893 = vunpack.c.l.b16 %v2883
      %v2894 = vpack.c.b16 %v2887, %v2886
      %v2895 = vpack.c.b16 %v2889, %v2888
      %v2896 = vpack.c.b16 %v2891, %v2890
      %v2897 = vpack.c.b16 %v2893, %v2892
      %v2899 = vsel %vm2137, %v2894, 0
      %v2902 = vsel %vm2137, %v2895, 0
      %v2905 = vsel %vm2137, %v2896, 0
      %v2908 = vsel %vm2137, %v2897, 0
      %v2911 = vsel %vm2150, %v2885, 0
      %2913 = vmatprep.subr.bf16.mxu0 0
      %2914 = vmatpush1.bf16.msra.mxu0 %v2911
      %2915 = vmatprep.subr.bf16.mxu0 0
      %2916 = vmatpush1.bf16.msra.mxu0 0
      %2917 = vmatprep.subr.bf16.mxu0 0
      %2918 = vmatpush1.bf16.msra.mxu0 0
      %2919 = vmatprep.subr.bf16.mxu0 0
      %2920 = vmatpush1.bf16.msra.mxu0 0
      %2921 = vmatprep.subr.bf16.mxu0 0
      %2922 = vmatpush1.bf16.msra.mxu0 0
      %2923 = vmatprep.subr.bf16.mxu0 0
      %2924 = vmatpush1.bf16.msra.mxu0 0
      %2925 = vmatprep.subr.bf16.mxu0 0
      %2926 = vmatpush1.bf16.msra.mxu0 0
      %2927 = vmatprep.subr.bf16.mxu0 0
      %2928 = vmatpush1.bf16.msra.mxu0 0
      %2929 = vmatprep.subr.bf16.mxu0 0
      %2930 = vmatpush1.bf16.msra.mxu0 0
      %2931 = vmatprep.subr.bf16.mxu0 0
      %2932 = vmatpush1.bf16.msra.mxu0 0
      %2933 = vmatprep.subr.bf16.mxu0 0
      %2934 = vmatpush1.bf16.msra.mxu0 0
      %2935 = vmatprep.subr.bf16.mxu0 0
      %2936 = vmatpush1.bf16.msra.mxu0 0
      %2937 = vmatprep.subr.bf16.mxu0 0
      %2938 = vmatpush1.bf16.msra.mxu0 0
      %2939 = vmatprep.subr.bf16.mxu0 0
      %2940 = vmatpush1.bf16.msra.mxu0 0
      %2941 = vmatprep.subr.bf16.mxu0 0
      %2942 = vmatpush1.bf16.msra.mxu0 0
      %2943 = vmatprep.subr.bf16.mxu0 0
      %2944 = vmatpush1.bf16.msra.mxu0 0
      %2945 = vmatprep.mubr.bf16.mxu0 0
      %2946 = vmatmul.mubr.bf16.gmra.mrb[0].mxu0 %v2899
      %v2947 = vpop.f32.mrb[0].mxu0
      %v2948 = vadd.f32 0.0, %v2947
      %v2949 = vpop.f32.mrb[0].mxu0
      %v2950 = vpop.f32.mrb[0].mxu0
      %v2951 = vadd.f32 0.0, %v2950
      %v2952 = vpop.f32.mrb[0].mxu0
      %2953 = vmatprep.mubr.bf16.mxu0 0
      %2954 = vmatmul.mubr.bf16.gmra.mrb[0].mxu0 %v2902
      %v2955 = vpop.f32.mrb[0].mxu0
      %v2956 = vadd.f32 0.0, %v2955
      %v2957 = vpop.f32.mrb[0].mxu0
      %v2958 = vpop.f32.mrb[0].mxu0
      %v2959 = vadd.f32 0.0, %v2958
      %v2960 = vpop.f32.mrb[0].mxu0
      %2961 = vmatprep.mubr.bf16.mxu0 0
      %2962 = vmatmul.mubr.bf16.gmra.mrb[0].mxu0 %v2905
      %v2963 = vpop.f32.mrb[0].mxu0
      %v2964 = vadd.f32 0.0, %v2963
      %v2965 = vpop.f32.mrb[0].mxu0
      %v2966 = vpop.f32.mrb[0].mxu0
      %v2967 = vadd.f32 0.0, %v2966
      %v2968 = vpop.f32.mrb[0].mxu0
      %2969 = vmatprep.mubr.bf16.mxu0 0
      %2970 = vmatmul.mubr.bf16.gmra.mrb[0].mxu0 %v2908
      %v2971 = vpop.f32.mrb[0].mxu0
      %v2972 = vadd.f32 0.0, %v2971
      %v2973 = vpop.f32.mrb[0].mxu0
      %v2974 = vpop.f32.mrb[0].mxu0
      %v2975 = vadd.f32 0.0, %v2974
      %v2976 = vpop.f32.mrb[0].mxu0
      %2977 = vdwg.mxu0
      %v2978 = vadd.f32 %v2820, %v2948
      %v2979 = vadd.f32 %v2821, %v2951
      %v2980 = vadd.f32 %v2822, %v2956
      %v2981 = vadd.f32 %v2823, %v2959
      %v2982 = vadd.f32 %v2824, %v2964
      %v2983 = vadd.f32 %v2825, %v2967
      %v2984 = vadd.f32 %v2826, %v2972
      %v2985 = vadd.f32 %v2827, %v2975
      %s2986 = scalar_lea.vmem [#allocation2], 16
      %v2987 = vld [vmem:[%s2986] sm:$0xf]
      %v2988 = vld [vmem:[%s2986 + $0x8] sm:$0xf]
      %v2989 = vld [vmem:[%s2986 + $0x10] sm:$0xf]
      %v2990 = vld [vmem:[%s2986 + $0x18] sm:$0xf]
      %v2991 = vld [vmem:[%s2986 + $0x20] sm:$0xf]
      %v2992 = vld [vmem:[%s2986 + $0x28] sm:$0xf]
      %v2993 = vld [vmem:[%s2986 + $0x30] sm:$0xf]
      %v2994 = vld [vmem:[%s2986 + $0x38] sm:$0xf]
      %s2995 = scalar_lea.vmem %s2, 24
      %v2996 = vld [vmem:[%s2995] sm:$0xf]
      %v3005 = vunpack.c.l.b16 %v2987
      %v3006 = vunpack.c.l.b16 %v2988
      %v3007 = vunpack.c.l.b16 %v2989
      %v3008 = vunpack.c.l.b16 %v2990
      %v3009 = vunpack.c.l.b16 %v2991
      %v3010 = vunpack.c.l.b16 %v2992
      %v3011 = vunpack.c.l.b16 %v2993
      %v3012 = vunpack.c.l.b16 %v2994
      %v3013 = vpack.c.b16 %v3006, %v3005
      %v3014 = vpack.c.b16 %v3008, %v3007
      %v3015 = vpack.c.b16 %v3010, %v3009
      %v3016 = vpack.c.b16 %v3012, %v3011
      %v3018 = vsel %vm2137, %v3013, 0
      %v3021 = vsel %vm2137, %v3014, 0
      %v3024 = vsel %vm2137, %v3015, 0
      %v3027 = vsel %vm2137, %v3016, 0
      %v3030 = vsel %vm2150, %v2996, 0
      %3032 = vmatprep.subr.bf16.mxu0 0
      %3033 = vmatpush1.bf16.msra.mxu0 %v3030
      %3034 = vmatprep.subr.bf16.mxu0 0
      %3035 = vmatpush1.bf16.msra.mxu0 0
      %3036 = vmatprep.subr.bf16.mxu0 0
      %3037 = vmatpush1.bf16.msra.mxu0 0
      %3038 = vmatprep.subr.bf16.mxu0 0
      %3039 = vmatpush1.bf16.msra.mxu0 0
      %3040 = vmatprep.subr.bf16.mxu0 0
      %3041 = vmatpush1.bf16.msra.mxu0 0
      %3042 = vmatprep.subr.bf16.mxu0 0
      %3043 = vmatpush1.bf16.msra.mxu0 0
      %3044 = vmatprep.subr.bf16.mxu0 0
      %3045 = vmatpush1.bf16.msra.mxu0 0
      %3046 = vmatprep.subr.bf16.mxu0 0
      %3047 = vmatpush1.bf16.msra.mxu0 0
      %3048 = vmatprep.subr.bf16.mxu0 0
      %3049 = vmatpush1.bf16.msra.mxu0 0
      %3050 = vmatprep.subr.bf16.mxu0 0
      %3051 = vmatpush1.bf16.msra.mxu0 0
      %3052 = vmatprep.subr.bf16.mxu0 0
      %3053 = vmatpush1.bf16.msra.mxu0 0
      %3054 = vmatprep.subr.bf16.mxu0 0
      %3055 = vmatpush1.bf16.msra.mxu0 0
      %3056 = vmatprep.subr.bf16.mxu0 0
      %3057 = vmatpush1.bf16.msra.mxu0 0
      %3058 = vmatprep.subr.bf16.mxu0 0
      %3059 = vmatpush1.bf16.msra.mxu0 0
      %3060 = vmatprep.subr.bf16.mxu0 0
      %3061 = vmatpush1.bf16.msra.mxu0 0
      %3062 = vmatprep.subr.bf16.mxu0 0
      %3063 = vmatpush1.bf16.msra.mxu0 0
      %3064 = vmatprep.mubr.bf16.mxu0 0
      %3065 = vmatmul.mubr.bf16.gmra.mrb[0].mxu0 %v3018
      %v3066 = vpop.f32.mrb[0].mxu0
      %v3067 = vadd.f32 0.0, %v3066
      %v3068 = vpop.f32.mrb[0].mxu0
      %v3069 = vpop.f32.mrb[0].mxu0
      %v3070 = vadd.f32 0.0, %v3069
      %v3071 = vpop.f32.mrb[0].mxu0
      %3072 = vmatprep.mubr.bf16.mxu0 0
      %3073 = vmatmul.mubr.bf16.gmra.mrb[0].mxu0 %v3021
      %v3074 = vpop.f32.mrb[0].mxu0
      %v3075 = vadd.f32 0.0, %v3074
      %v3076 = vpop.f32.mrb[0].mxu0
      %v3077 = vpop.f32.mrb[0].mxu0
      %v3078 = vadd.f32 0.0, %v3077
      %v3079 = vpop.f32.mrb[0].mxu0
      %3080 = vmatprep.mubr.bf16.mxu0 0
      %3081 = vmatmul.mubr.bf16.gmra.mrb[0].mxu0 %v3024
      %v3082 = vpop.f32.mrb[0].mxu0
      %v3083 = vadd.f32 0.0, %v3082
      %v3084 = vpop.f32.mrb[0].mxu0
      %v3085 = vpop.f32.mrb[0].mxu0
      %v3086 = vadd.f32 0.0, %v3085
      %v3087 = vpop.f32.mrb[0].mxu0
      %3088 = vmatprep.mubr.bf16.mxu0 0
      %3089 = vmatmul.mubr.bf16.gmra.mrb[0].mxu0 %v3027
      %v3090 = vpop.f32.mrb[0].mxu0
      %v3091 = vadd.f32 0.0, %v3090
      %v3092 = vpop.f32.mrb[0].mxu0
      %v3093 = vpop.f32.mrb[0].mxu0
      %v3094 = vadd.f32 0.0, %v3093
      %v3095 = vpop.f32.mrb[0].mxu0
      %3096 = vdwg.mxu0
      %v3097 = vadd.f32 %v2978, %v3067
      %v3098 = vadd.f32 %v2979, %v3070
      %v3099 = vadd.f32 %v2980, %v3075
      %v3100 = vadd.f32 %v2981, %v3078
      %v3101 = vadd.f32 %v2982, %v3083
      %v3102 = vadd.f32 %v2983, %v3086
      %v3103 = vadd.f32 %v2984, %v3091
      %v3104 = vadd.f32 %v2985, %v3094
      %v3105 = vld [vmem:[%s2986] sm:$0xf]
      %v3106 = vld [vmem:[%s2986 + $0x4] sm:$0x1]
      %v3107 = vld [vmem:[%s2986 + $0x8] sm:$0xf]
      %v3108 = vld [vmem:[%s2986 + $0xc] sm:$0x1]
      %v3109 = vld [vmem:[%s2986 + $0x10] sm:$0xf]
      %v3110 = vld [vmem:[%s2986 + $0x14] sm:$0x1]
      %v3111 = vld [vmem:[%s2986 + $0x18] sm:$0xf]
      %v3112 = vld [vmem:[%s2986 + $0x1c] sm:$0x1]
      %v3113 = vld [vmem:[%s2986 + $0x20] sm:$0xf]
      %v3114 = vld [vmem:[%s2986 + $0x24] sm:$0x1]
      %v3115 = vld [vmem:[%s2986 + $0x28] sm:$0xf]
      %v3116 = vld [vmem:[%s2986 + $0x2c] sm:$0x1]
      %v3117 = vld [vmem:[%s2986 + $0x30] sm:$0xf]
      %v3118 = vld [vmem:[%s2986 + $0x34] sm:$0x1]
      %v3119 = vld [vmem:[%s2986 + $0x38] sm:$0xf]
      %v3120 = vld [vmem:[%s2986 + $0x3c] sm:$0x1]
      %v3122 = vshrl.u32 %v3105, 16
      %v3124 = vrot.slane %v3122, 4
      %v3125 = vshll.u32 %v3105, 16
      %v3127 = vrot.slane %v3125, 5
      %v3128 = vor.u32 %v3124, %v3127
      %v3129 = vrot.slane %v3128, 4
      %v3131 = vshll.u32 %v3106, 16
      %v3133 = vrot.slane %v3131, 5
      %v3134 = vsel %vm547, %v3129, %v3133
      %v3136 = vshrl.u32 %v3107, 16
      %v3138 = vrot.slane %v3136, 4
      %v3139 = vshll.u32 %v3107, 16
      %v3141 = vrot.slane %v3139, 5
      %v3142 = vor.u32 %v3138, %v3141
      %v3143 = vrot.slane %v3142, 4
      %v3145 = vshll.u32 %v3108, 16
      %v3147 = vrot.slane %v3145, 5
      %v3148 = vsel %vm547, %v3143, %v3147
      %v3150 = vshrl.u32 %v3109, 16
      %v3152 = vrot.slane %v3150, 4
      %v3153 = vshll.u32 %v3109, 16
      %v3155 = vrot.slane %v3153, 5
      %v3156 = vor.u32 %v3152, %v3155
      %v3157 = vrot.slane %v3156, 4
      %v3159 = vshll.u32 %v3110, 16
      %v3161 = vrot.slane %v3159, 5
      %v3162 = vsel %vm547, %v3157, %v3161
      %v3164 = vshrl.u32 %v3111, 16
      %v3166 = vrot.slane %v3164, 4
      %v3167 = vshll.u32 %v3111, 16
      %v3169 = vrot.slane %v3167, 5
      %v3170 = vor.u32 %v3166, %v3169
      %v3171 = vrot.slane %v3170, 4
      %v3173 = vshll.u32 %v3112, 16
      %v3175 = vrot.slane %v3173, 5
      %v3176 = vsel %vm547, %v3171, %v3175
      %v3178 = vshrl.u32 %v3113, 16
      %v3180 = vrot.slane %v3178, 4
      %v3181 = vshll.u32 %v3113, 16
      %v3183 = vrot.slane %v3181, 5
      %v3184 = vor.u32 %v3180, %v3183
      %v3185 = vrot.slane %v3184, 4
      %v3187 = vshll.u32 %v3114, 16
      %v3189 = vrot.slane %v3187, 5
      %v3190 = vsel %vm547, %v3185, %v3189
      %v3192 = vshrl.u32 %v3115, 16
      %v3194 = vrot.slane %v3192, 4
      %v3195 = vshll.u32 %v3115, 16
      %v3197 = vrot.slane %v3195, 5
      %v3198 = vor.u32 %v3194, %v3197
      %v3199 = vrot.slane %v3198, 4
      %v3201 = vshll.u32 %v3116, 16
      %v3203 = vrot.slane %v3201, 5
      %v3204 = vsel %vm547, %v3199, %v3203
      %v3206 = vshrl.u32 %v3117, 16
      %v3208 = vrot.slane %v3206, 4
      %v3209 = vshll.u32 %v3117, 16
      %v3211 = vrot.slane %v3209, 5
      %v3212 = vor.u32 %v3208, %v3211
      %v3213 = vrot.slane %v3212, 4
      %v3215 = vshll.u32 %v3118, 16
      %v3217 = vrot.slane %v3215, 5
      %v3218 = vsel %vm547, %v3213, %v3217
      %v3220 = vshrl.u32 %v3119, 16
      %v3222 = vrot.slane %v3220, 4
      %v3223 = vshll.u32 %v3119, 16
      %v3225 = vrot.slane %v3223, 5
      %v3226 = vor.u32 %v3222, %v3225
      %v3227 = vrot.slane %v3226, 4
      %v3229 = vshll.u32 %v3120, 16
      %v3231 = vrot.slane %v3229, 5
      %v3232 = vsel %vm547, %v3227, %v3231
      %s3233 = scalar_lea.vmem %s2, 28
      %v3234 = vld [vmem:[%s3233] sm:$0xf]
      %v3235 = vunpack.c.l.b16 %v3134
      %v3236 = vunpack.c.l.b16 %v3148
      %v3237 = vunpack.c.l.b16 %v3162
      %v3238 = vunpack.c.l.b16 %v3176
      %v3239 = vunpack.c.l.b16 %v3190
      %v3240 = vunpack.c.l.b16 %v3204
      %v3241 = vunpack.c.l.b16 %v3218
      %v3242 = vunpack.c.l.b16 %v3232
      %v3243 = vpack.c.b16 %v3236, %v3235
      %v3244 = vpack.c.b16 %v3238, %v3237
      %v3245 = vpack.c.b16 %v3240, %v3239
      %v3246 = vpack.c.b16 %v3242, %v3241
      %v3248 = vsel %vm2137, %v3243, 0
      %v3251 = vsel %vm2137, %v3244, 0
      %v3254 = vsel %vm2137, %v3245, 0
      %v3257 = vsel %vm2137, %v3246, 0
      %v3260 = vsel %vm2150, %v3234, 0
      %3262 = vmatprep.subr.bf16.mxu0 0
      %3263 = vmatpush1.bf16.msra.mxu0 %v3260
      %3264 = vmatprep.subr.bf16.mxu0 0
      %3265 = vmatpush1.bf16.msra.mxu0 0
      %3266 = vmatprep.subr.bf16.mxu0 0
      %3267 = vmatpush1.bf16.msra.mxu0 0
      %3268 = vmatprep.subr.bf16.mxu0 0
      %3269 = vmatpush1.bf16.msra.mxu0 0
      %3270 = vmatprep.subr.bf16.mxu0 0
      %3271 = vmatpush1.bf16.msra.mxu0 0
      %3272 = vmatprep.subr.bf16.mxu0 0
      %3273 = vmatpush1.bf16.msra.mxu0 0
      %3274 = vmatprep.subr.bf16.mxu0 0
      %3275 = vmatpush1.bf16.msra.mxu0 0
      %3276 = vmatprep.subr.bf16.mxu0 0
      %3277 = vmatpush1.bf16.msra.mxu0 0
      %3278 = vmatprep.subr.bf16.mxu0 0
      %3279 = vmatpush1.bf16.msra.mxu0 0
      %3280 = vmatprep.subr.bf16.mxu0 0
      %3281 = vmatpush1.bf16.msra.mxu0 0
      %3282 = vmatprep.subr.bf16.mxu0 0
      %3283 = vmatpush1.bf16.msra.mxu0 0
      %3284 = vmatprep.subr.bf16.mxu0 0
      %3285 = vmatpush1.bf16.msra.mxu0 0
      %3286 = vmatprep.subr.bf16.mxu0 0
      %3287 = vmatpush1.bf16.msra.mxu0 0
      %3288 = vmatprep.subr.bf16.mxu0 0
      %3289 = vmatpush1.bf16.msra.mxu0 0
      %3290 = vmatprep.subr.bf16.mxu0 0
      %3291 = vmatpush1.bf16.msra.mxu0 0
      %3292 = vmatprep.subr.bf16.mxu0 0
      %3293 = vmatpush1.bf16.msra.mxu0 0
      %3294 = vmatprep.mubr.bf16.mxu0 0
      %3295 = vmatmul.mubr.bf16.gmra.mrb[0].mxu0 %v3248
      %v3296 = vpop.f32.mrb[0].mxu0
      %v3297 = vadd.f32 0.0, %v3296
      %v3298 = vpop.f32.mrb[0].mxu0
      %v3299 = vpop.f32.mrb[0].mxu0
      %v3300 = vadd.f32 0.0, %v3299
      %v3301 = vpop.f32.mrb[0].mxu0
      %3302 = vmatprep.mubr.bf16.mxu0 0
      %3303 = vmatmul.mubr.bf16.gmra.mrb[0].mxu0 %v3251
      %v3304 = vpop.f32.mrb[0].mxu0
      %v3305 = vadd.f32 0.0, %v3304
      %v3306 = vpop.f32.mrb[0].mxu0
      %v3307 = vpop.f32.mrb[0].mxu0
      %v3308 = vadd.f32 0.0, %v3307
      %v3309 = vpop.f32.mrb[0].mxu0
      %3310 = vmatprep.mubr.bf16.mxu0 0
      %3311 = vmatmul.mubr.bf16.gmra.mrb[0].mxu0 %v3254
      %v3312 = vpop.f32.mrb[0].mxu0
      %v3313 = vadd.f32 0.0, %v3312
      %v3314 = vpop.f32.mrb[0].mxu0
      %v3315 = vpop.f32.mrb[0].mxu0
      %v3316 = vadd.f32 0.0, %v3315
      %v3317 = vpop.f32.mrb[0].mxu0
      %3318 = vmatprep.mubr.bf16.mxu0 0
      %3319 = vmatmul.mubr.bf16.gmra.mrb[0].mxu0 %v3257
      %v3320 = vpop.f32.mrb[0].mxu0
      %v3321 = vadd.f32 0.0, %v3320
      %v3322 = vpop.f32.mrb[0].mxu0
      %v3323 = vpop.f32.mrb[0].mxu0
      %v3324 = vadd.f32 0.0, %v3323
      %v3325 = vpop.f32.mrb[0].mxu0
      %3326 = vdwg.mxu0
      %v3327 = vadd.f32 %v3097, %v3297
      %v3328 = vadd.f32 %v3098, %v3300
      %v3329 = vadd.f32 %v3099, %v3305
      %v3330 = vadd.f32 %v3100, %v3308
      %v3331 = vadd.f32 %v3101, %v3313
      %v3332 = vadd.f32 %v3102, %v3316
      %v3333 = vadd.f32 %v3103, %v3321
      %v3334 = vadd.f32 %v3104, %v3324
      %v3335 = vld [vmem:[%s2986] sm:$0xe]
      %v3336 = vld [vmem:[%s2986 + $0x8] sm:$0xe]
      %v3337 = vld [vmem:[%s2986 + $0x10] sm:$0xe]
      %v3338 = vld [vmem:[%s2986 + $0x18] sm:$0xe]
      %v3339 = vld [vmem:[%s2986 + $0x20] sm:$0xe]
      %v3340 = vld [vmem:[%s2986 + $0x28] sm:$0xe]
      %v3341 = vld [vmem:[%s2986 + $0x30] sm:$0xe]
      %v3342 = vld [vmem:[%s2986 + $0x38] sm:$0xe]
      %v3359 = vrot.slane %v3335, 5
      %v3360 = vrot.slane %v3359, 4
      %v3361 = vrot.slane %v3106, 5
      %v3362 = vsel %vm2345, %v3360, %v3361
      %v3363 = vrot.slane %v3336, 5
      %v3364 = vrot.slane %v3363, 4
      %v3365 = vrot.slane %v3108, 5
      %v3366 = vsel %vm2345, %v3364, %v3365
      %v3367 = vrot.slane %v3337, 5
      %v3368 = vrot.slane %v3367, 4
      %v3369 = vrot.slane %v3110, 5
      %v3370 = vsel %vm2345, %v3368, %v3369
      %v3371 = vrot.slane %v3338, 5
      %v3372 = vrot.slane %v3371, 4
      %v3373 = vrot.slane %v3112, 5
      %v3374 = vsel %vm2345, %v3372, %v3373
      %v3375 = vrot.slane %v3339, 5
      %v3376 = vrot.slane %v3375, 4
      %v3377 = vrot.slane %v3114, 5
      %v3378 = vsel %vm2345, %v3376, %v3377
      %v3379 = vrot.slane %v3340, 5
      %v3380 = vrot.slane %v3379, 4
      %v3381 = vrot.slane %v3116, 5
      %v3382 = vsel %vm2345, %v3380, %v3381
      %v3383 = vrot.slane %v3341, 5
      %v3384 = vrot.slane %v3383, 4
      %v3385 = vrot.slane %v3118, 5
      %v3386 = vsel %vm2345, %v3384, %v3385
      %v3387 = vrot.slane %v3342, 5
      %v3388 = vrot.slane %v3387, 4
      %v3389 = vrot.slane %v3120, 5
      %v3390 = vsel %vm2345, %v3388, %v3389
      %s3391 = scalar_lea.vmem %s2, 32
      %v3392 = vld [vmem:[%s3391] sm:$0xf]
      %v3393 = vunpack.c.l.b16 %v3362
      %v3394 = vunpack.c.l.b16 %v3366
      %v3395 = vunpack.c.l.b16 %v3370
      %v3396 = vunpack.c.l.b16 %v3374
      %v3397 = vunpack.c.l.b16 %v3378
      %v3398 = vunpack.c.l.b16 %v3382
      %v3399 = vunpack.c.l.b16 %v3386
      %v3400 = vunpack.c.l.b16 %v3390
      %v3401 = vpack.c.b16 %v3394, %v3393
      %v3402 = vpack.c.b16 %v3396, %v3395
      %v3403 = vpack.c.b16 %v3398, %v3397
      %v3404 = vpack.c.b16 %v3400, %v3399
      %v3406 = vsel %vm2137, %v3401, 0
      %v3409 = vsel %vm2137, %v3402, 0
      %v3412 = vsel %vm2137, %v3403, 0
      %v3415 = vsel %vm2137, %v3404, 0
      %v3418 = vsel %vm2150, %v3392, 0
      %3420 = vmatprep.subr.bf16.mxu0 0
      %3421 = vmatpush1.bf16.msra.mxu0 %v3418
      %3422 = vmatprep.subr.bf16.mxu0 0
      %3423 = vmatpush1.bf16.msra.mxu0 0
      %3424 = vmatprep.subr.bf16.mxu0 0
      %3425 = vmatpush1.bf16.msra.mxu0 0
      %3426 = vmatprep.subr.bf16.mxu0 0
      %3427 = vmatpush1.bf16.msra.mxu0 0
      %3428 = vmatprep.subr.bf16.mxu0 0
      %3429 = vmatpush1.bf16.msra.mxu0 0
      %3430 = vmatprep.subr.bf16.mxu0 0
      %3431 = vmatpush1.bf16.msra.mxu0 0
      %3432 = vmatprep.subr.bf16.mxu0 0
      %3433 = vmatpush1.bf16.msra.mxu0 0
      %3434 = vmatprep.subr.bf16.mxu0 0
      %3435 = vmatpush1.bf16.msra.mxu0 0
      %3436 = vmatprep.subr.bf16.mxu0 0
      %3437 = vmatpush1.bf16.msra.mxu0 0
      %3438 = vmatprep.subr.bf16.mxu0 0
      %3439 = vmatpush1.bf16.msra.mxu0 0
      %3440 = vmatprep.subr.bf16.mxu0 0
      %3441 = vmatpush1.bf16.msra.mxu0 0
      %3442 = vmatprep.subr.bf16.mxu0 0
      %3443 = vmatpush1.bf16.msra.mxu0 0
      %3444 = vmatprep.subr.bf16.mxu0 0
      %3445 = vmatpush1.bf16.msra.mxu0 0
      %3446 = vmatprep.subr.bf16.mxu0 0
      %3447 = vmatpush1.bf16.msra.mxu0 0
      %3448 = vmatprep.subr.bf16.mxu0 0
      %3449 = vmatpush1.bf16.msra.mxu0 0
      %3450 = vmatprep.subr.bf16.mxu0 0
      %3451 = vmatpush1.bf16.msra.mxu0 0
      %3452 = vmatprep.mubr.bf16.mxu0 0
      %3453 = vmatmul.mubr.bf16.gmra.mrb[0].mxu0 %v3406
      %v3454 = vpop.f32.mrb[0].mxu0
      %v3455 = vadd.f32 0.0, %v3454
      %v3456 = vpop.f32.mrb[0].mxu0
      %v3457 = vpop.f32.mrb[0].mxu0
      %v3458 = vadd.f32 0.0, %v3457
      %v3459 = vpop.f32.mrb[0].mxu0
      %3460 = vmatprep.mubr.bf16.mxu0 0
      %3461 = vmatmul.mubr.bf16.gmra.mrb[0].mxu0 %v3409
      %v3462 = vpop.f32.mrb[0].mxu0
      %v3463 = vadd.f32 0.0, %v3462
      %v3464 = vpop.f32.mrb[0].mxu0
      %v3465 = vpop.f32.mrb[0].mxu0
      %v3466 = vadd.f32 0.0, %v3465
      %v3467 = vpop.f32.mrb[0].mxu0
      %3468 = vmatprep.mubr.bf16.mxu0 0
      %3469 = vmatmul.mubr.bf16.gmra.mrb[0].mxu0 %v3412
      %v3470 = vpop.f32.mrb[0].mxu0
      %v3471 = vadd.f32 0.0, %v3470
      %v3472 = vpop.f32.mrb[0].mxu0
      %v3473 = vpop.f32.mrb[0].mxu0
      %v3474 = vadd.f32 0.0, %v3473
      %v3475 = vpop.f32.mrb[0].mxu0
      %3476 = vmatprep.mubr.bf16.mxu0 0
      %3477 = vmatmul.mubr.bf16.gmra.mrb[0].mxu0 %v3415
      %v3478 = vpop.f32.mrb[0].mxu0
      %v3479 = vadd.f32 0.0, %v3478
      %v3480 = vpop.f32.mrb[0].mxu0
      %v3481 = vpop.f32.mrb[0].mxu0
      %v3482 = vadd.f32 0.0, %v3481
      %v3483 = vpop.f32.mrb[0].mxu0
      %3484 = vdwg.mxu0
      %v3485 = vadd.f32 %v3327, %v3455
      %v3486 = vadd.f32 %v3328, %v3458
      %v3487 = vadd.f32 %v3329, %v3463
      %v3488 = vadd.f32 %v3330, %v3466
      %v3489 = vadd.f32 %v3331, %v3471
      %v3490 = vadd.f32 %v3332, %v3474
      %v3491 = vadd.f32 %v3333, %v3479
      %v3492 = vadd.f32 %v3334, %v3482
      %v3493 = vld [vmem:[%s6] sm:$0x1]
      %v3495 = vlaneseq
      %v3496 = vshrl.u32 %v3495, 7
      %v3497 = vsub.s32 0, %v3496
      %v3498 = vrot.slane %v3493, %v3497
      %v3500 = vmul.f32 %v3485, %v3498
      %v3501 = vmul.f32 %v3486, %v3498
      %v3502 = vmul.f32 %v3487, %v3498
      %v3503 = vmul.f32 %v3488, %v3498
      %v3504 = vmul.f32 %v3489, %v3498
      %v3505 = vmul.f32 %v3490, %v3498
      %v3506 = vmul.f32 %v3491, %v3498
      %v3507 = vmul.f32 %v3492, %v3498
      %v3508 = vld [vmem:[%s7] sm:$0x1]
      %v3510 = vlaneseq
      %v3511 = vshrl.u32 %v3510, 7
      %v3512 = vsub.s32 0, %v3511
      %v3513 = vrot.slane %v3508, %v3512
      %v3515 = vadd.f32 %v3500, %v3513
      %v3516 = vadd.f32 %v3501, %v3513
      %v3517 = vadd.f32 %v3502, %v3513
      %v3518 = vadd.f32 %v3503, %v3513
      %v3519 = vadd.f32 %v3504, %v3513
      %v3520 = vadd.f32 %v3505, %v3513
      %v3521 = vadd.f32 %v3506, %v3513
      %v3522 = vadd.f32 %v3507, %v3513
      %v3523 = vadd.f32 %v3515, %v1737
      %v3524 = vadd.f32 %v3516, %v1740
      %v3525 = vadd.f32 %v3517, %v1745
      %v3526 = vadd.f32 %v3518, %v1748
      %v3527 = vadd.f32 %v3519, %v1753
      %v3528 = vadd.f32 %v3520, %v1756
      %v3529 = vadd.f32 %v3521, %v1761
      %v3530 = vadd.f32 %v3522, %v1764
      %v3531 = vmax.f32 %v3523, 0.0
      %v3532 = vmax.f32 %v3524, 0.0
      %v3533 = vmax.f32 %v3525, 0.0
      %v3534 = vmax.f32 %v3526, 0.0
      %v3535 = vmax.f32 %v3527, 0.0
      %v3536 = vmax.f32 %v3528, 0.0
      %v3537 = vmax.f32 %v3529, 0.0
      %v3538 = vmax.f32 %v3530, 0.0
      %3539 = vst.msk [vmem:[%s305] sm:$0xff] %vm2137, %v3531
      %3540 = vst.msk [vmem:[%s305 + $0x8] sm:$0xff] %vm2137, %v3532
      %3541 = vst.msk [vmem:[%s305 + $0x10] sm:$0xff] %vm2137, %v3533
      %3542 = vst.msk [vmem:[%s305 + $0x18] sm:$0xff] %vm2137, %v3534
      %3543 = vst.msk [vmem:[%s305 + $0x20] sm:$0xff] %vm2137, %v3535
      %3544 = vst.msk [vmem:[%s305 + $0x28] sm:$0xff] %vm2137, %v3536
      %3545 = vst.msk [vmem:[%s305 + $0x30] sm:$0xff] %vm2137, %v3537
      %3546 = vst.msk [vmem:[%s305 + $0x38] sm:$0xff] %vm2137, %v3538
      %p3547 = scmp.lt.s32.totalorder %s19, 1
      %s3548 = scalar_select %p3547, %s19, 1
      %s3549 = smul.addr %s3548, 8
      %s3550 = smul.addr %s3549, 8
      %s3551 = scalar_lea.vmem %s8, %s3550
      // Predicated region
      $region53: #{sfp_encoder_block.1} parent=51 // pred_check
        %p3552 = pneg %p210
      $region54: #{sfp_encoder_block.1} parent=51 // pred_check_branch
        %3554 = sbr.rel (%p3552) target = $region56
      $region55: #{sfp_encoder_block.1} parent=51 // pred_region
        _
      $region56: #{sfp_encoder_block.1} parent=51 // pred_fallthru
        _
    $region52: #{sfp_encoder_block.1} parent=5 // pred_fallthru
      _
    %p3555 = scmp.le.s32.totalorder 2, %s14
    // Predicated region
    $region57: #{sfp_encoder_block.1} parent=5 // pred_check
      %p3556 = pneg %p3555
    $region58: #{sfp_encoder_block.1} parent=5 // pred_check_branch
      %3558 = sbr.rel (%p3556) target = $region60
    $region59: #{sfp_encoder_block.1} parent=5 // pred_region
      %s3559 = ssub.s32 %s14, 2
      // Predicated region
      $region61: #{sfp_encoder_block.1} parent=59 // pred_check
        %p3560 = pneg %p216
      $region62: #{sfp_encoder_block.1} parent=59 // pred_check_branch
        %3562 = sbr.rel (%p3560) target = $region64
      $region63: #{sfp_encoder_block.1} parent=59 // pred_region
        %p3563 = scmp.lt.s32.totalorder %s20, 1
        %s3564 = scalar_select %p3563, %s20, 1
        %s3565 = smul.addr %s3564, 8
        %s3566 = smul.addr %s3565, 8
        %s3567 = scalar_lea.vmem %s8, %s3566
      $region64: #{sfp_encoder_block.1} parent=59 // pred_fallthru
        _
    $region60: #{sfp_encoder_block.1} parent=5 // pred_fallthru
      _
  $region6: #{sfp_encoder_block.1} parent=0 // loop_footer
    %s18 = sadd.s32 1, %s14
  $region7: #{sfp_encoder_block.1} parent=0 // loop_footer_branch
    %13 = sbr.rel target = $region3
  $region8: #{sfp_encoder_block.1} parent=0 // loop_exit
    _

</llo_original>
